<compile_context>
chip_gen: v7x
topology: tpu7x:2x2x1
jax: 0.10.0
libtpu: 0.0.40
codegen_flags: <defaults>
</compile_context>

<pallas_src>
import numpy as np
import jax
import jax.numpy as jnp
from jax.experimental import pallas as pl
from jax.experimental.pallas import tpu as pltpu

PAD = 128  # lane padding of each 2x2-pool half (keeps all lane slices 128-aligned)


# ---------------------------------------------------------------------------
# Fused whole-network kernel (one grid step == one image)
# ---------------------------------------------------------------------------
def lenet_kernel(x_ref, w1_ref, b1_ref, pm_ref, w2_ref, b2_ref,
                 f1w_ref, f1b_ref, f2w_ref, f2b_ref, f3w_ref, f3b_ref,
                 o_ref, p1_s, p2_s):
    f32 = jnp.float32

    # ---- conv1 (3->6, 5x5) + ReLU + 2x2 max-pool --------------------------
    # x rows are pre-permuted to (h%2, h//2) order, cols are c*32 + w.
    acc_e = jnp.zeros((14, 2 * PAD), f32)   # even output rows
    acc_o = jnp.zeros((14, 2 * PAD), f32)   # odd output rows
    for ki in range(5):
        w1k = w1_ref[ki]                                       # (96, 256) banded
        if ki % 2 == 0:
            se, so = ki // 2, 16 + ki // 2
        else:
            se, so = 16 + ki // 2, ki // 2 + 1
        acc_e = acc_e + jnp.dot(x_ref[0, se:se + 14, :], w1k,
                                preferred_element_type=f32)
        acc_o = acc_o + jnp.dot(x_ref[0, so:so + 14, :], w1k,
                                preferred_element_type=f32)
    b1 = b1_ref[...]
    c_e = jnp.maximum(acc_e + b1, 0.0)
    c_o = jnp.maximum(acc_o + b1, 0.0)
    hmax = jnp.maximum(c_e, c_o)                               # height-pooled (14, 256)
    p1 = jnp.maximum(hmax[:, :PAD], hmax[:, PAD:])             # width-pooled  (14, 128)
    # permute rows to (h%2, h//2) order so conv2's even/odd slices are contiguous
    p1_s[...] = jnp.dot(pm_ref[...], p1, preferred_element_type=f32)

    # ---- conv2 (6->16, 5x5) + ReLU + 2x2 max-pool --------------------------
    acc_e = jnp.zeros((5, 2 * PAD), f32)
    acc_o = jnp.zeros((5, 2 * PAD), f32)
    for ki in range(5):
        w2k = w2_ref[ki]                                       # (128, 256) banded
        if ki % 2 == 0:
            se, so = ki // 2, 7 + ki // 2
        else:
            se, so = 7 + ki // 2, ki // 2 + 1
        acc_e = acc_e + jnp.dot(p1_s[se:se + 5, :], w2k, preferred_element_type=f32)
        acc_o = acc_o + jnp.dot(p1_s[so:so + 5, :], w2k, preferred_element_type=f32)
    b2 = b2_ref[...]
    c_e = jnp.maximum(acc_e + b2, 0.0)
    c_o = jnp.maximum(acc_o + b2, 0.0)
    hmax2 = jnp.maximum(c_e, c_o)                              # (5, 256)
    p2_s[...] = jnp.maximum(hmax2[:, :PAD], hmax2[:, PAD:])    # (5, 128), cols co*5+w

    # ---- MLP head: fc1 -> relu -> fc2 -> relu -> fc3 -----------------------
    h = f1b_ref[...]                                           # (1, 120)
    for r in range(5):
        h = h + jnp.dot(p2_s[r:r + 1, :], f1w_ref[r], preferred_element_type=f32)
    h = jnp.maximum(h, 0.0)
    h = jnp.maximum(jnp.dot(h, f2w_ref[...], preferred_element_type=f32)
                    + f2b_ref[...], 0.0)
    o_ref[0] = (jnp.dot(h, f3w_ref[...], preferred_element_type=f32)
                + f3b_ref[...])


# ---------------------------------------------------------------------------
# One-time host-side layout prep (torch-layout weights -> kernel layouts)
# ---------------------------------------------------------------------------
def _build_conv_mats(w_oihw, win, k_pad):
    """Banded matmul weights of shape (KH, k_pad, 2*PAD).

    LHS columns are ci*win + w (channel-major width); output columns are
    (oj%2)*PAD + co*(wo//2) + oj//2, so the width half of the 2x2 max-pool is
    just max(out[:, :PAD], out[:, PAD:])."""
    w_np = np.asarray(w_oihw, np.float32)
    cout, cin, kh, kw = w_np.shape
    wo = win - kw + 1
    wh = wo // 2
    mats = np.zeros((kh, k_pad, 2 * PAD), np.float32)
    for ki in range(kh):
        for kj in range(kw):
            for oj in range(wo):
                rows = np.arange(cin) * win + oj + kj
                cols = (oj % 2) * PAD + np.arange(cout) * wh + oj // 2
                mats[ki, rows[:, None], cols[None, :]] = w_np[:, :, ki, kj].T
    return jnp.asarray(mats)


def _conv_bias_row(b, wo):
    b_np = np.asarray(b, np.float32)
    half = np.zeros((PAD,), np.float32)
    half[: b_np.shape[0] * (wo // 2)] = np.repeat(b_np, wo // 2)
    return jnp.asarray(np.tile(half, 2)[None, :])              # (1, 256)


def _parity_perm(n):
    pm = np.zeros((n, n), np.float32)
    for h in range(n):
        pm[(h % 2) * (n // 2) + h // 2, h] = 1.0
    return jnp.asarray(pm)


def prepare_params(params):
    # fc1 rows re-ordered from torch (c, h, w) flatten to our (h, c*5+w) layout,
    # lane-padded to 128 per spatial row (padding multiplies only zeros).
    f1 = np.asarray(params["fc1_w"], np.float32)                # (400, 120)
    f1 = f1.reshape(16, 5, 5, 120).transpose(1, 0, 2, 3).reshape(5, 80, 120)
    f1p = np.zeros((5, PAD, 120), np.float32)
    f1p[:, :80, :] = f1
    return {
        "w1m": _build_conv_mats(params["conv1_w"], win=32, k_pad=96),   # (5, 96, 256)
        "b1r": _conv_bias_row(params["conv1_b"], wo=28),                # (1, 256)
        "pm":  _parity_perm(14),                                        # (14, 14)
        "w2m": _build_conv_mats(params["conv2_w"], win=14, k_pad=PAD),  # (5, 128, 256)
        "b2r": _conv_bias_row(params["conv2_b"], wo=10),                # (1, 256)
        "f1w": jnp.asarray(f1p),                                        # (5, 128, 120)
        "f1b": jnp.asarray(np.asarray(params["fc1_b"], np.float32)[None, :]),
        "f2w": params["fc2_w"].astype(jnp.float32),
        "f2b": params["fc2_b"].reshape(1, -1).astype(jnp.float32),
        "f3w": params["fc3_w"].astype(jnp.float32),
        "f3b": params["fc3_b"].reshape(1, -1).astype(jnp.float32),
    }


def _prep_input(x_nchw):
    # NCHW -> per-image (32, 96) with cols c*32+w, rows permuted to (h%2, h//2)
    B = x_nchw.shape[0]
    x = x_nchw.astype(jnp.float32)
    x = jnp.transpose(x, (0, 2, 1, 3)).reshape(B, 32, 96)
    x = x.reshape(B, 16, 2, 96).transpose(0, 2, 1, 3).reshape(B, 32, 96)
    return x


# ---------------------------------------------------------------------------
# Forward pass (single fused pallas_call, grid over batch)
# ---------------------------------------------------------------------------
def net_forward(x_nchw, prep):
    x = _prep_input(x_nchw)
    B = x.shape[0]

    def _full(shape):
        nd = len(shape)
        return pl.BlockSpec(shape, lambda b: (0,) * nd)   # weight resident in VMEM

    out = pl.pallas_call(
        lenet_kernel,
        out_shape=jax.ShapeDtypeStruct((B, 1, 10), jnp.float32),
        grid=(B,),
        in_specs=[
            pl.BlockSpec((1, 32, 96), lambda b: (b, 0, 0)),   # one image per step
            _full((5, 96, 2 * PAD)), _full((1, 2 * PAD)), _full((14, 14)),
            _full((5, PAD, 2 * PAD)), _full((1, 2 * PAD)),
            _full((5, PAD, 120)), _full((1, 120)),
            _full((120, 84)), _full((1, 84)),
            _full((84, 10)), _full((1, 10)),
        ],
        out_specs=pl.BlockSpec((1, 1, 10), lambda b: (b, 0, 0)),
        scratch_shapes=[pltpu.VMEM((14, PAD), jnp.float32),
                        pltpu.VMEM((5, PAD), jnp.float32)],
        compiler_params=pltpu.CompilerParams(
            dimension_semantics=("parallel",)),
    )(x, prep["w1m"], prep["b1r"], prep["pm"], prep["w2m"], prep["b2r"],
      prep["f1w"], prep["f1b"], prep["f2w"], prep["f2b"], prep["f3w"], prep["f3b"])
    return out[:, 0, :]


# ---------------------------------------------------------------------------
# Pure-JAX reference and init (sanity check of the fused kernel)
# ---------------------------------------------------------------------------
def net_forward_ref(x_nchw, params):
    x = x_nchw.astype(jnp.float32)
    y = jax.lax.conv_general_dilated(x, params["conv1_w"], (1, 1), "VALID",
                                     dimension_numbers=("NCHW", "OIHW", "NCHW"))
    y = jnp.maximum(y + params["conv1_b"][None, :, None, None], 0.0)
    y = jax.lax.reduce_window(y, -jnp.inf, jax.lax.max, (1, 1, 2, 2), (1, 1, 2, 2), "VALID")
    y = jax.lax.conv_general_dilated(y, params["conv2_w"], (1, 1), "VALID",
                                     dimension_numbers=("NCHW", "OIHW", "NCHW"))
    y = jnp.maximum(y + params["conv2_b"][None, :, None, None], 0.0)
    y = jax.lax.reduce_window(y, -jnp.inf, jax.lax.max, (1, 1, 2, 2), (1, 1, 2, 2), "VALID")
    y = y.reshape(y.shape[0], -1)
    y = jnp.maximum(y @ params["fc1_w"] + params["fc1_b"], 0.0)
    y = jnp.maximum(y @ params["fc2_w"] + params["fc2_b"], 0.0)
    return y @ params["fc3_w"] + params["fc3_b"]


def init_params(key):
    ks = jax.random.split(key, 10)
    s = 0.05
    return {
        "conv1_w": s * jax.random.normal(ks[0], (6, 3, 5, 5), jnp.float32),   # OIHW (torch)
        "conv1_b": s * jax.random.normal(ks[1], (6,), jnp.float32),
        "conv2_w": s * jax.random.normal(ks[2], (16, 6, 5, 5), jnp.float32),
        "conv2_b": s * jax.random.normal(ks[3], (16,), jnp.float32),
        "fc1_w": s * jax.random.normal(ks[4], (400, 120), jnp.float32),       # (Din, Dout)
        "fc1_b": s * jax.random.normal(ks[5], (120,), jnp.float32),
        "fc2_w": s * jax.random.normal(ks[6], (120, 84), jnp.float32),
        "fc2_b": s * jax.random.normal(ks[7], (84,), jnp.float32),
        "fc3_w": s * jax.random.normal(ks[8], (84, 10), jnp.float32),
        "fc3_b": s * jax.random.normal(ks[9], (10,), jnp.float32),
    }


if __name__ == "__main__":
    key = jax.random.PRNGKey(0)
    k_x, k_p = jax.random.split(key)
    # PyTorch-style NCHW input; 32x32 is required for the 16*5*5 flatten.
    x = jax.random.normal(k_x, (2, 3, 32, 32), jnp.float32)
    params = init_params(k_p)
    prep = prepare_params(params)        # one-time host-side layout conversion

    out = jax.jit(net_forward)(x, prep)
    out = jax.block_until_ready(out)
    assert out.shape == (2, 10), out.shape

    ref = jax.block_until_ready(net_forward_ref(x, params))
    err = float(jnp.max(jnp.abs(out - ref)))
    assert jnp.allclose(out, ref, atol=1e-2, rtol=1e-2), err

    print("KERNEL_OK")
</pallas_src>

<mosaic_0001>
module attributes {stable_mosaic.version = 11 : i64} {
  func.func @lenet_kernel(%arg0: i32, %arg1: memref<1x32x96xf32, #tpu.memory_space<vmem>>, %arg2: memref<5x96x256xf32, #tpu.memory_space<vmem>>, %arg3: memref<1x256xf32, #tpu.memory_space<vmem>>, %arg4: memref<14x14xf32, #tpu.memory_space<vmem>>, %arg5: memref<5x128x256xf32, #tpu.memory_space<vmem>>, %arg6: memref<1x256xf32, #tpu.memory_space<vmem>>, %arg7: memref<5x128x120xf32, #tpu.memory_space<vmem>>, %arg8: memref<1x120xf32, #tpu.memory_space<vmem>>, %arg9: memref<120x84xf32, #tpu.memory_space<vmem>>, %arg10: memref<1x84xf32, #tpu.memory_space<vmem>>, %arg11: memref<84x10xf32, #tpu.memory_space<vmem>>, %arg12: memref<1x10xf32, #tpu.memory_space<vmem>>, %arg13: memref<1x1x10xf32, #tpu.memory_space<vmem>>, %arg14: memref<14x128xf32, #tpu.memory_space<vmem>>, %arg15: memref<5x128xf32, #tpu.memory_space<vmem>>) attributes {dimension_semantics = [#tpu.dimension_semantics<parallel>], iteration_bounds = array<i64: 2>, scalar_prefetch = 0 : i64, scratch_operands = 2 : i64, tpu.core_type = #tpu.core_type<tc>, window_params = [{transform_indices = @transform_0, window_bounds = array<i64: 1, 32, 96>}, {pipeline_mode = #tpu.pipeline_mode<synchronous>, transform_indices = @transform_1, window_bounds = array<i64: 5, 96, 256>}, {pipeline_mode = #tpu.pipeline_mode<synchronous>, transform_indices = @transform_2, window_bounds = array<i64: 1, 256>}, {pipeline_mode = #tpu.pipeline_mode<synchronous>, transform_indices = @transform_3, window_bounds = array<i64: 14, 14>}, {pipeline_mode = #tpu.pipeline_mode<synchronous>, transform_indices = @transform_4, window_bounds = array<i64: 5, 128, 256>}, {pipeline_mode = #tpu.pipeline_mode<synchronous>, transform_indices = @transform_5, window_bounds = array<i64: 1, 256>}, {pipeline_mode = #tpu.pipeline_mode<synchronous>, transform_indices = @transform_6, window_bounds = array<i64: 5, 128, 120>}, {pipeline_mode = #tpu.pipeline_mode<synchronous>, transform_indices = @transform_7, window_bounds = array<i64: 1, 120>}, {pipeline_mode = #tpu.pipeline_mode<synchronous>, transform_indices = @transform_8, window_bounds = array<i64: 120, 84>}, {pipeline_mode = #tpu.pipeline_mode<synchronous>, transform_indices = @transform_9, window_bounds = array<i64: 1, 84>}, {pipeline_mode = #tpu.pipeline_mode<synchronous>, transform_indices = @transform_10, window_bounds = array<i64: 84, 10>}, {pipeline_mode = #tpu.pipeline_mode<synchronous>, transform_indices = @transform_11, window_bounds = array<i64: 1, 10>}, {transform_indices = @transform_12, window_bounds = array<i64: 1, 1, 10>}]} {
    %cst = arith.constant 0.000000e+00 : f32
    %0 = vector.broadcast %cst : f32 to vector<14x256xf32>
    %cst_0 = arith.constant 0.000000e+00 : f32
    %1 = vector.broadcast %cst_0 : f32 to vector<14x256xf32>
    %c0 = arith.constant 0 : index
    %c0_1 = arith.constant 0 : index
    %c0_2 = arith.constant 0 : index
    %2 = vector.load %arg2[%c0, %c0_1, %c0_2] : memref<5x96x256xf32, #tpu.memory_space<vmem>>, vector<1x96x256xf32>
    %3 = vector.shape_cast %2 : vector<1x96x256xf32> to vector<96x256xf32>
    %c0_3 = arith.constant 0 : index
    %c0_4 = arith.constant 0 : index
    %c0_5 = arith.constant 0 : index
    %4 = vector.load %arg1[%c0_3, %c0_4, %c0_5] : memref<1x32x96xf32, #tpu.memory_space<vmem>>, vector<1x14x96xf32>
    %5 = vector.shape_cast %4 : vector<1x14x96xf32> to vector<14x96xf32>
    %cst_6 = arith.constant dense<0.000000e+00> : vector<14x256xf32>
    %6 = tpu.matmul %5, %3, %cst_6 {dimension_numbers = #tpu.dot_dimension_numbers<[1], [0], [0], [1], [0, 0, 1, 1], [], []>} : vector<14x96xf32>, vector<96x256xf32>, vector<14x256xf32> -> vector<14x256xf32>
    %7 = arith.addf %0, %6 : vector<14x256xf32>
    %c0_7 = arith.constant 0 : index
    %c16 = arith.constant 16 : index
    %c0_8 = arith.constant 0 : index
    %8 = vector.load %arg1[%c0_7, %c16, %c0_8] : memref<1x32x96xf32, #tpu.memory_space<vmem>>, vector<1x14x96xf32>
    %9 = vector.shape_cast %8 : vector<1x14x96xf32> to vector<14x96xf32>
    %cst_9 = arith.constant dense<0.000000e+00> : vector<14x256xf32>
    %10 = tpu.matmul %9, %3, %cst_9 {dimension_numbers = #tpu.dot_dimension_numbers<[1], [0], [0], [1], [0, 0, 1, 1], [], []>} : vector<14x96xf32>, vector<96x256xf32>, vector<14x256xf32> -> vector<14x256xf32>
    %11 = arith.addf %1, %10 : vector<14x256xf32>
    %c1 = arith.constant 1 : index
    %c0_10 = arith.constant 0 : index
    %c0_11 = arith.constant 0 : index
    %12 = vector.load %arg2[%c1, %c0_10, %c0_11] : memref<5x96x256xf32, #tpu.memory_space<vmem>>, vector<1x96x256xf32>
    %13 = vector.shape_cast %12 : vector<1x96x256xf32> to vector<96x256xf32>
    %c0_12 = arith.constant 0 : index
    %c16_13 = arith.constant 16 : index
    %c0_14 = arith.constant 0 : index
    %14 = vector.load %arg1[%c0_12, %c16_13, %c0_14] : memref<1x32x96xf32, #tpu.memory_space<vmem>>, vector<1x14x96xf32>
    %15 = vector.shape_cast %14 : vector<1x14x96xf32> to vector<14x96xf32>
    %cst_15 = arith.constant dense<0.000000e+00> : vector<14x256xf32>
    %16 = tpu.matmul %15, %13, %cst_15 {dimension_numbers = #tpu.dot_dimension_numbers<[1], [0], [0], [1], [0, 0, 1, 1], [], []>} : vector<14x96xf32>, vector<96x256xf32>, vector<14x256xf32> -> vector<14x256xf32>
    %17 = arith.addf %7, %16 : vector<14x256xf32>
    %c0_16 = arith.constant 0 : index
    %c1_17 = arith.constant 1 : index
    %c0_18 = arith.constant 0 : index
    %18 = vector.load %arg1[%c0_16, %c1_17, %c0_18] : memref<1x32x96xf32, #tpu.memory_space<vmem>>, vector<1x14x96xf32>
    %19 = vector.shape_cast %18 : vector<1x14x96xf32> to vector<14x96xf32>
    %cst_19 = arith.constant dense<0.000000e+00> : vector<14x256xf32>
    %20 = tpu.matmul %19, %13, %cst_19 {dimension_numbers = #tpu.dot_dimension_numbers<[1], [0], [0], [1], [0, 0, 1, 1], [], []>} : vector<14x96xf32>, vector<96x256xf32>, vector<14x256xf32> -> vector<14x256xf32>
    %21 = arith.addf %11, %20 : vector<14x256xf32>
    %c2 = arith.constant 2 : index
    %c0_20 = arith.constant 0 : index
    %c0_21 = arith.constant 0 : index
    %22 = vector.load %arg2[%c2, %c0_20, %c0_21] : memref<5x96x256xf32, #tpu.memory_space<vmem>>, vector<1x96x256xf32>
    %23 = vector.shape_cast %22 : vector<1x96x256xf32> to vector<96x256xf32>
    %c0_22 = arith.constant 0 : index
    %c1_23 = arith.constant 1 : index
    %c0_24 = arith.constant 0 : index
    %24 = vector.load %arg1[%c0_22, %c1_23, %c0_24] : memref<1x32x96xf32, #tpu.memory_space<vmem>>, vector<1x14x96xf32>
    %25 = vector.shape_cast %24 : vector<1x14x96xf32> to vector<14x96xf32>
    %cst_25 = arith.constant dense<0.000000e+00> : vector<14x256xf32>
    %26 = tpu.matmul %25, %23, %cst_25 {dimension_numbers = #tpu.dot_dimension_numbers<[1], [0], [0], [1], [0, 0, 1, 1], [], []>} : vector<14x96xf32>, vector<96x256xf32>, vector<14x256xf32> -> vector<14x256xf32>
    %27 = arith.addf %17, %26 : vector<14x256xf32>
    %c0_26 = arith.constant 0 : index
    %c17 = arith.constant 17 : index
    %c0_27 = arith.constant 0 : index
    %28 = vector.load %arg1[%c0_26, %c17, %c0_27] : memref<1x32x96xf32, #tpu.memory_space<vmem>>, vector<1x14x96xf32>
    %29 = vector.shape_cast %28 : vector<1x14x96xf32> to vector<14x96xf32>
    %cst_28 = arith.constant dense<0.000000e+00> : vector<14x256xf32>
    %30 = tpu.matmul %29, %23, %cst_28 {dimension_numbers = #tpu.dot_dimension_numbers<[1], [0], [0], [1], [0, 0, 1, 1], [], []>} : vector<14x96xf32>, vector<96x256xf32>, vector<14x256xf32> -> vector<14x256xf32>
    %31 = arith.addf %21, %30 : vector<14x256xf32>
    %c3 = arith.constant 3 : index
    %c0_29 = arith.constant 0 : index
    %c0_30 = arith.constant 0 : index
    %32 = vector.load %arg2[%c3, %c0_29, %c0_30] : memref<5x96x256xf32, #tpu.memory_space<vmem>>, vector<1x96x256xf32>
    %33 = vector.shape_cast %32 : vector<1x96x256xf32> to vector<96x256xf32>
    %c0_31 = arith.constant 0 : index
    %c17_32 = arith.constant 17 : index
    %c0_33 = arith.constant 0 : index
    %34 = vector.load %arg1[%c0_31, %c17_32, %c0_33] : memref<1x32x96xf32, #tpu.memory_space<vmem>>, vector<1x14x96xf32>
    %35 = vector.shape_cast %34 : vector<1x14x96xf32> to vector<14x96xf32>
    %cst_34 = arith.constant dense<0.000000e+00> : vector<14x256xf32>
    %36 = tpu.matmul %35, %33, %cst_34 {dimension_numbers = #tpu.dot_dimension_numbers<[1], [0], [0], [1], [0, 0, 1, 1], [], []>} : vector<14x96xf32>, vector<96x256xf32>, vector<14x256xf32> -> vector<14x256xf32>
    %37 = arith.addf %27, %36 : vector<14x256xf32>
    %c0_35 = arith.constant 0 : index
    %c2_36 = arith.constant 2 : index
    %c0_37 = arith.constant 0 : index
    %38 = vector.load %arg1[%c0_35, %c2_36, %c0_37] : memref<1x32x96xf32, #tpu.memory_space<vmem>>, vector<1x14x96xf32>
    %39 = vector.shape_cast %38 : vector<1x14x96xf32> to vector<14x96xf32>
    %cst_38 = arith.constant dense<0.000000e+00> : vector<14x256xf32>
    %40 = tpu.matmul %39, %33, %cst_38 {dimension_numbers = #tpu.dot_dimension_numbers<[1], [0], [0], [1], [0, 0, 1, 1], [], []>} : vector<14x96xf32>, vector<96x256xf32>, vector<14x256xf32> -> vector<14x256xf32>
    %41 = arith.addf %31, %40 : vector<14x256xf32>
    %c4 = arith.constant 4 : index
    %c0_39 = arith.constant 0 : index
    %c0_40 = arith.constant 0 : index
    %42 = vector.load %arg2[%c4, %c0_39, %c0_40] : memref<5x96x256xf32, #tpu.memory_space<vmem>>, vector<1x96x256xf32>
    %43 = vector.shape_cast %42 : vector<1x96x256xf32> to vector<96x256xf32>
    %c0_41 = arith.constant 0 : index
    %c2_42 = arith.constant 2 : index
    %c0_43 = arith.constant 0 : index
    %44 = vector.load %arg1[%c0_41, %c2_42, %c0_43] : memref<1x32x96xf32, #tpu.memory_space<vmem>>, vector<1x14x96xf32>
    %45 = vector.shape_cast %44 : vector<1x14x96xf32> to vector<14x96xf32>
    %cst_44 = arith.constant dense<0.000000e+00> : vector<14x256xf32>
    %46 = tpu.matmul %45, %43, %cst_44 {dimension_numbers = #tpu.dot_dimension_numbers<[1], [0], [0], [1], [0, 0, 1, 1], [], []>} : vector<14x96xf32>, vector<96x256xf32>, vector<14x256xf32> -> vector<14x256xf32>
    %47 = arith.addf %37, %46 : vector<14x256xf32>
    %c0_45 = arith.constant 0 : index
    %c18 = arith.constant 18 : index
    %c0_46 = arith.constant 0 : index
    %48 = vector.load %arg1[%c0_45, %c18, %c0_46] : memref<1x32x96xf32, #tpu.memory_space<vmem>>, vector<1x14x96xf32>
    %49 = vector.shape_cast %48 : vector<1x14x96xf32> to vector<14x96xf32>
    %cst_47 = arith.constant dense<0.000000e+00> : vector<14x256xf32>
    %50 = tpu.matmul %49, %43, %cst_47 {dimension_numbers = #tpu.dot_dimension_numbers<[1], [0], [0], [1], [0, 0, 1, 1], [], []>} : vector<14x96xf32>, vector<96x256xf32>, vector<14x256xf32> -> vector<14x256xf32>
    %51 = arith.addf %41, %50 : vector<14x256xf32>
    %c0_48 = arith.constant 0 : index
    %c0_49 = arith.constant 0 : index
    %52 = vector.load %arg3[%c0_48, %c0_49] : memref<1x256xf32, #tpu.memory_space<vmem>>, vector<1x256xf32>
    %53 = vector.broadcast %52 : vector<1x256xf32> to vector<14x256xf32>
    %54 = arith.addf %47, %53 : vector<14x256xf32>
    %cst_50 = arith.constant 0.000000e+00 : f32
    %55 = vector.broadcast %cst_50 : f32 to vector<14x256xf32>
    %56 = arith.maximumf %54, %55 : vector<14x256xf32>
    %57 = vector.broadcast %52 : vector<1x256xf32> to vector<14x256xf32>
    %58 = arith.addf %51, %57 : vector<14x256xf32>
    %cst_51 = arith.constant 0.000000e+00 : f32
    %59 = vector.broadcast %cst_51 : f32 to vector<14x256xf32>
    %60 = arith.maximumf %58, %59 : vector<14x256xf32>
    %61 = arith.maximumf %56, %60 : vector<14x256xf32>
    %62 = vector.extract_strided_slice %61 {offsets = [0, 0], sizes = [14, 128], strides = [1, 1]} : vector<14x256xf32> to vector<14x128xf32>
    %63 = vector.extract_strided_slice %61 {offsets = [0, 128], sizes = [14, 128], strides = [1, 1]} : vector<14x256xf32> to vector<14x128xf32>
    %64 = arith.maximumf %62, %63 : vector<14x128xf32>
    %c0_52 = arith.constant 0 : index
    %c0_53 = arith.constant 0 : index
    %65 = vector.load %arg4[%c0_52, %c0_53] : memref<14x14xf32, #tpu.memory_space<vmem>>, vector<14x14xf32>
    %cst_54 = arith.constant dense<0.000000e+00> : vector<14x128xf32>
    %66 = tpu.matmul %65, %64, %cst_54 {dimension_numbers = #tpu.dot_dimension_numbers<[1], [0], [0], [1], [0, 0, 1, 1], [], []>} : vector<14x14xf32>, vector<14x128xf32>, vector<14x128xf32> -> vector<14x128xf32>
    %c0_55 = arith.constant 0 : index
    %c0_56 = arith.constant 0 : index
    %67 = vector.load %arg14[%c0_55, %c0_56] : memref<14x128xf32, #tpu.memory_space<vmem>>, vector<14x128xf32>
    tpu.vector_store %arg14[%c0_55, %c0_56], %66 {strides = array<i32>} : memref<14x128xf32, #tpu.memory_space<vmem>>, vector<14x128xf32>,
    %cst_57 = arith.constant 0.000000e+00 : f32
    %68 = vector.broadcast %cst_57 : f32 to vector<5x256xf32>
    %cst_58 = arith.constant 0.000000e+00 : f32
    %69 = vector.broadcast %cst_58 : f32 to vector<5x256xf32>
    %c0_59 = arith.constant 0 : index
    %c0_60 = arith.constant 0 : index
    %c0_61 = arith.constant 0 : index
    %70 = vector.load %arg5[%c0_59, %c0_60, %c0_61] : memref<5x128x256xf32, #tpu.memory_space<vmem>>, vector<1x128x256xf32>
    %71 = vector.shape_cast %70 : vector<1x128x256xf32> to vector<128x256xf32>
    %c0_62 = arith.constant 0 : index
    %c0_63 = arith.constant 0 : index
    %72 = vector.load %arg14[%c0_62, %c0_63] : memref<14x128xf32, #tpu.memory_space<vmem>>, vector<5x128xf32>
    %cst_64 = arith.constant dense<0.000000e+00> : vector<5x256xf32>
    %73 = tpu.matmul %72, %71, %cst_64 {dimension_numbers = #tpu.dot_dimension_numbers<[1], [0], [0], [1], [0, 0, 1, 1], [], []>} : vector<5x128xf32>, vector<128x256xf32>, vector<5x256xf32> -> vector<5x256xf32>
    %74 = arith.addf %68, %73 : vector<5x256xf32>
    %c7 = arith.constant 7 : index
    %c0_65 = arith.constant 0 : index
    %75 = vector.load %arg14[%c7, %c0_65] : memref<14x128xf32, #tpu.memory_space<vmem>>, vector<5x128xf32>
    %cst_66 = arith.constant dense<0.000000e+00> : vector<5x256xf32>
    %76 = tpu.matmul %75, %71, %cst_66 {dimension_numbers = #tpu.dot_dimension_numbers<[1], [0], [0], [1], [0, 0, 1, 1], [], []>} : vector<5x128xf32>, vector<128x256xf32>, vector<5x256xf32> -> vector<5x256xf32>
    %77 = arith.addf %69, %76 : vector<5x256xf32>
    %c1_67 = arith.constant 1 : index
    %c0_68 = arith.constant 0 : index
    %c0_69 = arith.constant 0 : index
    %78 = vector.load %arg5[%c1_67, %c0_68, %c0_69] : memref<5x128x256xf32, #tpu.memory_space<vmem>>, vector<1x128x256xf32>
    %79 = vector.shape_cast %78 : vector<1x128x256xf32> to vector<128x256xf32>
    %c7_70 = arith.constant 7 : index
    %c0_71 = arith.constant 0 : index
    %80 = vector.load %arg14[%c7_70, %c0_71] : memref<14x128xf32, #tpu.memory_space<vmem>>, vector<5x128xf32>
    %cst_72 = arith.constant dense<0.000000e+00> : vector<5x256xf32>
    %81 = tpu.matmul %80, %79, %cst_72 {dimension_numbers = #tpu.dot_dimension_numbers<[1], [0], [0], [1], [0, 0, 1, 1], [], []>} : vector<5x128xf32>, vector<128x256xf32>, vector<5x256xf32> -> vector<5x256xf32>
    %82 = arith.addf %74, %81 : vector<5x256xf32>
    %c1_73 = arith.constant 1 : index
    %c0_74 = arith.constant 0 : index
    %83 = vector.load %arg14[%c1_73, %c0_74] : memref<14x128xf32, #tpu.memory_space<vmem>>, vector<5x128xf32>
    %cst_75 = arith.constant dense<0.000000e+00> : vector<5x256xf32>
    %84 = tpu.matmul %83, %79, %cst_75 {dimension_numbers = #tpu.dot_dimension_numbers<[1], [0], [0], [1], [0, 0, 1, 1], [], []>} : vector<5x128xf32>, vector<128x256xf32>, vector<5x256xf32> -> vector<5x256xf32>
    %85 = arith.addf %77, %84 : vector<5x256xf32>
    %c2_76 = arith.constant 2 : index
    %c0_77 = arith.constant 0 : index
    %c0_78 = arith.constant 0 : index
    %86 = vector.load %arg5[%c2_76, %c0_77, %c0_78] : memref<5x128x256xf32, #tpu.memory_space<vmem>>, vector<1x128x256xf32>
    %87 = vector.shape_cast %86 : vector<1x128x256xf32> to vector<128x256xf32>
    %c1_79 = arith.constant 1 : index
    %c0_80 = arith.constant 0 : index
    %88 = vector.load %arg14[%c1_79, %c0_80] : memref<14x128xf32, #tpu.memory_space<vmem>>, vector<5x128xf32>
    %cst_81 = arith.constant dense<0.000000e+00> : vector<5x256xf32>
    %89 = tpu.matmul %88, %87, %cst_81 {dimension_numbers = #tpu.dot_dimension_numbers<[1], [0], [0], [1], [0, 0, 1, 1], [], []>} : vector<5x128xf32>, vector<128x256xf32>, vector<5x256xf32> -> vector<5x256xf32>
    %90 = arith.addf %82, %89 : vector<5x256xf32>
    %c8 = arith.constant 8 : index
    %c0_82 = arith.constant 0 : index
    %91 = vector.load %arg14[%c8, %c0_82] : memref<14x128xf32, #tpu.memory_space<vmem>>, vector<5x128xf32>
    %cst_83 = arith.constant dense<0.000000e+00> : vector<5x256xf32>
    %92 = tpu.matmul %91, %87, %cst_83 {dimension_numbers = #tpu.dot_dimension_numbers<[1], [0], [0], [1], [0, 0, 1, 1], [], []>} : vector<5x128xf32>, vector<128x256xf32>, vector<5x256xf32> -> vector<5x256xf32>
    %93 = arith.addf %85, %92 : vector<5x256xf32>
    %c3_84 = arith.constant 3 : index
    %c0_85 = arith.constant 0 : index
    %c0_86 = arith.constant 0 : index
    %94 = vector.load %arg5[%c3_84, %c0_85, %c0_86] : memref<5x128x256xf32, #tpu.memory_space<vmem>>, vector<1x128x256xf32>
    %95 = vector.shape_cast %94 : vector<1x128x256xf32> to vector<128x256xf32>
    %c8_87 = arith.constant 8 : index
    %c0_88 = arith.constant 0 : index
    %96 = vector.load %arg14[%c8_87, %c0_88] : memref<14x128xf32, #tpu.memory_space<vmem>>, vector<5x128xf32>
    %cst_89 = arith.constant dense<0.000000e+00> : vector<5x256xf32>
    %97 = tpu.matmul %96, %95, %cst_89 {dimension_numbers = #tpu.dot_dimension_numbers<[1], [0], [0], [1], [0, 0, 1, 1], [], []>} : vector<5x128xf32>, vector<128x256xf32>, vector<5x256xf32> -> vector<5x256xf32>
    %98 = arith.addf %90, %97 : vector<5x256xf32>
    %c2_90 = arith.constant 2 : index
    %c0_91 = arith.constant 0 : index
    %99 = vector.load %arg14[%c2_90, %c0_91] : memref<14x128xf32, #tpu.memory_space<vmem>>, vector<5x128xf32>
    %cst_92 = arith.constant dense<0.000000e+00> : vector<5x256xf32>
    %100 = tpu.matmul %99, %95, %cst_92 {dimension_numbers = #tpu.dot_dimension_numbers<[1], [0], [0], [1], [0, 0, 1, 1], [], []>} : vector<5x128xf32>, vector<128x256xf32>, vector<5x256xf32> -> vector<5x256xf32>
    %101 = arith.addf %93, %100 : vector<5x256xf32>
    %c4_93 = arith.constant 4 : index
    %c0_94 = arith.constant 0 : index
    %c0_95 = arith.constant 0 : index
    %102 = vector.load %arg5[%c4_93, %c0_94, %c0_95] : memref<5x128x256xf32, #tpu.memory_space<vmem>>, vector<1x128x256xf32>
    %103 = vector.shape_cast %102 : vector<1x128x256xf32> to vector<128x256xf32>
    %c2_96 = arith.constant 2 : index
    %c0_97 = arith.constant 0 : index
    %104 = vector.load %arg14[%c2_96, %c0_97] : memref<14x128xf32, #tpu.memory_space<vmem>>, vector<5x128xf32>
    %cst_98 = arith.constant dense<0.000000e+00> : vector<5x256xf32>
    %105 = tpu.matmul %104, %103, %cst_98 {dimension_numbers = #tpu.dot_dimension_numbers<[1], [0], [0], [1], [0, 0, 1, 1], [], []>} : vector<5x128xf32>, vector<128x256xf32>, vector<5x256xf32> -> vector<5x256xf32>
    %106 = arith.addf %98, %105 : vector<5x256xf32>
    %c9 = arith.constant 9 : index
    %c0_99 = arith.constant 0 : index
    %107 = vector.load %arg14[%c9, %c0_99] : memref<14x128xf32, #tpu.memory_space<vmem>>, vector<5x128xf32>
    %cst_100 = arith.constant dense<0.000000e+00> : vector<5x256xf32>
    %108 = tpu.matmul %107, %103, %cst_100 {dimension_numbers = #tpu.dot_dimension_numbers<[1], [0], [0], [1], [0, 0, 1, 1], [], []>} : vector<5x128xf32>, vector<128x256xf32>, vector<5x256xf32> -> vector<5x256xf32>
    %109 = arith.addf %101, %108 : vector<5x256xf32>
    %c0_101 = arith.constant 0 : index
    %c0_102 = arith.constant 0 : index
    %110 = vector.load %arg6[%c0_101, %c0_102] : memref<1x256xf32, #tpu.memory_space<vmem>>, vector<1x256xf32>
    %111 = vector.broadcast %110 : vector<1x256xf32> to vector<5x256xf32>
    %112 = arith.addf %106, %111 : vector<5x256xf32>
    %cst_103 = arith.constant 0.000000e+00 : f32
    %113 = vector.broadcast %cst_103 : f32 to vector<5x256xf32>
    %114 = arith.maximumf %112, %113 : vector<5x256xf32>
    %115 = vector.broadcast %110 : vector<1x256xf32> to vector<5x256xf32>
    %116 = arith.addf %109, %115 : vector<5x256xf32>
    %cst_104 = arith.constant 0.000000e+00 : f32
    %117 = vector.broadcast %cst_104 : f32 to vector<5x256xf32>
    %118 = arith.maximumf %116, %117 : vector<5x256xf32>
    %119 = arith.maximumf %114, %118 : vector<5x256xf32>
    %120 = vector.extract_strided_slice %119 {offsets = [0, 0], sizes = [5, 128], strides = [1, 1]} : vector<5x256xf32> to vector<5x128xf32>
    %121 = vector.extract_strided_slice %119 {offsets = [0, 128], sizes = [5, 128], strides = [1, 1]} : vector<5x256xf32> to vector<5x128xf32>
    %122 = arith.maximumf %120, %121 : vector<5x128xf32>
    %c0_105 = arith.constant 0 : index
    %c0_106 = arith.constant 0 : index
    %123 = vector.load %arg15[%c0_105, %c0_106] : memref<5x128xf32, #tpu.memory_space<vmem>>, vector<5x128xf32>
    tpu.vector_store %arg15[%c0_105, %c0_106], %122 {strides = array<i32>} : memref<5x128xf32, #tpu.memory_space<vmem>>, vector<5x128xf32>,
    %c0_107 = arith.constant 0 : index
    %c0_108 = arith.constant 0 : index
    %124 = vector.load %arg8[%c0_107, %c0_108] : memref<1x120xf32, #tpu.memory_space<vmem>>, vector<1x120xf32>
    %c0_109 = arith.constant 0 : index
    %c0_110 = arith.constant 0 : index
    %125 = vector.load %arg15[%c0_109, %c0_110] : memref<5x128xf32, #tpu.memory_space<vmem>>, vector<1x128xf32>
    %c0_111 = arith.constant 0 : index
    %c0_112 = arith.constant 0 : index
    %c0_113 = arith.constant 0 : index
    %126 = vector.load %arg7[%c0_111, %c0_112, %c0_113] : memref<5x128x120xf32, #tpu.memory_space<vmem>>, vector<1x128x120xf32>
    %127 = vector.shape_cast %126 : vector<1x128x120xf32> to vector<128x120xf32>
    %cst_114 = arith.constant dense<0.000000e+00> : vector<1x120xf32>
    %128 = tpu.matmul %125, %127, %cst_114 {dimension_numbers = #tpu.dot_dimension_numbers<[1], [0], [0], [1], [0, 0, 1, 1], [], []>} : vector<1x128xf32>, vector<128x120xf32>, vector<1x120xf32> -> vector<1x120xf32>
    %129 = arith.addf %124, %128 : vector<1x120xf32>
    %c1_115 = arith.constant 1 : index
    %c0_116 = arith.constant 0 : index
    %130 = vector.load %arg15[%c1_115, %c0_116] : memref<5x128xf32, #tpu.memory_space<vmem>>, vector<1x128xf32>
    %c1_117 = arith.constant 1 : index
    %c0_118 = arith.constant 0 : index
    %c0_119 = arith.constant 0 : index
    %131 = vector.load %arg7[%c1_117, %c0_118, %c0_119] : memref<5x128x120xf32, #tpu.memory_space<vmem>>, vector<1x128x120xf32>
    %132 = vector.shape_cast %131 : vector<1x128x120xf32> to vector<128x120xf32>
    %cst_120 = arith.constant dense<0.000000e+00> : vector<1x120xf32>
    %133 = tpu.matmul %130, %132, %cst_120 {dimension_numbers = #tpu.dot_dimension_numbers<[1], [0], [0], [1], [0, 0, 1, 1], [], []>} : vector<1x128xf32>, vector<128x120xf32>, vector<1x120xf32> -> vector<1x120xf32>
    %134 = arith.addf %129, %133 : vector<1x120xf32>
    %c2_121 = arith.constant 2 : index
    %c0_122 = arith.constant 0 : index
    %135 = vector.load %arg15[%c2_121, %c0_122] : memref<5x128xf32, #tpu.memory_space<vmem>>, vector<1x128xf32>
    %c2_123 = arith.constant 2 : index
    %c0_124 = arith.constant 0 : index
    %c0_125 = arith.constant 0 : index
    %136 = vector.load %arg7[%c2_123, %c0_124, %c0_125] : memref<5x128x120xf32, #tpu.memory_space<vmem>>, vector<1x128x120xf32>
    %137 = vector.shape_cast %136 : vector<1x128x120xf32> to vector<128x120xf32>
    %cst_126 = arith.constant dense<0.000000e+00> : vector<1x120xf32>
    %138 = tpu.matmul %135, %137, %cst_126 {dimension_numbers = #tpu.dot_dimension_numbers<[1], [0], [0], [1], [0, 0, 1, 1], [], []>} : vector<1x128xf32>, vector<128x120xf32>, vector<1x120xf32> -> vector<1x120xf32>
    %139 = arith.addf %134, %138 : vector<1x120xf32>
    %c3_127 = arith.constant 3 : index
    %c0_128 = arith.constant 0 : index
    %140 = vector.load %arg15[%c3_127, %c0_128] : memref<5x128xf32, #tpu.memory_space<vmem>>, vector<1x128xf32>
    %c3_129 = arith.constant 3 : index
    %c0_130 = arith.constant 0 : index
    %c0_131 = arith.constant 0 : index
    %141 = vector.load %arg7[%c3_129, %c0_130, %c0_131] : memref<5x128x120xf32, #tpu.memory_space<vmem>>, vector<1x128x120xf32>
    %142 = vector.shape_cast %141 : vector<1x128x120xf32> to vector<128x120xf32>
    %cst_132 = arith.constant dense<0.000000e+00> : vector<1x120xf32>
    %143 = tpu.matmul %140, %142, %cst_132 {dimension_numbers = #tpu.dot_dimension_numbers<[1], [0], [0], [1], [0, 0, 1, 1], [], []>} : vector<1x128xf32>, vector<128x120xf32>, vector<1x120xf32> -> vector<1x120xf32>
    %144 = arith.addf %139, %143 : vector<1x120xf32>
    %c4_133 = arith.constant 4 : index
    %c0_134 = arith.constant 0 : index
    %145 = vector.load %arg15[%c4_133, %c0_134] : memref<5x128xf32, #tpu.memory_space<vmem>>, vector<1x128xf32>
    %c4_135 = arith.constant 4 : index
    %c0_136 = arith.constant 0 : index
    %c0_137 = arith.constant 0 : index
    %146 = vector.load %arg7[%c4_135, %c0_136, %c0_137] : memref<5x128x120xf32, #tpu.memory_space<vmem>>, vector<1x128x120xf32>
    %147 = vector.shape_cast %146 : vector<1x128x120xf32> to vector<128x120xf32>
    %cst_138 = arith.constant dense<0.000000e+00> : vector<1x120xf32>
    %148 = tpu.matmul %145, %147, %cst_138 {dimension_numbers = #tpu.dot_dimension_numbers<[1], [0], [0], [1], [0, 0, 1, 1], [], []>} : vector<1x128xf32>, vector<128x120xf32>, vector<1x120xf32> -> vector<1x120xf32>
    %149 = arith.addf %144, %148 : vector<1x120xf32>
    %cst_139 = arith.constant 0.000000e+00 : f32
    %150 = vector.broadcast %cst_139 : f32 to vector<1x120xf32>
    %151 = arith.maximumf %149, %150 : vector<1x120xf32>
    %c0_140 = arith.constant 0 : index
    %c0_141 = arith.constant 0 : index
    %152 = vector.load %arg9[%c0_140, %c0_141] : memref<120x84xf32, #tpu.memory_space<vmem>>, vector<120x84xf32>
    %cst_142 = arith.constant dense<0.000000e+00> : vector<1x84xf32>
    %153 = tpu.matmul %151, %152, %cst_142 {dimension_numbers = #tpu.dot_dimension_numbers<[1], [0], [0], [1], [0, 0, 1, 1], [], []>} : vector<1x120xf32>, vector<120x84xf32>, vector<1x84xf32> -> vector<1x84xf32>
    %c0_143 = arith.constant 0 : index
    %c0_144 = arith.constant 0 : index
    %154 = vector.load %arg10[%c0_143, %c0_144] : memref<1x84xf32, #tpu.memory_space<vmem>>, vector<1x84xf32>
    %155 = arith.addf %153, %154 : vector<1x84xf32>
    %cst_145 = arith.constant 0.000000e+00 : f32
    %156 = vector.broadcast %cst_145 : f32 to vector<1x84xf32>
    %157 = arith.maximumf %155, %156 : vector<1x84xf32>
    %c0_146 = arith.constant 0 : index
    %c0_147 = arith.constant 0 : index
    %158 = vector.load %arg11[%c0_146, %c0_147] : memref<84x10xf32, #tpu.memory_space<vmem>>, vector<84x10xf32>
    %cst_148 = arith.constant dense<0.000000e+00> : vector<1x10xf32>
    %159 = tpu.matmul %157, %158, %cst_148 {dimension_numbers = #tpu.dot_dimension_numbers<[1], [0], [0], [1], [0, 0, 1, 1], [], []>} : vector<1x84xf32>, vector<84x10xf32>, vector<1x10xf32> -> vector<1x10xf32>
    %c0_149 = arith.constant 0 : index
    %c0_150 = arith.constant 0 : index
    %160 = vector.load %arg12[%c0_149, %c0_150] : memref<1x10xf32, #tpu.memory_space<vmem>>, vector<1x10xf32>
    %161 = arith.addf %159, %160 : vector<1x10xf32>
    %c0_151 = arith.constant 0 : index
    %c0_152 = arith.constant 0 : index
    %c0_153 = arith.constant 0 : index
    %162 = vector.load %arg13[%c0_151, %c0_152, %c0_153] : memref<1x1x10xf32, #tpu.memory_space<vmem>>, vector<1x1x10xf32>
    %163 = vector.shape_cast %162 : vector<1x1x10xf32> to vector<1x10xf32>
    %164 = vector.shape_cast %161 : vector<1x10xf32> to vector<1x1x10xf32>
    tpu.vector_store %arg13[%c0_151, %c0_152, %c0_153], %164 {strides = array<i32>} : memref<1x1x10xf32, #tpu.memory_space<vmem>>, vector<1x1x10xf32>,
    return
  }
  func.func @transform_0(%arg0: i32) -> (i32, i32, i32) {
    %c0_i32 = arith.constant 0 : i32
    %c0_i32_0 = arith.constant 0 : i32
    %c0_i32_1 = arith.constant 0 : i32
    return %arg0, %c0_i32, %c0_i32_0 : i32, i32, i32
  }
  func.func @transform_1(%arg0: i32) -> (i32, i32, i32) {
    %c0_i32 = arith.constant 0 : i32
    %c0_i32_0 = arith.constant 0 : i32
    %c0_i32_1 = arith.constant 0 : i32
    %c0_i32_2 = arith.constant 0 : i32
    return %c0_i32, %c0_i32_0, %c0_i32_1 : i32, i32, i32
  }
  func.func @transform_2(%arg0: i32) -> (i32, i32) {
    %c0_i32 = arith.constant 0 : i32
    %c0_i32_0 = arith.constant 0 : i32
    %c0_i32_1 = arith.constant 0 : i32
    return %c0_i32, %c0_i32_0 : i32, i32
  }
  func.func @transform_3(%arg0: i32) -> (i32, i32) {
    %c0_i32 = arith.constant 0 : i32
    %c0_i32_0 = arith.constant 0 : i32
    %c0_i32_1 = arith.constant 0 : i32
    return %c0_i32, %c0_i32_0 : i32, i32
  }
  func.func @transform_4(%arg0: i32) -> (i32, i32, i32) {
    %c0_i32 = arith.constant 0 : i32
    %c0_i32_0 = arith.constant 0 : i32
    %c0_i32_1 = arith.constant 0 : i32
    %c0_i32_2 = arith.constant 0 : i32
    return %c0_i32, %c0_i32_0, %c0_i32_1 : i32, i32, i32
  }
  func.func @transform_5(%arg0: i32) -> (i32, i32) {
    %c0_i32 = arith.constant 0 : i32
    %c0_i32_0 = arith.constant 0 : i32
    %c0_i32_1 = arith.constant 0 : i32
    return %c0_i32, %c0_i32_0 : i32, i32
  }
  func.func @transform_6(%arg0: i32) -> (i32, i32, i32) {
    %c0_i32 = arith.constant 0 : i32
    %c0_i32_0 = arith.constant 0 : i32
    %c0_i32_1 = arith.constant 0 : i32
    %c0_i32_2 = arith.constant 0 : i32
    return %c0_i32, %c0_i32_0, %c0_i32_1 : i32, i32, i32
  }
  func.func @transform_7(%arg0: i32) -> (i32, i32) {
    %c0_i32 = arith.constant 0 : i32
    %c0_i32_0 = arith.constant 0 : i32
    %c0_i32_1 = arith.constant 0 : i32
    return %c0_i32, %c0_i32_0 : i32, i32
  }
  func.func @transform_8(%arg0: i32) -> (i32, i32) {
    %c0_i32 = arith.constant 0 : i32
    %c0_i32_0 = arith.constant 0 : i32
    %c0_i32_1 = arith.constant 0 : i32
    return %c0_i32, %c0_i32_0 : i32, i32
  }
  func.func @transform_9(%arg0: i32) -> (i32, i32) {
    %c0_i32 = arith.constant 0 : i32
    %c0_i32_0 = arith.constant 0 : i32
    %c0_i32_1 = arith.constant 0 : i32
    return %c0_i32, %c0_i32_0 : i32, i32
  }
  func.func @transform_10(%arg0: i32) -> (i32, i32) {
    %c0_i32 = arith.constant 0 : i32
    %c0_i32_0 = arith.constant 0 : i32
    %c0_i32_1 = arith.constant 0 : i32
    return %c0_i32, %c0_i32_0 : i32, i32
  }
  func.func @transform_11(%arg0: i32) -> (i32, i32) {
    %c0_i32 = arith.constant 0 : i32
    %c0_i32_0 = arith.constant 0 : i32
    %c0_i32_1 = arith.constant 0 : i32
    return %c0_i32, %c0_i32_0 : i32, i32
  }
  func.func @transform_12(%arg0: i32) -> (i32, i32, i32) {
    %c0_i32 = arith.constant 0 : i32
    %c0_i32_0 = arith.constant 0 : i32
    %c0_i32_1 = arith.constant 0 : i32
    return %arg0, %c0_i32, %c0_i32_0 : i32, i32, i32
  }
}

</mosaic_0001>

<llo_original>
// kernel: net_forward.1
$region0: #{net_forward.1}
  #allocation0 [shape = 'u32[]', space=smem, size = 0x4, offset = 0x4, fixed_abs, tag = 'smem constant byte address 0x4 - core index']
  #allocation1 [shape = 'u32[144,128]{1,0:T(1,128)}', space=vmem, size = 0x12000, scoped, tag = 'internal scratch']
  #allocation2 [shape = 'f32[14,128]{1,0:T(8,128)}', space=vmem, size = 0x2000, scoped, tag = 'scratch operand']
  #allocation3 [shape = 'f32[5,128]{1,0:T(8,128)}', space=vmem, size = 0x1000, scoped, tag = 'scratch operand']
  %s0 = inlined_call_operand.vmem [shape: f32[2,32,96], index: 0, kind: input, shape index: {}]
  %s1 = inlined_call_operand.vmem [shape: f32[5,96,256], index: 1, kind: input, shape index: {}]
  %s2 = inlined_call_operand.vmem [shape: f32[1,256], index: 2, kind: input, shape index: {}]
  %s3 = inlined_call_operand.vmem [shape: f32[14,14], index: 3, kind: input, shape index: {}]
  %s4 = inlined_call_operand.vmem [shape: f32[5,128,256], index: 4, kind: input, shape index: {}]
  %s5 = inlined_call_operand.vmem [shape: f32[1,256], index: 5, kind: input, shape index: {}]
  %s6 = inlined_call_operand.vmem [shape: f32[5,128,120], index: 6, kind: input, shape index: {}]
  %s7 = inlined_call_operand.vmem [shape: f32[1,120], index: 7, kind: input, shape index: {}]
  %s8 = inlined_call_operand.vmem [shape: f32[120,84], index: 8, kind: input, shape index: {}]
  %s9 = inlined_call_operand.vmem [shape: f32[1,84], index: 9, kind: input, shape index: {}]
  %s10 = inlined_call_operand.vmem [shape: f32[84,10], index: 10, kind: input, shape index: {}]
  %s11 = inlined_call_operand.vmem [shape: f32[1,10], index: 11, kind: input, shape index: {}]
  %s12 = inlined_call_operand.hbm [shape: f32[2,1,10], index: 12, kind: output, shape index: {}]
  %s13 = sld [smem:[#allocation0]]
  $region81: #{net_forward.1} parent=0
    _
  %s15 = ssub.s32 1, %s13
  %s16 = scalar_select 0, %s15, %s13
  $region1: #{net_forward.1} parent=0
    #allocation4 [shape = 'u8[1024]{0}', space=vmem, size = 0x400, scoped, tag = 'output window, operand 0']
    #allocation5 [shape = 's32[2]{0}', space=sflag, size = 0x8, scoped, tag = 'scoped memory for net_forward.1']
    %17 = vsyncpa [#allocation5], 0
    %s18 = scalar_lea.sflag [#allocation5], 1
    %19 = vsyncpa %s18, 0
    loop: start=0, step=1, limit=4
    $region2: #{net_forward.1} parent=1 // loop_pre_header
      _
    $region3: #{net_forward.1} parent=1 // loop_header
      %s21 = sphi 0, %s25
      %p22 = scmp.ge.s32.totalorder %s21, 4
      %s31 = sphi 0, %s33
      %s34 = sphi 0, %s31
      %s35 = sphi 0, %s34
      %s51 = sphi 0, %s35
      %s55 = sphi 0, %s55
      %s57 = sphi 0, %s55
      %s58 = sphi 0, %s57
      %s72 = sphi 0, %s58
      %s76 = sphi 0, %s76
      %s78 = sphi 0, %s76
      %s79 = sphi 0, %s78
      %s93 = sphi 0, %s79
      %s97 = sphi 0, %s97
      %s99 = sphi 0, %s97
      %s100 = sphi 0, %s99
      %s114 = sphi 0, %s100
      %s118 = sphi 0, %s118
      %s120 = sphi 0, %s118
      %s121 = sphi 0, %s120
      %s135 = sphi 0, %s121
      %s139 = sphi 0, %s139
      %s141 = sphi 0, %s139
      %s142 = sphi 0, %s141
      %s156 = sphi 0, %s142
      %s160 = sphi 0, %s160
      %s162 = sphi 0, %s160
      %s163 = sphi 0, %s162
      %s177 = sphi 0, %s163
      %s181 = sphi 0, %s181
      %s183 = sphi 0, %s181
      %s184 = sphi 0, %s183
      %s198 = sphi 0, %s184
      %s202 = sphi 0, %s202
      %s204 = sphi 0, %s202
      %s205 = sphi 0, %s204
      %s219 = sphi 0, %s205
      %s223 = sphi 0, %s223
      %s225 = sphi 0, %s223
      %s226 = sphi 0, %s225
      %s240 = sphi 0, %s226
      %s244 = sphi 0, %s244
      %s246 = sphi 0, %s244
      %s247 = sphi 0, %s246
      %s261 = sphi 0, %s247
      %s265 = sphi 0, %s265
      %s267 = sphi 0, %s265
      %s268 = sphi 0, %s267
      %s282 = sphi 0, %s268
      %s288 = sphi 0, %s290
      %s291 = sphi 0, %s288
      %s292 = sphi 0, %s291
      %s308 = sphi 0, %s292
    $region4: #{net_forward.1} parent=1 // loop_header_branch
      %24 = sbr.rel (%p22) target = $region8
    $region5: #{net_forward.1} parent=1 // loop_body
      %s26 = ssub.s32 %s21, 1
      %s27 = ssub.s32 %s21, 2
      %s28 = sadd.s32 %s21, 1
      %s29 = ssub.s32 %s21, %s28
      %p30 = scmp.eq.s32.totalorder %s29, 0
      %s32 = sadd.s32 %s31, 1
      %s33 = scalar_select %p30, %s31, %s32
      %p36 = pneg %p30
      %p37 = scmp.eq.s32.totalorder %s21, 1
      %p38 = por %p36, %p37
      %p39 = scmp.ne.s32.totalorder %s31, %s34
      %p40 = scmp.eq.s32.totalorder %s21, 0
      %p41 = por %p39, %p40
      %p42 = scmp.ne.s32.totalorder %s31, %s34
      %p43 = scmp.eq.s32.totalorder %s26, 1
      %p44 = por %p42, %p43
      %p45 = scmp.ne.s32.totalorder %s34, %s35
      %p46 = scmp.eq.s32.totalorder %s26, 0
      %p47 = por %p45, %p46
      %p48 = scmp.ne.s32.totalorder %s34, %s35
      %p49 = scmp.eq.s32.totalorder %s27, 1
      %p50 = por %p48, %p49
      %p52 = scmp.ne.s32.totalorder %s35, %s51
      %p53 = scmp.eq.s32.totalorder %s27, 0
      %p54 = por %p52, %p53
      %s56 = sadd.s32 %s55, 1
      %p59 = scmp.eq.s32.totalorder %s21, 1
      %p60 = scmp.ne.s32.totalorder %s55, %s57
      %p61 = scmp.eq.s32.totalorder %s21, 0
      %p62 = por %p60, %p61
      %p63 = scmp.ne.s32.totalorder %s55, %s57
      %p64 = scmp.eq.s32.totalorder %s26, 1
      %p65 = por %p63, %p64
      %p66 = scmp.ne.s32.totalorder %s57, %s58
      %p67 = scmp.eq.s32.totalorder %s26, 0
      %p68 = por %p66, %p67
      %p69 = scmp.ne.s32.totalorder %s57, %s58
      %p70 = scmp.eq.s32.totalorder %s27, 1
      %p71 = por %p69, %p70
      %p73 = scmp.ne.s32.totalorder %s58, %s72
      %p74 = scmp.eq.s32.totalorder %s27, 0
      %p75 = por %p73, %p74
      %s77 = sadd.s32 %s76, 1
      %p80 = scmp.eq.s32.totalorder %s21, 1
      %p81 = scmp.ne.s32.totalorder %s76, %s78
      %p82 = scmp.eq.s32.totalorder %s21, 0
      %p83 = por %p81, %p82
      %p84 = scmp.ne.s32.totalorder %s76, %s78
      %p85 = scmp.eq.s32.totalorder %s26, 1
      %p86 = por %p84, %p85
      %p87 = scmp.ne.s32.totalorder %s78, %s79
      %p88 = scmp.eq.s32.totalorder %s26, 0
      %p89 = por %p87, %p88
      %p90 = scmp.ne.s32.totalorder %s78, %s79
      %p91 = scmp.eq.s32.totalorder %s27, 1
      %p92 = por %p90, %p91
      %p94 = scmp.ne.s32.totalorder %s79, %s93
      %p95 = scmp.eq.s32.totalorder %s27, 0
      %p96 = por %p94, %p95
      %s98 = sadd.s32 %s97, 1
      %p101 = scmp.eq.s32.totalorder %s21, 1
      %p102 = scmp.ne.s32.totalorder %s97, %s99
      %p103 = scmp.eq.s32.totalorder %s21, 0
      %p104 = por %p102, %p103
      %p105 = scmp.ne.s32.totalorder %s97, %s99
      %p106 = scmp.eq.s32.totalorder %s26, 1
      %p107 = por %p105, %p106
      %p108 = scmp.ne.s32.totalorder %s99, %s100
      %p109 = scmp.eq.s32.totalorder %s26, 0
      %p110 = por %p108, %p109
      %p111 = scmp.ne.s32.totalorder %s99, %s100
      %p112 = scmp.eq.s32.totalorder %s27, 1
      %p113 = por %p111, %p112
      %p115 = scmp.ne.s32.totalorder %s100, %s114
      %p116 = scmp.eq.s32.totalorder %s27, 0
      %p117 = por %p115, %p116
      %s119 = sadd.s32 %s118, 1
      %p122 = scmp.eq.s32.totalorder %s21, 1
      %p123 = scmp.ne.s32.totalorder %s118, %s120
      %p124 = scmp.eq.s32.totalorder %s21, 0
      %p125 = por %p123, %p124
      %p126 = scmp.ne.s32.totalorder %s118, %s120
      %p127 = scmp.eq.s32.totalorder %s26, 1
      %p128 = por %p126, %p127
      %p129 = scmp.ne.s32.totalorder %s120, %s121
      %p130 = scmp.eq.s32.totalorder %s26, 0
      %p131 = por %p129, %p130
      %p132 = scmp.ne.s32.totalorder %s120, %s121
      %p133 = scmp.eq.s32.totalorder %s27, 1
      %p134 = por %p132, %p133
      %p136 = scmp.ne.s32.totalorder %s121, %s135
      %p137 = scmp.eq.s32.totalorder %s27, 0
      %p138 = por %p136, %p137
      %s140 = sadd.s32 %s139, 1
      %p143 = scmp.eq.s32.totalorder %s21, 1
      %p144 = scmp.ne.s32.totalorder %s139, %s141
      %p145 = scmp.eq.s32.totalorder %s21, 0
      %p146 = por %p144, %p145
      %p147 = scmp.ne.s32.totalorder %s139, %s141
      %p148 = scmp.eq.s32.totalorder %s26, 1
      %p149 = por %p147, %p148
      %p150 = scmp.ne.s32.totalorder %s141, %s142
      %p151 = scmp.eq.s32.totalorder %s26, 0
      %p152 = por %p150, %p151
      %p153 = scmp.ne.s32.totalorder %s141, %s142
      %p154 = scmp.eq.s32.totalorder %s27, 1
      %p155 = por %p153, %p154
      %p157 = scmp.ne.s32.totalorder %s142, %s156
      %p158 = scmp.eq.s32.totalorder %s27, 0
      %p159 = por %p157, %p158
      %s161 = sadd.s32 %s160, 1
      %p164 = scmp.eq.s32.totalorder %s21, 1
      %p165 = scmp.ne.s32.totalorder %s160, %s162
      %p166 = scmp.eq.s32.totalorder %s21, 0
      %p167 = por %p165, %p166
      %p168 = scmp.ne.s32.totalorder %s160, %s162
      %p169 = scmp.eq.s32.totalorder %s26, 1
      %p170 = por %p168, %p169
      %p171 = scmp.ne.s32.totalorder %s162, %s163
      %p172 = scmp.eq.s32.totalorder %s26, 0
      %p173 = por %p171, %p172
      %p174 = scmp.ne.s32.totalorder %s162, %s163
      %p175 = scmp.eq.s32.totalorder %s27, 1
      %p176 = por %p174, %p175
      %p178 = scmp.ne.s32.totalorder %s163, %s177
      %p179 = scmp.eq.s32.totalorder %s27, 0
      %p180 = por %p178, %p179
      %s182 = sadd.s32 %s181, 1
      %p185 = scmp.eq.s32.totalorder %s21, 1
      %p186 = scmp.ne.s32.totalorder %s181, %s183
      %p187 = scmp.eq.s32.totalorder %s21, 0
      %p188 = por %p186, %p187
      %p189 = scmp.ne.s32.totalorder %s181, %s183
      %p190 = scmp.eq.s32.totalorder %s26, 1
      %p191 = por %p189, %p190
      %p192 = scmp.ne.s32.totalorder %s183, %s184
      %p193 = scmp.eq.s32.totalorder %s26, 0
      %p194 = por %p192, %p193
      %p195 = scmp.ne.s32.totalorder %s183, %s184
      %p196 = scmp.eq.s32.totalorder %s27, 1
      %p197 = por %p195, %p196
      %p199 = scmp.ne.s32.totalorder %s184, %s198
      %p200 = scmp.eq.s32.totalorder %s27, 0
      %p201 = por %p199, %p200
      %s203 = sadd.s32 %s202, 1
      %p206 = scmp.eq.s32.totalorder %s21, 1
      %p207 = scmp.ne.s32.totalorder %s202, %s204
      %p208 = scmp.eq.s32.totalorder %s21, 0
      %p209 = por %p207, %p208
      %p210 = scmp.ne.s32.totalorder %s202, %s204
      %p211 = scmp.eq.s32.totalorder %s26, 1
      %p212 = por %p210, %p211
      %p213 = scmp.ne.s32.totalorder %s204, %s205
      %p214 = scmp.eq.s32.totalorder %s26, 0
      %p215 = por %p213, %p214
      %p216 = scmp.ne.s32.totalorder %s204, %s205
      %p217 = scmp.eq.s32.totalorder %s27, 1
      %p218 = por %p216, %p217
      %p220 = scmp.ne.s32.totalorder %s205, %s219
      %p221 = scmp.eq.s32.totalorder %s27, 0
      %p222 = por %p220, %p221
      %s224 = sadd.s32 %s223, 1
      %p227 = scmp.eq.s32.totalorder %s21, 1
      %p228 = scmp.ne.s32.totalorder %s223, %s225
      %p229 = scmp.eq.s32.totalorder %s21, 0
      %p230 = por %p228, %p229
      %p231 = scmp.ne.s32.totalorder %s223, %s225
      %p232 = scmp.eq.s32.totalorder %s26, 1
      %p233 = por %p231, %p232
      %p234 = scmp.ne.s32.totalorder %s225, %s226
      %p235 = scmp.eq.s32.totalorder %s26, 0
      %p236 = por %p234, %p235
      %p237 = scmp.ne.s32.totalorder %s225, %s226
      %p238 = scmp.eq.s32.totalorder %s27, 1
      %p239 = por %p237, %p238
      %p241 = scmp.ne.s32.totalorder %s226, %s240
      %p242 = scmp.eq.s32.totalorder %s27, 0
      %p243 = por %p241, %p242
      %s245 = sadd.s32 %s244, 1
      %p248 = scmp.eq.s32.totalorder %s21, 1
      %p249 = scmp.ne.s32.totalorder %s244, %s246
      %p250 = scmp.eq.s32.totalorder %s21, 0
      %p251 = por %p249, %p250
      %p252 = scmp.ne.s32.totalorder %s244, %s246
      %p253 = scmp.eq.s32.totalorder %s26, 1
      %p254 = por %p252, %p253
      %p255 = scmp.ne.s32.totalorder %s246, %s247
      %p256 = scmp.eq.s32.totalorder %s26, 0
      %p257 = por %p255, %p256
      %p258 = scmp.ne.s32.totalorder %s246, %s247
      %p259 = scmp.eq.s32.totalorder %s27, 1
      %p260 = por %p258, %p259
      %p262 = scmp.ne.s32.totalorder %s247, %s261
      %p263 = scmp.eq.s32.totalorder %s27, 0
      %p264 = por %p262, %p263
      %s266 = sadd.s32 %s265, 1
      %p269 = scmp.eq.s32.totalorder %s21, 1
      %p270 = scmp.ne.s32.totalorder %s265, %s267
      %p271 = scmp.eq.s32.totalorder %s21, 0
      %p272 = por %p270, %p271
      %p273 = scmp.ne.s32.totalorder %s265, %s267
      %p274 = scmp.eq.s32.totalorder %s26, 1
      %p275 = por %p273, %p274
      %p276 = scmp.ne.s32.totalorder %s267, %s268
      %p277 = scmp.eq.s32.totalorder %s26, 0
      %p278 = por %p276, %p277
      %p279 = scmp.ne.s32.totalorder %s267, %s268
      %p280 = scmp.eq.s32.totalorder %s27, 1
      %p281 = por %p279, %p280
      %p283 = scmp.ne.s32.totalorder %s268, %s282
      %p284 = scmp.eq.s32.totalorder %s27, 0
      %p285 = por %p283, %p284
      %s286 = ssub.s32 %s21, %s28
      %p287 = scmp.eq.s32.totalorder %s286, 0
      %s289 = sadd.s32 %s288, 1
      %s290 = scalar_select %p287, %s288, %s289
      %p293 = pneg %p287
      %p294 = scmp.eq.s32.totalorder %s21, 1
      %p295 = por %p293, %p294
      %p296 = scmp.ne.s32.totalorder %s288, %s291
      %p297 = scmp.eq.s32.totalorder %s21, 0
      %p298 = por %p296, %p297
      %p299 = scmp.ne.s32.totalorder %s288, %s291
      %p300 = scmp.eq.s32.totalorder %s26, 1
      %p301 = por %p299, %p300
      %p302 = scmp.ne.s32.totalorder %s291, %s292
      %p303 = scmp.eq.s32.totalorder %s26, 0
      %p304 = por %p302, %p303
      %p305 = scmp.ne.s32.totalorder %s291, %s292
      %p306 = scmp.eq.s32.totalorder %s27, 1
      %p307 = por %p305, %p306
      %p309 = scmp.ne.s32.totalorder %s292, %s308
      %p310 = scmp.eq.s32.totalorder %s27, 0
      %p311 = por %p309, %p310
      %p312 = scmp.le.s32.totalorder 1, %s21
      %p313 = scmp.lt.s32.totalorder %s21, 3
      %p314 = pnand %p312, %p313
      %p315 = pneg %p314
      // Predicated region
      $region9: #{net_forward.1} parent=5 // pred_check
        _
      $region10: #{net_forward.1} parent=5 // pred_check_branch
        %317 = sbr.rel (%p314) target = $region12
      $region11: #{net_forward.1} parent=5 // pred_region
        %s318 = ssub.s32 %s21, 1
        // Predicated region
        $region13: #{net_forward.1} parent=11 // pred_check
          %p319 = pneg %p68
        $region14: #{net_forward.1} parent=11 // pred_check_branch
          %321 = sbr.rel (%p319) target = $region16
        $region15: #{net_forward.1} parent=11 // pred_region
          _
        $region16: #{net_forward.1} parent=11 // pred_fallthru
          _
        // Predicated region
        $region17: #{net_forward.1} parent=11 // pred_check
          %p322 = pneg %p89
        $region18: #{net_forward.1} parent=11 // pred_check_branch
          %324 = sbr.rel (%p322) target = $region20
        $region19: #{net_forward.1} parent=11 // pred_region
          _
        $region20: #{net_forward.1} parent=11 // pred_fallthru
          _
        // Predicated region
        $region21: #{net_forward.1} parent=11 // pred_check
          %p325 = pneg %p110
        $region22: #{net_forward.1} parent=11 // pred_check_branch
          %327 = sbr.rel (%p325) target = $region24
        $region23: #{net_forward.1} parent=11 // pred_region
          _
        $region24: #{net_forward.1} parent=11 // pred_fallthru
          _
        // Predicated region
        $region25: #{net_forward.1} parent=11 // pred_check
          %p328 = pneg %p131
        $region26: #{net_forward.1} parent=11 // pred_check_branch
          %330 = sbr.rel (%p328) target = $region28
        $region27: #{net_forward.1} parent=11 // pred_region
          _
        $region28: #{net_forward.1} parent=11 // pred_fallthru
          _
        // Predicated region
        $region29: #{net_forward.1} parent=11 // pred_check
          %p331 = pneg %p152
        $region30: #{net_forward.1} parent=11 // pred_check_branch
          %333 = sbr.rel (%p331) target = $region32
        $region31: #{net_forward.1} parent=11 // pred_region
          _
        $region32: #{net_forward.1} parent=11 // pred_fallthru
          _
        // Predicated region
        $region33: #{net_forward.1} parent=11 // pred_check
          %p334 = pneg %p173
        $region34: #{net_forward.1} parent=11 // pred_check_branch
          %336 = sbr.rel (%p334) target = $region36
        $region35: #{net_forward.1} parent=11 // pred_region
          _
        $region36: #{net_forward.1} parent=11 // pred_fallthru
          _
        // Predicated region
        $region37: #{net_forward.1} parent=11 // pred_check
          %p337 = pneg %p194
        $region38: #{net_forward.1} parent=11 // pred_check_branch
          %339 = sbr.rel (%p337) target = $region40
        $region39: #{net_forward.1} parent=11 // pred_region
          _
        $region40: #{net_forward.1} parent=11 // pred_fallthru
          _
        // Predicated region
        $region41: #{net_forward.1} parent=11 // pred_check
          %p340 = pneg %p215
        $region42: #{net_forward.1} parent=11 // pred_check_branch
          %342 = sbr.rel (%p340) target = $region44
        $region43: #{net_forward.1} parent=11 // pred_region
          _
        $region44: #{net_forward.1} parent=11 // pred_fallthru
          _
        // Predicated region
        $region45: #{net_forward.1} parent=11 // pred_check
          %p343 = pneg %p236
        $region46: #{net_forward.1} parent=11 // pred_check_branch
          %345 = sbr.rel (%p343) target = $region48
        $region47: #{net_forward.1} parent=11 // pred_region
          _
        $region48: #{net_forward.1} parent=11 // pred_fallthru
          _
        // Predicated region
        $region49: #{net_forward.1} parent=11 // pred_check
          %p346 = pneg %p257
        $region50: #{net_forward.1} parent=11 // pred_check_branch
          %348 = sbr.rel (%p346) target = $region52
        $region51: #{net_forward.1} parent=11 // pred_region
          _
        $region52: #{net_forward.1} parent=11 // pred_fallthru
          _
        // Predicated region
        $region53: #{net_forward.1} parent=11 // pred_check
          %p349 = pneg %p278
        $region54: #{net_forward.1} parent=11 // pred_check_branch
          %351 = sbr.rel (%p349) target = $region56
        $region55: #{net_forward.1} parent=11 // pred_region
          _
        $region56: #{net_forward.1} parent=11 // pred_fallthru
          _
      $region12: #{net_forward.1} parent=5 // pred_fallthru
        _
      %p352 = scmp.lt.s32.totalorder %s21, 2
      // Predicated region
      $region57: #{net_forward.1} parent=5 // pred_check
        %p353 = pneg %p352
      $region58: #{net_forward.1} parent=5 // pred_check_branch
        %355 = sbr.rel (%p353) target = $region60
      $region59: #{net_forward.1} parent=5 // pred_region
        // Predicated region
        $region61: #{net_forward.1} parent=59 // pred_check
          %p356 = pneg %p41
        $region62: #{net_forward.1} parent=59 // pred_check_branch
          %358 = sbr.rel (%p356) target = $region64
        $region63: #{net_forward.1} parent=59 // pred_region
          %p359 = scmp.lt.s32.totalorder %s21, 1
          %s360 = scalar_select %p359, %s21, 1
          %s361 = smul.addr %s360, 4
          %s362 = smul.addr %s361, 8
          %s363 = scalar_lea.vmem %s0, %s362
        $region64: #{net_forward.1} parent=59 // pred_fallthru
          _
      $region60: #{net_forward.1} parent=5 // pred_fallthru
        _
      %p364 = scmp.le.s32.totalorder 1, %s21
      %p365 = scmp.lt.s32.totalorder %s21, 3
      %p366 = pnand %p364, %p365
      %p367 = pneg %p366
      // Predicated region
      $region65: #{net_forward.1} parent=5 // pred_check
        _
      $region66: #{net_forward.1} parent=5 // pred_check_branch
        %369 = sbr.rel (%p366) target = $region68
      $region67: #{net_forward.1} parent=5 // pred_region
        %s370 = ssub.s32 %s21, 1
        %p371 = scmp.lt.s32.totalorder %s26, 1
        %s372 = scalar_select %p371, %s26, 1
        %s373 = smul.addr %s372, 4
        %s374 = smul.addr %s373, 8
        %s375 = scalar_lea.vmem %s0, %s374
        %p376 = pneg %p47
        %p377 = pneg %p44
        %p378 = pneg %p68
        %p379 = pneg %p65
        %p380 = pneg %p89
        %p381 = pneg %p86
        %p382 = pneg %p110
        %p383 = pneg %p107
        %p384 = pneg %p131
        %p385 = pneg %p128
        %p386 = pneg %p152
        %p387 = pneg %p149
        %p388 = pneg %p173
        %p389 = pneg %p170
        %p390 = pneg %p194
        %p391 = pneg %p191
        %p392 = pneg %p215
        %p393 = pneg %p212
        %p394 = pneg %p236
        %p395 = pneg %p233
        %p396 = pneg %p257
        %p397 = pneg %p254
        %p398 = pneg %p278
        %p399 = pneg %p275
        %p400 = pneg %p304
        %p401 = pneg %p301
        %s402 = sand.u32 %s291, 1
        %s403 = scalar_lea.sflag [#allocation5], %s402
        %s404 = sand.u32 %s291, 1
        %s405 = scalar_lea.vmem [#allocation4], %s404
        %p406 = scmp.lt.s32.totalorder %s26, 1
        %s407 = scalar_select %p406, %s26, 1
        %s408 = smul.addr %s407, 4
        %s409 = smul.addr %s408, 8
        %s410 = scalar_lea.vmem %s0, %s409
        %v411 = vld [vmem:[%s1] sm:$0xff]
        %v412 = vld [vmem:[%s1 + $0x8] sm:$0xff]
        %v413 = vld [vmem:[%s1 + $0x10] sm:$0xff]
        %v414 = vld [vmem:[%s1 + $0x18] sm:$0xff]
        %v415 = vld [vmem:[%s1 + $0x20] sm:$0xff]
        %v416 = vld [vmem:[%s1 + $0x28] sm:$0xff]
        %v417 = vld [vmem:[%s1 + $0x30] sm:$0xff]
        %v418 = vld [vmem:[%s1 + $0x38] sm:$0xff]
        %v419 = vld [vmem:[%s1 + $0x40] sm:$0xff]
        %v420 = vld [vmem:[%s1 + $0x48] sm:$0xff]
        %v421 = vld [vmem:[%s1 + $0x50] sm:$0xff]
        %v422 = vld [vmem:[%s1 + $0x58] sm:$0xff]
        %v423 = vld [vmem:[%s1 + $0x60] sm:$0xff]
        %v424 = vld [vmem:[%s1 + $0x68] sm:$0xff]
        %v425 = vld [vmem:[%s1 + $0x70] sm:$0xff]
        %v426 = vld [vmem:[%s1 + $0x78] sm:$0xff]
        %v427 = vld [vmem:[%s1 + $0x80] sm:$0xff]
        %v428 = vld [vmem:[%s1 + $0x88] sm:$0xff]
        %v429 = vld [vmem:[%s1 + $0x90] sm:$0xff]
        %v430 = vld [vmem:[%s1 + $0x98] sm:$0xff]
        %v431 = vld [vmem:[%s1 + $0xa0] sm:$0xff]
        %v432 = vld [vmem:[%s1 + $0xa8] sm:$0xff]
        %v433 = vld [vmem:[%s1 + $0xb0] sm:$0xff]
        %v434 = vld [vmem:[%s1 + $0xb8] sm:$0xff]
        %v435 = vld [vmem:[%s410] sm:$0xff]
        %v436 = vld [vmem:[%s410 + $0x8] sm:$0x3f]
        %v437 = vld [vmem:[%s410 + $0x10] sm:$0xff]
        %v438 = vld [vmem:[%s410 + $0x18] sm:$0x3f]
        %s439 = scalar_lea.vmem %s1, 192
        %v440 = vld [vmem:[%s439] sm:$0xff]
        %v441 = vld [vmem:[%s439 + $0x8] sm:$0xff]
        %v442 = vld [vmem:[%s439 + $0x10] sm:$0xff]
        %v443 = vld [vmem:[%s439 + $0x18] sm:$0xff]
        %v444 = vld [vmem:[%s439 + $0x20] sm:$0xff]
        %v445 = vld [vmem:[%s439 + $0x28] sm:$0xff]
        %v446 = vld [vmem:[%s439 + $0x30] sm:$0xff]
        %v447 = vld [vmem:[%s439 + $0x38] sm:$0xff]
        %v448 = vld [vmem:[%s439 + $0x40] sm:$0xff]
        %v449 = vld [vmem:[%s439 + $0x48] sm:$0xff]
        %v450 = vld [vmem:[%s439 + $0x50] sm:$0xff]
        %v451 = vld [vmem:[%s439 + $0x58] sm:$0xff]
        %v452 = vld [vmem:[%s439 + $0x60] sm:$0xff]
        %v453 = vld [vmem:[%s439 + $0x68] sm:$0xff]
        %v454 = vld [vmem:[%s439 + $0x70] sm:$0xff]
        %v455 = vld [vmem:[%s439 + $0x78] sm:$0xff]
        %v456 = vld [vmem:[%s439 + $0x80] sm:$0xff]
        %v457 = vld [vmem:[%s439 + $0x88] sm:$0xff]
        %v458 = vld [vmem:[%s439 + $0x90] sm:$0xff]
        %v459 = vld [vmem:[%s439 + $0x98] sm:$0xff]
        %v460 = vld [vmem:[%s439 + $0xa0] sm:$0xff]
        %v461 = vld [vmem:[%s439 + $0xa8] sm:$0xff]
        %v462 = vld [vmem:[%s439 + $0xb0] sm:$0xff]
        %v463 = vld [vmem:[%s439 + $0xb8] sm:$0xff]
        %vm464 = vcmask 785408
        %v466 = vsel %vm464, %v437, 0
        %v469 = vsel %vm464, %v438, 0
        %471 = vmatprep.subr.mxu0 %v441
        %472 = vmatpush1.msra.mxu0 %v440
        %473 = vmatprep.subr.mxu0 %v443
        %474 = vmatpush1.msra.mxu0 %v442
        %475 = vmatprep.subr.mxu0 %v445
        %476 = vmatpush1.msra.mxu0 %v444
        %477 = vmatprep.subr.mxu0 %v447
        %478 = vmatpush1.msra.mxu0 %v446
        %479 = vmatprep.subr.mxu0 %v449
        %480 = vmatpush1.msra.mxu0 %v448
        %481 = vmatprep.subr.mxu0 %v451
        %482 = vmatpush1.msra.mxu0 %v450
        %483 = vmatprep.subr.mxu0 %v453
        %484 = vmatpush1.msra.mxu0 %v452
        %485 = vmatprep.subr.mxu0 %v455
        %486 = vmatpush1.msra.mxu0 %v454
        %487 = vmatprep.subr.mxu0 %v457
        %488 = vmatpush1.msra.mxu0 %v456
        %489 = vmatprep.subr.mxu0 %v459
        %490 = vmatpush1.msra.mxu0 %v458
        %491 = vmatprep.subr.mxu0 %v461
        %492 = vmatpush1.msra.mxu0 %v460
        %493 = vmatprep.subr.mxu0 %v463
        %494 = vmatpush1.msra.mxu0 %v462
        %495 = vmatprep.subr.mxu0 0.0
        %496 = vmatpush1.msra.mxu0 0.0
        %497 = vmatprep.subr.mxu0 0.0
        %498 = vmatpush1.msra.mxu0 0.0
        %499 = vmatprep.subr.mxu0 0.0
        %500 = vmatpush1.msra.mxu0 0.0
        %501 = vmatprep.subr.mxu0 0.0
        %502 = vmatpush1.msra.mxu0 0.0
        %503 = vmatprep.subr.mxu0 0.0
        %504 = vmatpush1.msra.mxu0 0.0
        %505 = vmatprep.subr.mxu0 0.0
        %506 = vmatpush1.msra.mxu0 0.0
        %507 = vmatprep.subr.mxu0 0.0
        %508 = vmatpush1.msra.mxu0 0.0
        %509 = vmatprep.subr.mxu0 0.0
        %510 = vmatpush1.msra.mxu0 0.0
        %511 = vmatprep.subr.mxu0 0.0
        %512 = vmatpush1.msra.mxu0 0.0
        %513 = vmatprep.subr.mxu0 0.0
        %514 = vmatpush1.msra.mxu0 0.0
        %515 = vmatprep.subr.mxu0 0.0
        %516 = vmatpush1.msra.mxu0 0.0
        %517 = vmatprep.subr.mxu0 0.0
        %518 = vmatpush1.msra.mxu0 0.0
        %519 = vmatprep.subr.mxu0 0.0
        %520 = vmatpush1.msra.mxu0 0.0
        %521 = vmatprep.subr.mxu0 0.0
        %522 = vmatpush1.msra.mxu0 0.0
        %523 = vmatprep.subr.mxu0 0.0
        %524 = vmatpush1.msra.mxu0 0.0
        %525 = vmatprep.subr.mxu0 0.0
        %526 = vmatpush1.msra.mxu0 0.0
        %527 = vmatprep.subr.mxu0 0.0
        %528 = vmatpush1.msra.mxu0 0.0
        %529 = vmatprep.subr.mxu0 0.0
        %530 = vmatpush1.msra.mxu0 0.0
        %531 = vmatprep.subr.mxu0 0.0
        %532 = vmatpush1.msra.mxu0 0.0
        %533 = vmatprep.subr.mxu0 0.0
        %534 = vmatpush1.msra.mxu0 0.0
        %535 = vmatprep.mubr.f32.mxu0 0.0
        %536 = vmatmul.mubr.f32.gmra.mrb[0].mxu0 %v466
        %v537 = vpop.f32.mrb[0].mxu0
        %v538 = vadd.f32 0.0, %v537
        %v539 = vpop.f32.mrb[0].mxu0
        %v540 = vadd.f32 0.0, %v539
        %541 = vmatprep.mubr.f32.mxu0 0.0
        %542 = vmatmul.mubr.f32.gmra.mrb[0].mxu0 %v469
        %v543 = vpop.f32.mrb[0].mxu0
        %v544 = vadd.f32 0.0, %v543
        %v545 = vpop.f32.mrb[0].mxu0
        %v546 = vadd.f32 0.0, %v545
        %547 = vdwg.mxu0
        %v549 = vsel %vm464, %v435, 0
        %v552 = vsel %vm464, %v436, 0
        %554 = vmatprep.subr.mxu0 %v412
        %555 = vmatpush1.msra.mxu0 %v411
        %556 = vmatprep.subr.mxu0 %v414
        %557 = vmatpush1.msra.mxu0 %v413
        %558 = vmatprep.subr.mxu0 %v416
        %559 = vmatpush1.msra.mxu0 %v415
        %560 = vmatprep.subr.mxu0 %v418
        %561 = vmatpush1.msra.mxu0 %v417
        %562 = vmatprep.subr.mxu0 %v420
        %563 = vmatpush1.msra.mxu0 %v419
        %564 = vmatprep.subr.mxu0 %v422
        %565 = vmatpush1.msra.mxu0 %v421
        %566 = vmatprep.subr.mxu0 %v424
        %567 = vmatpush1.msra.mxu0 %v423
        %568 = vmatprep.subr.mxu0 %v426
        %569 = vmatpush1.msra.mxu0 %v425
        %570 = vmatprep.subr.mxu0 %v428
        %571 = vmatpush1.msra.mxu0 %v427
        %572 = vmatprep.subr.mxu0 %v430
        %573 = vmatpush1.msra.mxu0 %v429
        %574 = vmatprep.subr.mxu0 %v432
        %575 = vmatpush1.msra.mxu0 %v431
        %576 = vmatprep.subr.mxu0 %v434
        %577 = vmatpush1.msra.mxu0 %v433
        %578 = vmatprep.subr.mxu0 0.0
        %579 = vmatpush1.msra.mxu0 0.0
        %580 = vmatprep.subr.mxu0 0.0
        %581 = vmatpush1.msra.mxu0 0.0
        %582 = vmatprep.subr.mxu0 0.0
        %583 = vmatpush1.msra.mxu0 0.0
        %584 = vmatprep.subr.mxu0 0.0
        %585 = vmatpush1.msra.mxu0 0.0
        %586 = vmatprep.subr.mxu0 0.0
        %587 = vmatpush1.msra.mxu0 0.0
        %588 = vmatprep.subr.mxu0 0.0
        %589 = vmatpush1.msra.mxu0 0.0
        %590 = vmatprep.subr.mxu0 0.0
        %591 = vmatpush1.msra.mxu0 0.0
        %592 = vmatprep.subr.mxu0 0.0
        %593 = vmatpush1.msra.mxu0 0.0
        %594 = vmatprep.subr.mxu0 0.0
        %595 = vmatpush1.msra.mxu0 0.0
        %596 = vmatprep.subr.mxu0 0.0
        %597 = vmatpush1.msra.mxu0 0.0
        %598 = vmatprep.subr.mxu0 0.0
        %599 = vmatpush1.msra.mxu0 0.0
        %600 = vmatprep.subr.mxu0 0.0
        %601 = vmatpush1.msra.mxu0 0.0
        %602 = vmatprep.subr.mxu0 0.0
        %603 = vmatpush1.msra.mxu0 0.0
        %604 = vmatprep.subr.mxu0 0.0
        %605 = vmatpush1.msra.mxu0 0.0
        %606 = vmatprep.subr.mxu0 0.0
        %607 = vmatpush1.msra.mxu0 0.0
        %608 = vmatprep.subr.mxu0 0.0
        %609 = vmatpush1.msra.mxu0 0.0
        %610 = vmatprep.subr.mxu0 0.0
        %611 = vmatpush1.msra.mxu0 0.0
        %612 = vmatprep.subr.mxu0 0.0
        %613 = vmatpush1.msra.mxu0 0.0
        %614 = vmatprep.subr.mxu0 0.0
        %615 = vmatpush1.msra.mxu0 0.0
        %616 = vmatprep.subr.mxu0 0.0
        %617 = vmatpush1.msra.mxu0 0.0
        %618 = vmatprep.mubr.f32.mxu0 0.0
        %619 = vmatmul.mubr.f32.gmra.mrb[0].mxu0 %v549
        %v620 = vpop.f32.mrb[0].mxu0
        %v621 = vadd.f32 %v538, %v620
        %v622 = vpop.f32.mrb[0].mxu0
        %v623 = vadd.f32 %v540, %v622
        %624 = vmatprep.mubr.f32.mxu0 0.0
        %625 = vmatmul.mubr.f32.gmra.mrb[0].mxu0 %v552
        %v626 = vpop.f32.mrb[0].mxu0
        %v627 = vadd.f32 %v544, %v626
        %v628 = vpop.f32.mrb[0].mxu0
        %v629 = vadd.f32 %v546, %v628
        %630 = vdwg.mxu0
        %v631 = vld [vmem:[%s410 + $0x1] sm:$0xff]
        %v632 = vld [vmem:[%s410 + $0x9] sm:$0x3f]
        %v634 = vsel %vm464, %v631, 0
        %v637 = vsel %vm464, %v632, 0
        %639 = vmatprep.subr.mxu0 %v441
        %640 = vmatpush1.msra.mxu0 %v440
        %641 = vmatprep.subr.mxu0 %v443
        %642 = vmatpush1.msra.mxu0 %v442
        %643 = vmatprep.subr.mxu0 %v445
        %644 = vmatpush1.msra.mxu0 %v444
        %645 = vmatprep.subr.mxu0 %v447
        %646 = vmatpush1.msra.mxu0 %v446
        %647 = vmatprep.subr.mxu0 %v449
        %648 = vmatpush1.msra.mxu0 %v448
        %649 = vmatprep.subr.mxu0 %v451
        %650 = vmatpush1.msra.mxu0 %v450
        %651 = vmatprep.subr.mxu0 %v453
        %652 = vmatpush1.msra.mxu0 %v452
        %653 = vmatprep.subr.mxu0 %v455
        %654 = vmatpush1.msra.mxu0 %v454
        %655 = vmatprep.subr.mxu0 %v457
        %656 = vmatpush1.msra.mxu0 %v456
        %657 = vmatprep.subr.mxu0 %v459
        %658 = vmatpush1.msra.mxu0 %v458
        %659 = vmatprep.subr.mxu0 %v461
        %660 = vmatpush1.msra.mxu0 %v460
        %661 = vmatprep.subr.mxu0 %v463
        %662 = vmatpush1.msra.mxu0 %v462
        %663 = vmatprep.subr.mxu0 0.0
        %664 = vmatpush1.msra.mxu0 0.0
        %665 = vmatprep.subr.mxu0 0.0
        %666 = vmatpush1.msra.mxu0 0.0
        %667 = vmatprep.subr.mxu0 0.0
        %668 = vmatpush1.msra.mxu0 0.0
        %669 = vmatprep.subr.mxu0 0.0
        %670 = vmatpush1.msra.mxu0 0.0
        %671 = vmatprep.subr.mxu0 0.0
        %672 = vmatpush1.msra.mxu0 0.0
        %673 = vmatprep.subr.mxu0 0.0
        %674 = vmatpush1.msra.mxu0 0.0
        %675 = vmatprep.subr.mxu0 0.0
        %676 = vmatpush1.msra.mxu0 0.0
        %677 = vmatprep.subr.mxu0 0.0
        %678 = vmatpush1.msra.mxu0 0.0
        %679 = vmatprep.subr.mxu0 0.0
        %680 = vmatpush1.msra.mxu0 0.0
        %681 = vmatprep.subr.mxu0 0.0
        %682 = vmatpush1.msra.mxu0 0.0
        %683 = vmatprep.subr.mxu0 0.0
        %684 = vmatpush1.msra.mxu0 0.0
        %685 = vmatprep.subr.mxu0 0.0
        %686 = vmatpush1.msra.mxu0 0.0
        %687 = vmatprep.subr.mxu0 0.0
        %688 = vmatpush1.msra.mxu0 0.0
        %689 = vmatprep.subr.mxu0 0.0
        %690 = vmatpush1.msra.mxu0 0.0
        %691 = vmatprep.subr.mxu0 0.0
        %692 = vmatpush1.msra.mxu0 0.0
        %693 = vmatprep.subr.mxu0 0.0
        %694 = vmatpush1.msra.mxu0 0.0
        %695 = vmatprep.subr.mxu0 0.0
        %696 = vmatpush1.msra.mxu0 0.0
        %697 = vmatprep.subr.mxu0 0.0
        %698 = vmatpush1.msra.mxu0 0.0
        %699 = vmatprep.subr.mxu0 0.0
        %700 = vmatpush1.msra.mxu0 0.0
        %701 = vmatprep.subr.mxu0 0.0
        %702 = vmatpush1.msra.mxu0 0.0
        %703 = vmatprep.mubr.f32.mxu0 0.0
        %704 = vmatmul.mubr.f32.gmra.mrb[0].mxu0 %v634
        %v705 = vpop.f32.mrb[0].mxu0
        %v706 = vadd.f32 0.0, %v705
        %v707 = vpop.f32.mrb[0].mxu0
        %v708 = vadd.f32 0.0, %v707
        %709 = vmatprep.mubr.f32.mxu0 0.0
        %710 = vmatmul.mubr.f32.gmra.mrb[0].mxu0 %v637
        %v711 = vpop.f32.mrb[0].mxu0
        %v712 = vadd.f32 0.0, %v711
        %v713 = vpop.f32.mrb[0].mxu0
        %v714 = vadd.f32 0.0, %v713
        %715 = vdwg.mxu0
        %716 = vmatprep.subr.mxu0 %v412
        %717 = vmatpush1.msra.mxu0 %v411
        %718 = vmatprep.subr.mxu0 %v414
        %719 = vmatpush1.msra.mxu0 %v413
        %720 = vmatprep.subr.mxu0 %v416
        %721 = vmatpush1.msra.mxu0 %v415
        %722 = vmatprep.subr.mxu0 %v418
        %723 = vmatpush1.msra.mxu0 %v417
        %724 = vmatprep.subr.mxu0 %v420
        %725 = vmatpush1.msra.mxu0 %v419
        %726 = vmatprep.subr.mxu0 %v422
        %727 = vmatpush1.msra.mxu0 %v421
        %728 = vmatprep.subr.mxu0 %v424
        %729 = vmatpush1.msra.mxu0 %v423
        %730 = vmatprep.subr.mxu0 %v426
        %731 = vmatpush1.msra.mxu0 %v425
        %732 = vmatprep.subr.mxu0 %v428
        %733 = vmatpush1.msra.mxu0 %v427
        %734 = vmatprep.subr.mxu0 %v430
        %735 = vmatpush1.msra.mxu0 %v429
        %736 = vmatprep.subr.mxu0 %v432
        %737 = vmatpush1.msra.mxu0 %v431
        %738 = vmatprep.subr.mxu0 %v434
        %739 = vmatpush1.msra.mxu0 %v433
        %740 = vmatprep.subr.mxu0 0.0
        %741 = vmatpush1.msra.mxu0 0.0
        %742 = vmatprep.subr.mxu0 0.0
        %743 = vmatpush1.msra.mxu0 0.0
        %744 = vmatprep.subr.mxu0 0.0
        %745 = vmatpush1.msra.mxu0 0.0
        %746 = vmatprep.subr.mxu0 0.0
        %747 = vmatpush1.msra.mxu0 0.0
        %748 = vmatprep.subr.mxu0 0.0
        %749 = vmatpush1.msra.mxu0 0.0
        %750 = vmatprep.subr.mxu0 0.0
        %751 = vmatpush1.msra.mxu0 0.0
        %752 = vmatprep.subr.mxu0 0.0
        %753 = vmatpush1.msra.mxu0 0.0
        %754 = vmatprep.subr.mxu0 0.0
        %755 = vmatpush1.msra.mxu0 0.0
        %756 = vmatprep.subr.mxu0 0.0
        %757 = vmatpush1.msra.mxu0 0.0
        %758 = vmatprep.subr.mxu0 0.0
        %759 = vmatpush1.msra.mxu0 0.0
        %760 = vmatprep.subr.mxu0 0.0
        %761 = vmatpush1.msra.mxu0 0.0
        %762 = vmatprep.subr.mxu0 0.0
        %763 = vmatpush1.msra.mxu0 0.0
        %764 = vmatprep.subr.mxu0 0.0
        %765 = vmatpush1.msra.mxu0 0.0
        %766 = vmatprep.subr.mxu0 0.0
        %767 = vmatpush1.msra.mxu0 0.0
        %768 = vmatprep.subr.mxu0 0.0
        %769 = vmatpush1.msra.mxu0 0.0
        %770 = vmatprep.subr.mxu0 0.0
        %771 = vmatpush1.msra.mxu0 0.0
        %772 = vmatprep.subr.mxu0 0.0
        %773 = vmatpush1.msra.mxu0 0.0
        %774 = vmatprep.subr.mxu0 0.0
        %775 = vmatpush1.msra.mxu0 0.0
        %776 = vmatprep.subr.mxu0 0.0
        %777 = vmatpush1.msra.mxu0 0.0
        %778 = vmatprep.subr.mxu0 0.0
        %779 = vmatpush1.msra.mxu0 0.0
        %780 = vmatprep.mubr.f32.mxu0 0.0
        %781 = vmatmul.mubr.f32.gmra.mrb[0].mxu0 %v466
        %v782 = vpop.f32.mrb[0].mxu0
        %v783 = vadd.f32 %v706, %v782
        %v784 = vpop.f32.mrb[0].mxu0
        %v785 = vadd.f32 %v708, %v784
        %786 = vmatprep.mubr.f32.mxu0 0.0
        %787 = vmatmul.mubr.f32.gmra.mrb[0].mxu0 %v469
        %v788 = vpop.f32.mrb[0].mxu0
        %v789 = vadd.f32 %v712, %v788
        %v790 = vpop.f32.mrb[0].mxu0
        %v791 = vadd.f32 %v714, %v790
        %792 = vdwg.mxu0
        %s793 = scalar_lea.vmem %s1, 384
        %v794 = vld [vmem:[%s793] sm:$0xff]
        %v795 = vld [vmem:[%s793 + $0x8] sm:$0xff]
        %v796 = vld [vmem:[%s793 + $0x10] sm:$0xff]
        %v797 = vld [vmem:[%s793 + $0x18] sm:$0xff]
        %v798 = vld [vmem:[%s793 + $0x20] sm:$0xff]
        %v799 = vld [vmem:[%s793 + $0x28] sm:$0xff]
        %v800 = vld [vmem:[%s793 + $0x30] sm:$0xff]
        %v801 = vld [vmem:[%s793 + $0x38] sm:$0xff]
        %v802 = vld [vmem:[%s793 + $0x40] sm:$0xff]
        %v803 = vld [vmem:[%s793 + $0x48] sm:$0xff]
        %v804 = vld [vmem:[%s793 + $0x50] sm:$0xff]
        %v805 = vld [vmem:[%s793 + $0x58] sm:$0xff]
        %v806 = vld [vmem:[%s793 + $0x60] sm:$0xff]
        %v807 = vld [vmem:[%s793 + $0x68] sm:$0xff]
        %v808 = vld [vmem:[%s793 + $0x70] sm:$0xff]
        %v809 = vld [vmem:[%s793 + $0x78] sm:$0xff]
        %v810 = vld [vmem:[%s793 + $0x80] sm:$0xff]
        %v811 = vld [vmem:[%s793 + $0x88] sm:$0xff]
        %v812 = vld [vmem:[%s793 + $0x90] sm:$0xff]
        %v813 = vld [vmem:[%s793 + $0x98] sm:$0xff]
        %v814 = vld [vmem:[%s793 + $0xa0] sm:$0xff]
        %v815 = vld [vmem:[%s793 + $0xa8] sm:$0xff]
        %v816 = vld [vmem:[%s793 + $0xb0] sm:$0xff]
        %v817 = vld [vmem:[%s793 + $0xb8] sm:$0xff]
        %818 = vmatprep.subr.mxu0 %v795
        %819 = vmatpush1.msra.mxu0 %v794
        %820 = vmatprep.subr.mxu0 %v797
        %821 = vmatpush1.msra.mxu0 %v796
        %822 = vmatprep.subr.mxu0 %v799
        %823 = vmatpush1.msra.mxu0 %v798
        %824 = vmatprep.subr.mxu0 %v801
        %825 = vmatpush1.msra.mxu0 %v800
        %826 = vmatprep.subr.mxu0 %v803
        %827 = vmatpush1.msra.mxu0 %v802
        %828 = vmatprep.subr.mxu0 %v805
        %829 = vmatpush1.msra.mxu0 %v804
        %830 = vmatprep.subr.mxu0 %v807
        %831 = vmatpush1.msra.mxu0 %v806
        %832 = vmatprep.subr.mxu0 %v809
        %833 = vmatpush1.msra.mxu0 %v808
        %834 = vmatprep.subr.mxu0 %v811
        %835 = vmatpush1.msra.mxu0 %v810
        %836 = vmatprep.subr.mxu0 %v813
        %837 = vmatpush1.msra.mxu0 %v812
        %838 = vmatprep.subr.mxu0 %v815
        %839 = vmatpush1.msra.mxu0 %v814
        %840 = vmatprep.subr.mxu0 %v817
        %841 = vmatpush1.msra.mxu0 %v816
        %842 = vmatprep.subr.mxu0 0.0
        %843 = vmatpush1.msra.mxu0 0.0
        %844 = vmatprep.subr.mxu0 0.0
        %845 = vmatpush1.msra.mxu0 0.0
        %846 = vmatprep.subr.mxu0 0.0
        %847 = vmatpush1.msra.mxu0 0.0
        %848 = vmatprep.subr.mxu0 0.0
        %849 = vmatpush1.msra.mxu0 0.0
        %850 = vmatprep.subr.mxu0 0.0
        %851 = vmatpush1.msra.mxu0 0.0
        %852 = vmatprep.subr.mxu0 0.0
        %853 = vmatpush1.msra.mxu0 0.0
        %854 = vmatprep.subr.mxu0 0.0
        %855 = vmatpush1.msra.mxu0 0.0
        %856 = vmatprep.subr.mxu0 0.0
        %857 = vmatpush1.msra.mxu0 0.0
        %858 = vmatprep.subr.mxu0 0.0
        %859 = vmatpush1.msra.mxu0 0.0
        %860 = vmatprep.subr.mxu0 0.0
        %861 = vmatpush1.msra.mxu0 0.0
        %862 = vmatprep.subr.mxu0 0.0
        %863 = vmatpush1.msra.mxu0 0.0
        %864 = vmatprep.subr.mxu0 0.0
        %865 = vmatpush1.msra.mxu0 0.0
        %866 = vmatprep.subr.mxu0 0.0
        %867 = vmatpush1.msra.mxu0 0.0
        %868 = vmatprep.subr.mxu0 0.0
        %869 = vmatpush1.msra.mxu0 0.0
        %870 = vmatprep.subr.mxu0 0.0
        %871 = vmatpush1.msra.mxu0 0.0
        %872 = vmatprep.subr.mxu0 0.0
        %873 = vmatpush1.msra.mxu0 0.0
        %874 = vmatprep.subr.mxu0 0.0
        %875 = vmatpush1.msra.mxu0 0.0
        %876 = vmatprep.subr.mxu0 0.0
        %877 = vmatpush1.msra.mxu0 0.0
        %878 = vmatprep.subr.mxu0 0.0
        %879 = vmatpush1.msra.mxu0 0.0
        %880 = vmatprep.subr.mxu0 0.0
        %881 = vmatpush1.msra.mxu0 0.0
        %882 = vmatprep.mubr.f32.mxu0 0.0
        %883 = vmatmul.mubr.f32.gmra.mrb[0].mxu0 %v634
        %v884 = vpop.f32.mrb[0].mxu0
        %v885 = vadd.f32 0.0, %v884
        %v886 = vpop.f32.mrb[0].mxu0
        %v887 = vadd.f32 0.0, %v886
        %888 = vmatprep.mubr.f32.mxu0 0.0
        %889 = vmatmul.mubr.f32.gmra.mrb[0].mxu0 %v637
        %v890 = vpop.f32.mrb[0].mxu0
        %v891 = vadd.f32 0.0, %v890
        %v892 = vpop.f32.mrb[0].mxu0
        %v893 = vadd.f32 0.0, %v892
        %894 = vdwg.mxu0
        %v895 = vadd.f32 %v621, %v885
        %v896 = vadd.f32 %v623, %v887
        %v897 = vadd.f32 %v627, %v891
        %v898 = vadd.f32 %v629, %v893
        %v899 = vld [vmem:[%s410 + $0x11] sm:$0xff]
        %v900 = vld [vmem:[%s410 + $0x19] sm:$0x3f]
        %v902 = vsel %vm464, %v899, 0
        %v905 = vsel %vm464, %v900, 0
        %907 = vmatprep.subr.mxu0 %v795
        %908 = vmatpush1.msra.mxu0 %v794
        %909 = vmatprep.subr.mxu0 %v797
        %910 = vmatpush1.msra.mxu0 %v796
        %911 = vmatprep.subr.mxu0 %v799
        %912 = vmatpush1.msra.mxu0 %v798
        %913 = vmatprep.subr.mxu0 %v801
        %914 = vmatpush1.msra.mxu0 %v800
        %915 = vmatprep.subr.mxu0 %v803
        %916 = vmatpush1.msra.mxu0 %v802
        %917 = vmatprep.subr.mxu0 %v805
        %918 = vmatpush1.msra.mxu0 %v804
        %919 = vmatprep.subr.mxu0 %v807
        %920 = vmatpush1.msra.mxu0 %v806
        %921 = vmatprep.subr.mxu0 %v809
        %922 = vmatpush1.msra.mxu0 %v808
        %923 = vmatprep.subr.mxu0 %v811
        %924 = vmatpush1.msra.mxu0 %v810
        %925 = vmatprep.subr.mxu0 %v813
        %926 = vmatpush1.msra.mxu0 %v812
        %927 = vmatprep.subr.mxu0 %v815
        %928 = vmatpush1.msra.mxu0 %v814
        %929 = vmatprep.subr.mxu0 %v817
        %930 = vmatpush1.msra.mxu0 %v816
        %931 = vmatprep.subr.mxu0 0.0
        %932 = vmatpush1.msra.mxu0 0.0
        %933 = vmatprep.subr.mxu0 0.0
        %934 = vmatpush1.msra.mxu0 0.0
        %935 = vmatprep.subr.mxu0 0.0
        %936 = vmatpush1.msra.mxu0 0.0
        %937 = vmatprep.subr.mxu0 0.0
        %938 = vmatpush1.msra.mxu0 0.0
        %939 = vmatprep.subr.mxu0 0.0
        %940 = vmatpush1.msra.mxu0 0.0
        %941 = vmatprep.subr.mxu0 0.0
        %942 = vmatpush1.msra.mxu0 0.0
        %943 = vmatprep.subr.mxu0 0.0
        %944 = vmatpush1.msra.mxu0 0.0
        %945 = vmatprep.subr.mxu0 0.0
        %946 = vmatpush1.msra.mxu0 0.0
        %947 = vmatprep.subr.mxu0 0.0
        %948 = vmatpush1.msra.mxu0 0.0
        %949 = vmatprep.subr.mxu0 0.0
        %950 = vmatpush1.msra.mxu0 0.0
        %951 = vmatprep.subr.mxu0 0.0
        %952 = vmatpush1.msra.mxu0 0.0
        %953 = vmatprep.subr.mxu0 0.0
        %954 = vmatpush1.msra.mxu0 0.0
        %955 = vmatprep.subr.mxu0 0.0
        %956 = vmatpush1.msra.mxu0 0.0
        %957 = vmatprep.subr.mxu0 0.0
        %958 = vmatpush1.msra.mxu0 0.0
        %959 = vmatprep.subr.mxu0 0.0
        %960 = vmatpush1.msra.mxu0 0.0
        %961 = vmatprep.subr.mxu0 0.0
        %962 = vmatpush1.msra.mxu0 0.0
        %963 = vmatprep.subr.mxu0 0.0
        %964 = vmatpush1.msra.mxu0 0.0
        %965 = vmatprep.subr.mxu0 0.0
        %966 = vmatpush1.msra.mxu0 0.0
        %967 = vmatprep.subr.mxu0 0.0
        %968 = vmatpush1.msra.mxu0 0.0
        %969 = vmatprep.subr.mxu0 0.0
        %970 = vmatpush1.msra.mxu0 0.0
        %971 = vmatprep.mubr.f32.mxu0 0.0
        %972 = vmatmul.mubr.f32.gmra.mrb[0].mxu0 %v902
        %v973 = vpop.f32.mrb[0].mxu0
        %v974 = vadd.f32 0.0, %v973
        %v975 = vpop.f32.mrb[0].mxu0
        %v976 = vadd.f32 0.0, %v975
        %977 = vmatprep.mubr.f32.mxu0 0.0
        %978 = vmatmul.mubr.f32.gmra.mrb[0].mxu0 %v905
        %v979 = vpop.f32.mrb[0].mxu0
        %v980 = vadd.f32 0.0, %v979
        %v981 = vpop.f32.mrb[0].mxu0
        %v982 = vadd.f32 0.0, %v981
        %983 = vdwg.mxu0
        %v984 = vadd.f32 %v783, %v974
        %v985 = vadd.f32 %v785, %v976
        %v986 = vadd.f32 %v789, %v980
        %v987 = vadd.f32 %v791, %v982
        %s988 = scalar_lea.vmem %s1, 576
        %v989 = vld [vmem:[%s988] sm:$0xff]
        %v990 = vld [vmem:[%s988 + $0x8] sm:$0xff]
        %v991 = vld [vmem:[%s988 + $0x10] sm:$0xff]
        %v992 = vld [vmem:[%s988 + $0x18] sm:$0xff]
        %v993 = vld [vmem:[%s988 + $0x20] sm:$0xff]
        %v994 = vld [vmem:[%s988 + $0x28] sm:$0xff]
        %v995 = vld [vmem:[%s988 + $0x30] sm:$0xff]
        %v996 = vld [vmem:[%s988 + $0x38] sm:$0xff]
        %v997 = vld [vmem:[%s988 + $0x40] sm:$0xff]
        %v998 = vld [vmem:[%s988 + $0x48] sm:$0xff]
        %v999 = vld [vmem:[%s988 + $0x50] sm:$0xff]
        %v1000 = vld [vmem:[%s988 + $0x58] sm:$0xff]
        %v1001 = vld [vmem:[%s988 + $0x60] sm:$0xff]
        %v1002 = vld [vmem:[%s988 + $0x68] sm:$0xff]
        %v1003 = vld [vmem:[%s988 + $0x70] sm:$0xff]
        %v1004 = vld [vmem:[%s988 + $0x78] sm:$0xff]
        %v1005 = vld [vmem:[%s988 + $0x80] sm:$0xff]
        %v1006 = vld [vmem:[%s988 + $0x88] sm:$0xff]
        %v1007 = vld [vmem:[%s988 + $0x90] sm:$0xff]
        %v1008 = vld [vmem:[%s988 + $0x98] sm:$0xff]
        %v1009 = vld [vmem:[%s988 + $0xa0] sm:$0xff]
        %v1010 = vld [vmem:[%s988 + $0xa8] sm:$0xff]
        %v1011 = vld [vmem:[%s988 + $0xb0] sm:$0xff]
        %v1012 = vld [vmem:[%s988 + $0xb8] sm:$0xff]
        %1013 = vmatprep.subr.mxu0 %v990
        %1014 = vmatpush1.msra.mxu0 %v989
        %1015 = vmatprep.subr.mxu0 %v992
        %1016 = vmatpush1.msra.mxu0 %v991
        %1017 = vmatprep.subr.mxu0 %v994
        %1018 = vmatpush1.msra.mxu0 %v993
        %1019 = vmatprep.subr.mxu0 %v996
        %1020 = vmatpush1.msra.mxu0 %v995
        %1021 = vmatprep.subr.mxu0 %v998
        %1022 = vmatpush1.msra.mxu0 %v997
        %1023 = vmatprep.subr.mxu0 %v1000
        %1024 = vmatpush1.msra.mxu0 %v999
        %1025 = vmatprep.subr.mxu0 %v1002
        %1026 = vmatpush1.msra.mxu0 %v1001
        %1027 = vmatprep.subr.mxu0 %v1004
        %1028 = vmatpush1.msra.mxu0 %v1003
        %1029 = vmatprep.subr.mxu0 %v1006
        %1030 = vmatpush1.msra.mxu0 %v1005
        %1031 = vmatprep.subr.mxu0 %v1008
        %1032 = vmatpush1.msra.mxu0 %v1007
        %1033 = vmatprep.subr.mxu0 %v1010
        %1034 = vmatpush1.msra.mxu0 %v1009
        %1035 = vmatprep.subr.mxu0 %v1012
        %1036 = vmatpush1.msra.mxu0 %v1011
        %1037 = vmatprep.subr.mxu0 0.0
        %1038 = vmatpush1.msra.mxu0 0.0
        %1039 = vmatprep.subr.mxu0 0.0
        %1040 = vmatpush1.msra.mxu0 0.0
        %1041 = vmatprep.subr.mxu0 0.0
        %1042 = vmatpush1.msra.mxu0 0.0
        %1043 = vmatprep.subr.mxu0 0.0
        %1044 = vmatpush1.msra.mxu0 0.0
        %1045 = vmatprep.subr.mxu0 0.0
        %1046 = vmatpush1.msra.mxu0 0.0
        %1047 = vmatprep.subr.mxu0 0.0
        %1048 = vmatpush1.msra.mxu0 0.0
        %1049 = vmatprep.subr.mxu0 0.0
        %1050 = vmatpush1.msra.mxu0 0.0
        %1051 = vmatprep.subr.mxu0 0.0
        %1052 = vmatpush1.msra.mxu0 0.0
        %1053 = vmatprep.subr.mxu0 0.0
        %1054 = vmatpush1.msra.mxu0 0.0
        %1055 = vmatprep.subr.mxu0 0.0
        %1056 = vmatpush1.msra.mxu0 0.0
        %1057 = vmatprep.subr.mxu0 0.0
        %1058 = vmatpush1.msra.mxu0 0.0
        %1059 = vmatprep.subr.mxu0 0.0
        %1060 = vmatpush1.msra.mxu0 0.0
        %1061 = vmatprep.subr.mxu0 0.0
        %1062 = vmatpush1.msra.mxu0 0.0
        %1063 = vmatprep.subr.mxu0 0.0
        %1064 = vmatpush1.msra.mxu0 0.0
        %1065 = vmatprep.subr.mxu0 0.0
        %1066 = vmatpush1.msra.mxu0 0.0
        %1067 = vmatprep.subr.mxu0 0.0
        %1068 = vmatpush1.msra.mxu0 0.0
        %1069 = vmatprep.subr.mxu0 0.0
        %1070 = vmatpush1.msra.mxu0 0.0
        %1071 = vmatprep.subr.mxu0 0.0
        %1072 = vmatpush1.msra.mxu0 0.0
        %1073 = vmatprep.subr.mxu0 0.0
        %1074 = vmatpush1.msra.mxu0 0.0
        %1075 = vmatprep.subr.mxu0 0.0
        %1076 = vmatpush1.msra.mxu0 0.0
        %1077 = vmatprep.mubr.f32.mxu0 0.0
        %1078 = vmatmul.mubr.f32.gmra.mrb[0].mxu0 %v902
        %v1079 = vpop.f32.mrb[0].mxu0
        %v1080 = vadd.f32 0.0, %v1079
        %v1081 = vpop.f32.mrb[0].mxu0
        %v1082 = vadd.f32 0.0, %v1081
        %1083 = vmatprep.mubr.f32.mxu0 0.0
        %1084 = vmatmul.mubr.f32.gmra.mrb[0].mxu0 %v905
        %v1085 = vpop.f32.mrb[0].mxu0
        %v1086 = vadd.f32 0.0, %v1085
        %v1087 = vpop.f32.mrb[0].mxu0
        %v1088 = vadd.f32 0.0, %v1087
        %1089 = vdwg.mxu0
        %v1090 = vadd.f32 %v895, %v1080
        %v1091 = vadd.f32 %v896, %v1082
        %v1092 = vadd.f32 %v897, %v1086
        %v1093 = vadd.f32 %v898, %v1088
        %v1094 = vld [vmem:[%s410 + $0x2] sm:$0xff]
        %v1095 = vld [vmem:[%s410 + $0xa] sm:$0x3f]
        %v1097 = vsel %vm464, %v1094, 0
        %v1100 = vsel %vm464, %v1095, 0
        %1102 = vmatprep.subr.mxu0 %v990
        %1103 = vmatpush1.msra.mxu0 %v989
        %1104 = vmatprep.subr.mxu0 %v992
        %1105 = vmatpush1.msra.mxu0 %v991
        %1106 = vmatprep.subr.mxu0 %v994
        %1107 = vmatpush1.msra.mxu0 %v993
        %1108 = vmatprep.subr.mxu0 %v996
        %1109 = vmatpush1.msra.mxu0 %v995
        %1110 = vmatprep.subr.mxu0 %v998
        %1111 = vmatpush1.msra.mxu0 %v997
        %1112 = vmatprep.subr.mxu0 %v1000
        %1113 = vmatpush1.msra.mxu0 %v999
        %1114 = vmatprep.subr.mxu0 %v1002
        %1115 = vmatpush1.msra.mxu0 %v1001
        %1116 = vmatprep.subr.mxu0 %v1004
        %1117 = vmatpush1.msra.mxu0 %v1003
        %1118 = vmatprep.subr.mxu0 %v1006
        %1119 = vmatpush1.msra.mxu0 %v1005
        %1120 = vmatprep.subr.mxu0 %v1008
        %1121 = vmatpush1.msra.mxu0 %v1007
        %1122 = vmatprep.subr.mxu0 %v1010
        %1123 = vmatpush1.msra.mxu0 %v1009
        %1124 = vmatprep.subr.mxu0 %v1012
        %1125 = vmatpush1.msra.mxu0 %v1011
        %1126 = vmatprep.subr.mxu0 0.0
        %1127 = vmatpush1.msra.mxu0 0.0
        %1128 = vmatprep.subr.mxu0 0.0
        %1129 = vmatpush1.msra.mxu0 0.0
        %1130 = vmatprep.subr.mxu0 0.0
        %1131 = vmatpush1.msra.mxu0 0.0
        %1132 = vmatprep.subr.mxu0 0.0
        %1133 = vmatpush1.msra.mxu0 0.0
        %1134 = vmatprep.subr.mxu0 0.0
        %1135 = vmatpush1.msra.mxu0 0.0
        %1136 = vmatprep.subr.mxu0 0.0
        %1137 = vmatpush1.msra.mxu0 0.0
        %1138 = vmatprep.subr.mxu0 0.0
        %1139 = vmatpush1.msra.mxu0 0.0
        %1140 = vmatprep.subr.mxu0 0.0
        %1141 = vmatpush1.msra.mxu0 0.0
        %1142 = vmatprep.subr.mxu0 0.0
        %1143 = vmatpush1.msra.mxu0 0.0
        %1144 = vmatprep.subr.mxu0 0.0
        %1145 = vmatpush1.msra.mxu0 0.0
        %1146 = vmatprep.subr.mxu0 0.0
        %1147 = vmatpush1.msra.mxu0 0.0
        %1148 = vmatprep.subr.mxu0 0.0
        %1149 = vmatpush1.msra.mxu0 0.0
        %1150 = vmatprep.subr.mxu0 0.0
        %1151 = vmatpush1.msra.mxu0 0.0
        %1152 = vmatprep.subr.mxu0 0.0
        %1153 = vmatpush1.msra.mxu0 0.0
        %1154 = vmatprep.subr.mxu0 0.0
        %1155 = vmatpush1.msra.mxu0 0.0
        %1156 = vmatprep.subr.mxu0 0.0
        %1157 = vmatpush1.msra.mxu0 0.0
        %1158 = vmatprep.subr.mxu0 0.0
        %1159 = vmatpush1.msra.mxu0 0.0
        %1160 = vmatprep.subr.mxu0 0.0
        %1161 = vmatpush1.msra.mxu0 0.0
        %1162 = vmatprep.subr.mxu0 0.0
        %1163 = vmatpush1.msra.mxu0 0.0
        %1164 = vmatprep.subr.mxu0 0.0
        %1165 = vmatpush1.msra.mxu0 0.0
        %1166 = vmatprep.mubr.f32.mxu0 0.0
        %1167 = vmatmul.mubr.f32.gmra.mrb[0].mxu0 %v1097
        %v1168 = vpop.f32.mrb[0].mxu0
        %v1169 = vadd.f32 0.0, %v1168
        %v1170 = vpop.f32.mrb[0].mxu0
        %v1171 = vadd.f32 0.0, %v1170
        %1172 = vmatprep.mubr.f32.mxu0 0.0
        %1173 = vmatmul.mubr.f32.gmra.mrb[0].mxu0 %v1100
        %v1174 = vpop.f32.mrb[0].mxu0
        %v1175 = vadd.f32 0.0, %v1174
        %v1176 = vpop.f32.mrb[0].mxu0
        %v1177 = vadd.f32 0.0, %v1176
        %1178 = vdwg.mxu0
        %v1179 = vadd.f32 %v984, %v1169
        %v1180 = vadd.f32 %v985, %v1171
        %v1181 = vadd.f32 %v986, %v1175
        %v1182 = vadd.f32 %v987, %v1177
        %s1183 = scalar_lea.vmem %s1, 768
        %v1184 = vld [vmem:[%s1183] sm:$0xff]
        %v1185 = vld [vmem:[%s1183 + $0x8] sm:$0xff]
        %v1186 = vld [vmem:[%s1183 + $0x10] sm:$0xff]
        %v1187 = vld [vmem:[%s1183 + $0x18] sm:$0xff]
        %v1188 = vld [vmem:[%s1183 + $0x20] sm:$0xff]
        %v1189 = vld [vmem:[%s1183 + $0x28] sm:$0xff]
        %v1190 = vld [vmem:[%s1183 + $0x30] sm:$0xff]
        %v1191 = vld [vmem:[%s1183 + $0x38] sm:$0xff]
        %v1192 = vld [vmem:[%s1183 + $0x40] sm:$0xff]
        %v1193 = vld [vmem:[%s1183 + $0x48] sm:$0xff]
        %v1194 = vld [vmem:[%s1183 + $0x50] sm:$0xff]
        %v1195 = vld [vmem:[%s1183 + $0x58] sm:$0xff]
        %v1196 = vld [vmem:[%s1183 + $0x60] sm:$0xff]
        %v1197 = vld [vmem:[%s1183 + $0x68] sm:$0xff]
        %v1198 = vld [vmem:[%s1183 + $0x70] sm:$0xff]
        %v1199 = vld [vmem:[%s1183 + $0x78] sm:$0xff]
        %v1200 = vld [vmem:[%s1183 + $0x80] sm:$0xff]
        %v1201 = vld [vmem:[%s1183 + $0x88] sm:$0xff]
        %v1202 = vld [vmem:[%s1183 + $0x90] sm:$0xff]
        %v1203 = vld [vmem:[%s1183 + $0x98] sm:$0xff]
        %v1204 = vld [vmem:[%s1183 + $0xa0] sm:$0xff]
        %v1205 = vld [vmem:[%s1183 + $0xa8] sm:$0xff]
        %v1206 = vld [vmem:[%s1183 + $0xb0] sm:$0xff]
        %v1207 = vld [vmem:[%s1183 + $0xb8] sm:$0xff]
        %1208 = vmatprep.subr.mxu0 %v1185
        %1209 = vmatpush1.msra.mxu0 %v1184
        %1210 = vmatprep.subr.mxu0 %v1187
        %1211 = vmatpush1.msra.mxu0 %v1186
        %1212 = vmatprep.subr.mxu0 %v1189
        %1213 = vmatpush1.msra.mxu0 %v1188
        %1214 = vmatprep.subr.mxu0 %v1191
        %1215 = vmatpush1.msra.mxu0 %v1190
        %1216 = vmatprep.subr.mxu0 %v1193
        %1217 = vmatpush1.msra.mxu0 %v1192
        %1218 = vmatprep.subr.mxu0 %v1195
        %1219 = vmatpush1.msra.mxu0 %v1194
        %1220 = vmatprep.subr.mxu0 %v1197
        %1221 = vmatpush1.msra.mxu0 %v1196
        %1222 = vmatprep.subr.mxu0 %v1199
        %1223 = vmatpush1.msra.mxu0 %v1198
        %1224 = vmatprep.subr.mxu0 %v1201
        %1225 = vmatpush1.msra.mxu0 %v1200
        %1226 = vmatprep.subr.mxu0 %v1203
        %1227 = vmatpush1.msra.mxu0 %v1202
        %1228 = vmatprep.subr.mxu0 %v1205
        %1229 = vmatpush1.msra.mxu0 %v1204
        %1230 = vmatprep.subr.mxu0 %v1207
        %1231 = vmatpush1.msra.mxu0 %v1206
        %1232 = vmatprep.subr.mxu0 0.0
        %1233 = vmatpush1.msra.mxu0 0.0
        %1234 = vmatprep.subr.mxu0 0.0
        %1235 = vmatpush1.msra.mxu0 0.0
        %1236 = vmatprep.subr.mxu0 0.0
        %1237 = vmatpush1.msra.mxu0 0.0
        %1238 = vmatprep.subr.mxu0 0.0
        %1239 = vmatpush1.msra.mxu0 0.0
        %1240 = vmatprep.subr.mxu0 0.0
        %1241 = vmatpush1.msra.mxu0 0.0
        %1242 = vmatprep.subr.mxu0 0.0
        %1243 = vmatpush1.msra.mxu0 0.0
        %1244 = vmatprep.subr.mxu0 0.0
        %1245 = vmatpush1.msra.mxu0 0.0
        %1246 = vmatprep.subr.mxu0 0.0
        %1247 = vmatpush1.msra.mxu0 0.0
        %1248 = vmatprep.subr.mxu0 0.0
        %1249 = vmatpush1.msra.mxu0 0.0
        %1250 = vmatprep.subr.mxu0 0.0
        %1251 = vmatpush1.msra.mxu0 0.0
        %1252 = vmatprep.subr.mxu0 0.0
        %1253 = vmatpush1.msra.mxu0 0.0
        %1254 = vmatprep.subr.mxu0 0.0
        %1255 = vmatpush1.msra.mxu0 0.0
        %1256 = vmatprep.subr.mxu0 0.0
        %1257 = vmatpush1.msra.mxu0 0.0
        %1258 = vmatprep.subr.mxu0 0.0
        %1259 = vmatpush1.msra.mxu0 0.0
        %1260 = vmatprep.subr.mxu0 0.0
        %1261 = vmatpush1.msra.mxu0 0.0
        %1262 = vmatprep.subr.mxu0 0.0
        %1263 = vmatpush1.msra.mxu0 0.0
        %1264 = vmatprep.subr.mxu0 0.0
        %1265 = vmatpush1.msra.mxu0 0.0
        %1266 = vmatprep.subr.mxu0 0.0
        %1267 = vmatpush1.msra.mxu0 0.0
        %1268 = vmatprep.subr.mxu0 0.0
        %1269 = vmatpush1.msra.mxu0 0.0
        %1270 = vmatprep.subr.mxu0 0.0
        %1271 = vmatpush1.msra.mxu0 0.0
        %1272 = vmatprep.mubr.f32.mxu0 0.0
        %1273 = vmatmul.mubr.f32.gmra.mrb[0].mxu0 %v1097
        %v1274 = vpop.f32.mrb[0].mxu0
        %v1275 = vadd.f32 0.0, %v1274
        %v1276 = vpop.f32.mrb[0].mxu0
        %v1277 = vadd.f32 0.0, %v1276
        %1278 = vmatprep.mubr.f32.mxu0 0.0
        %1279 = vmatmul.mubr.f32.gmra.mrb[0].mxu0 %v1100
        %v1280 = vpop.f32.mrb[0].mxu0
        %v1281 = vadd.f32 0.0, %v1280
        %v1282 = vpop.f32.mrb[0].mxu0
        %v1283 = vadd.f32 0.0, %v1282
        %1284 = vdwg.mxu0
        %v1285 = vadd.f32 %v1090, %v1275
        %v1286 = vadd.f32 %v1091, %v1277
        %v1287 = vadd.f32 %v1092, %v1281
        %v1288 = vadd.f32 %v1093, %v1283
        %v1289 = vld [vmem:[%s410 + $0x12] sm:$0xff]
        %v1290 = vld [vmem:[%s410 + $0x1a] sm:$0x3f]
        %v1292 = vsel %vm464, %v1289, 0
        %v1295 = vsel %vm464, %v1290, 0
        %1297 = vmatprep.subr.mxu0 %v1185
        %1298 = vmatpush1.msra.mxu0 %v1184
        %1299 = vmatprep.subr.mxu0 %v1187
        %1300 = vmatpush1.msra.mxu0 %v1186
        %1301 = vmatprep.subr.mxu0 %v1189
        %1302 = vmatpush1.msra.mxu0 %v1188
        %1303 = vmatprep.subr.mxu0 %v1191
        %1304 = vmatpush1.msra.mxu0 %v1190
        %1305 = vmatprep.subr.mxu0 %v1193
        %1306 = vmatpush1.msra.mxu0 %v1192
        %1307 = vmatprep.subr.mxu0 %v1195
        %1308 = vmatpush1.msra.mxu0 %v1194
        %1309 = vmatprep.subr.mxu0 %v1197
        %1310 = vmatpush1.msra.mxu0 %v1196
        %1311 = vmatprep.subr.mxu0 %v1199
        %1312 = vmatpush1.msra.mxu0 %v1198
        %1313 = vmatprep.subr.mxu0 %v1201
        %1314 = vmatpush1.msra.mxu0 %v1200
        %1315 = vmatprep.subr.mxu0 %v1203
        %1316 = vmatpush1.msra.mxu0 %v1202
        %1317 = vmatprep.subr.mxu0 %v1205
        %1318 = vmatpush1.msra.mxu0 %v1204
        %1319 = vmatprep.subr.mxu0 %v1207
        %1320 = vmatpush1.msra.mxu0 %v1206
        %1321 = vmatprep.subr.mxu0 0.0
        %1322 = vmatpush1.msra.mxu0 0.0
        %1323 = vmatprep.subr.mxu0 0.0
        %1324 = vmatpush1.msra.mxu0 0.0
        %1325 = vmatprep.subr.mxu0 0.0
        %1326 = vmatpush1.msra.mxu0 0.0
        %1327 = vmatprep.subr.mxu0 0.0
        %1328 = vmatpush1.msra.mxu0 0.0
        %1329 = vmatprep.subr.mxu0 0.0
        %1330 = vmatpush1.msra.mxu0 0.0
        %1331 = vmatprep.subr.mxu0 0.0
        %1332 = vmatpush1.msra.mxu0 0.0
        %1333 = vmatprep.subr.mxu0 0.0
        %1334 = vmatpush1.msra.mxu0 0.0
        %1335 = vmatprep.subr.mxu0 0.0
        %1336 = vmatpush1.msra.mxu0 0.0
        %1337 = vmatprep.subr.mxu0 0.0
        %1338 = vmatpush1.msra.mxu0 0.0
        %1339 = vmatprep.subr.mxu0 0.0
        %1340 = vmatpush1.msra.mxu0 0.0
        %1341 = vmatprep.subr.mxu0 0.0
        %1342 = vmatpush1.msra.mxu0 0.0
        %1343 = vmatprep.subr.mxu0 0.0
        %1344 = vmatpush1.msra.mxu0 0.0
        %1345 = vmatprep.subr.mxu0 0.0
        %1346 = vmatpush1.msra.mxu0 0.0
        %1347 = vmatprep.subr.mxu0 0.0
        %1348 = vmatpush1.msra.mxu0 0.0
        %1349 = vmatprep.subr.mxu0 0.0
        %1350 = vmatpush1.msra.mxu0 0.0
        %1351 = vmatprep.subr.mxu0 0.0
        %1352 = vmatpush1.msra.mxu0 0.0
        %1353 = vmatprep.subr.mxu0 0.0
        %1354 = vmatpush1.msra.mxu0 0.0
        %1355 = vmatprep.subr.mxu0 0.0
        %1356 = vmatpush1.msra.mxu0 0.0
        %1357 = vmatprep.subr.mxu0 0.0
        %1358 = vmatpush1.msra.mxu0 0.0
        %1359 = vmatprep.subr.mxu0 0.0
        %1360 = vmatpush1.msra.mxu0 0.0
        %1361 = vmatprep.mubr.f32.mxu0 0.0
        %1362 = vmatmul.mubr.f32.gmra.mrb[0].mxu0 %v1292
        %v1363 = vpop.f32.mrb[0].mxu0
        %v1364 = vadd.f32 0.0, %v1363
        %v1365 = vpop.f32.mrb[0].mxu0
        %v1366 = vadd.f32 0.0, %v1365
        %1367 = vmatprep.mubr.f32.mxu0 0.0
        %1368 = vmatmul.mubr.f32.gmra.mrb[0].mxu0 %v1295
        %v1369 = vpop.f32.mrb[0].mxu0
        %v1370 = vadd.f32 0.0, %v1369
        %v1371 = vpop.f32.mrb[0].mxu0
        %v1372 = vadd.f32 0.0, %v1371
        %1373 = vdwg.mxu0
        %v1374 = vadd.f32 %v1179, %v1364
        %v1375 = vadd.f32 %v1180, %v1366
        %v1376 = vadd.f32 %v1181, %v1370
        %v1377 = vadd.f32 %v1182, %v1372
        %v1378 = vld [vmem:[%s2] sm:$0x3]
        %v1380 = vlaneseq
        %v1381 = vshrl.u32 %v1380, 7
        %v1382 = vsub.s32 0, %v1381
        %v1383 = vrot.slane %v1378, %v1382
        %v1384 = vlaneseq
        %v1385 = vshrl.u32 %v1384, 7
        %v1386 = vsub.s32 1, %v1385
        %v1387 = vrot.slane %v1378, %v1386
        %v1390 = vadd.f32 %v1285, %v1383
        %v1391 = vadd.f32 %v1286, %v1387
        %v1392 = vadd.f32 %v1287, %v1383
        %v1393 = vadd.f32 %v1288, %v1387
        %v1394 = vmax.f32 %v1390, 0.0
        %v1395 = vmax.f32 %v1391, 0.0
        %v1396 = vmax.f32 %v1392, 0.0
        %v1397 = vmax.f32 %v1393, 0.0
        %v1398 = vadd.f32 %v1374, %v1383
        %v1399 = vadd.f32 %v1375, %v1387
        %v1400 = vadd.f32 %v1376, %v1383
        %v1401 = vadd.f32 %v1377, %v1387
        %v1402 = vmax.f32 %v1398, 0.0
        %v1403 = vmax.f32 %v1399, 0.0
        %v1404 = vmax.f32 %v1400, 0.0
        %v1405 = vmax.f32 %v1401, 0.0
        %v1406 = vmax.f32 %v1394, %v1402
        %v1407 = vmax.f32 %v1395, %v1403
        %v1408 = vmax.f32 %v1396, %v1404
        %v1409 = vmax.f32 %v1397, %v1405
        %v1410 = vmax.f32 %v1406, %v1407
        %v1411 = vmax.f32 %v1408, %v1409
        %v1412 = vld [vmem:[%s3] sm:$0xff]
        %v1413 = vld [vmem:[%s3 + $0x8] sm:$0x3f]
        %vm1414 = vcmask 113664
        %v1416 = vsel %vm1414, %v1412, 0
        %v1419 = vsel %vm1414, %v1413, 0
        %vm1421 = vcmask 1045504
        %v1423 = vsel %vm1421, %v1411, 0
        %1425 = vmatprep.subr.mxu0 0.0
        %1426 = vmatpush1.msra.mxu0 %v1410
        %1427 = vmatprep.subr.mxu0 0.0
        %1428 = vmatpush1.msra.mxu0 %v1423
        %1429 = vmatprep.subr.mxu0 0.0
        %1430 = vmatpush1.msra.mxu0 0.0
        %1431 = vmatprep.subr.mxu0 0.0
        %1432 = vmatpush1.msra.mxu0 0.0
        %1433 = vmatprep.subr.mxu0 0.0
        %1434 = vmatpush1.msra.mxu0 0.0
        %1435 = vmatprep.subr.mxu0 0.0
        %1436 = vmatpush1.msra.mxu0 0.0
        %1437 = vmatprep.subr.mxu0 0.0
        %1438 = vmatpush1.msra.mxu0 0.0
        %1439 = vmatprep.subr.mxu0 0.0
        %1440 = vmatpush1.msra.mxu0 0.0
        %1441 = vmatprep.subr.mxu0 0.0
        %1442 = vmatpush1.msra.mxu0 0.0
        %1443 = vmatprep.subr.mxu0 0.0
        %1444 = vmatpush1.msra.mxu0 0.0
        %1445 = vmatprep.subr.mxu0 0.0
        %1446 = vmatpush1.msra.mxu0 0.0
        %1447 = vmatprep.subr.mxu0 0.0
        %1448 = vmatpush1.msra.mxu0 0.0
        %1449 = vmatprep.subr.mxu0 0.0
        %1450 = vmatpush1.msra.mxu0 0.0
        %1451 = vmatprep.subr.mxu0 0.0
        %1452 = vmatpush1.msra.mxu0 0.0
        %1453 = vmatprep.subr.mxu0 0.0
        %1454 = vmatpush1.msra.mxu0 0.0
        %1455 = vmatprep.subr.mxu0 0.0
        %1456 = vmatpush1.msra.mxu0 0.0
        %1457 = vmatprep.subr.mxu0 0.0
        %1458 = vmatpush1.msra.mxu0 0.0
        %1459 = vmatprep.subr.mxu0 0.0
        %1460 = vmatpush1.msra.mxu0 0.0
        %1461 = vmatprep.subr.mxu0 0.0
        %1462 = vmatpush1.msra.mxu0 0.0
        %1463 = vmatprep.subr.mxu0 0.0
        %1464 = vmatpush1.msra.mxu0 0.0
        %1465 = vmatprep.subr.mxu0 0.0
        %1466 = vmatpush1.msra.mxu0 0.0
        %1467 = vmatprep.subr.mxu0 0.0
        %1468 = vmatpush1.msra.mxu0 0.0
        %1469 = vmatprep.subr.mxu0 0.0
        %1470 = vmatpush1.msra.mxu0 0.0
        %1471 = vmatprep.subr.mxu0 0.0
        %1472 = vmatpush1.msra.mxu0 0.0
        %1473 = vmatprep.subr.mxu0 0.0
        %1474 = vmatpush1.msra.mxu0 0.0
        %1475 = vmatprep.subr.mxu0 0.0
        %1476 = vmatpush1.msra.mxu0 0.0
        %1477 = vmatprep.subr.mxu0 0.0
        %1478 = vmatpush1.msra.mxu0 0.0
        %1479 = vmatprep.subr.mxu0 0.0
        %1480 = vmatpush1.msra.mxu0 0.0
        %1481 = vmatprep.subr.mxu0 0.0
        %1482 = vmatpush1.msra.mxu0 0.0
        %1483 = vmatprep.subr.mxu0 0.0
        %1484 = vmatpush1.msra.mxu0 0.0
        %1485 = vmatprep.subr.mxu0 0.0
        %1486 = vmatpush1.msra.mxu0 0.0
        %1487 = vmatprep.subr.mxu0 0.0
        %1488 = vmatpush1.msra.mxu0 0.0
        %1489 = vmatprep.mubr.f32.mxu0 0.0
        %1490 = vmatmul.mubr.f32.gmra.mrb[0].mxu0 %v1416
        %v1491 = vpop.f32.mrb[0].mxu0
        %v1492 = vadd.f32 0.0, %v1491
        %v1493 = vpop.f32.mrb[0].mxu0
        %1494 = vmatprep.mubr.f32.mxu0 0.0
        %1495 = vmatmul.mubr.f32.gmra.mrb[0].mxu0 %v1419
        %v1496 = vpop.f32.mrb[0].mxu0
        %v1497 = vadd.f32 0.0, %v1496
        %v1498 = vpop.f32.mrb[0].mxu0
        %1499 = vdwg.mxu0
        %1500 = vst [vmem:[#allocation2] sm:$0xff] %v1492
        %1501 = vst [vmem:[#allocation2 + $0x8] sm:$0x3f] %v1497
        %v1502 = vld [vmem:[%s4] sm:$0xff]
        %v1503 = vld [vmem:[%s4 + $0x8] sm:$0xff]
        %v1504 = vld [vmem:[%s4 + $0x10] sm:$0xff]
        %v1505 = vld [vmem:[%s4 + $0x18] sm:$0xff]
        %v1506 = vld [vmem:[%s4 + $0x20] sm:$0xff]
        %v1507 = vld [vmem:[%s4 + $0x28] sm:$0xff]
        %v1508 = vld [vmem:[%s4 + $0x30] sm:$0xff]
        %v1509 = vld [vmem:[%s4 + $0x38] sm:$0xff]
        %v1510 = vld [vmem:[%s4 + $0x40] sm:$0xff]
        %v1511 = vld [vmem:[%s4 + $0x48] sm:$0xff]
        %v1512 = vld [vmem:[%s4 + $0x50] sm:$0xff]
        %v1513 = vld [vmem:[%s4 + $0x58] sm:$0xff]
        %v1514 = vld [vmem:[%s4 + $0x60] sm:$0xff]
        %v1515 = vld [vmem:[%s4 + $0x68] sm:$0xff]
        %v1516 = vld [vmem:[%s4 + $0x70] sm:$0xff]
        %v1517 = vld [vmem:[%s4 + $0x78] sm:$0xff]
        %v1518 = vld [vmem:[%s4 + $0x80] sm:$0xff]
        %v1519 = vld [vmem:[%s4 + $0x88] sm:$0xff]
        %v1520 = vld [vmem:[%s4 + $0x90] sm:$0xff]
        %v1521 = vld [vmem:[%s4 + $0x98] sm:$0xff]
        %v1522 = vld [vmem:[%s4 + $0xa0] sm:$0xff]
        %v1523 = vld [vmem:[%s4 + $0xa8] sm:$0xff]
        %v1524 = vld [vmem:[%s4 + $0xb0] sm:$0xff]
        %v1525 = vld [vmem:[%s4 + $0xb8] sm:$0xff]
        %v1526 = vld [vmem:[%s4 + $0xc0] sm:$0xff]
        %v1527 = vld [vmem:[%s4 + $0xc8] sm:$0xff]
        %v1528 = vld [vmem:[%s4 + $0xd0] sm:$0xff]
        %v1529 = vld [vmem:[%s4 + $0xd8] sm:$0xff]
        %v1530 = vld [vmem:[%s4 + $0xe0] sm:$0xff]
        %v1531 = vld [vmem:[%s4 + $0xe8] sm:$0xff]
        %v1532 = vld [vmem:[%s4 + $0xf0] sm:$0xff]
        %v1533 = vld [vmem:[%s4 + $0xf8] sm:$0xff]
        %v1534 = vld [vmem:[#allocation2] sm:$0x1f]
        %v1535 = vld [vmem:[#allocation2 + $0x7] sm:$0x1f]
        %s1536 = scalar_lea.vmem %s4, 256
        %v1537 = vld [vmem:[%s1536] sm:$0xff]
        %v1538 = vld [vmem:[%s1536 + $0x8] sm:$0xff]
        %v1539 = vld [vmem:[%s1536 + $0x10] sm:$0xff]
        %v1540 = vld [vmem:[%s1536 + $0x18] sm:$0xff]
        %v1541 = vld [vmem:[%s1536 + $0x20] sm:$0xff]
        %v1542 = vld [vmem:[%s1536 + $0x28] sm:$0xff]
        %v1543 = vld [vmem:[%s1536 + $0x30] sm:$0xff]
        %v1544 = vld [vmem:[%s1536 + $0x38] sm:$0xff]
        %v1545 = vld [vmem:[%s1536 + $0x40] sm:$0xff]
        %v1546 = vld [vmem:[%s1536 + $0x48] sm:$0xff]
        %v1547 = vld [vmem:[%s1536 + $0x50] sm:$0xff]
        %v1548 = vld [vmem:[%s1536 + $0x58] sm:$0xff]
        %v1549 = vld [vmem:[%s1536 + $0x60] sm:$0xff]
        %v1550 = vld [vmem:[%s1536 + $0x68] sm:$0xff]
        %v1551 = vld [vmem:[%s1536 + $0x70] sm:$0xff]
        %v1552 = vld [vmem:[%s1536 + $0x78] sm:$0xff]
        %v1553 = vld [vmem:[%s1536 + $0x80] sm:$0xff]
        %v1554 = vld [vmem:[%s1536 + $0x88] sm:$0xff]
        %v1555 = vld [vmem:[%s1536 + $0x90] sm:$0xff]
        %v1556 = vld [vmem:[%s1536 + $0x98] sm:$0xff]
        %v1557 = vld [vmem:[%s1536 + $0xa0] sm:$0xff]
        %v1558 = vld [vmem:[%s1536 + $0xa8] sm:$0xff]
        %v1559 = vld [vmem:[%s1536 + $0xb0] sm:$0xff]
        %v1560 = vld [vmem:[%s1536 + $0xb8] sm:$0xff]
        %v1561 = vld [vmem:[%s1536 + $0xc0] sm:$0xff]
        %v1562 = vld [vmem:[%s1536 + $0xc8] sm:$0xff]
        %v1563 = vld [vmem:[%s1536 + $0xd0] sm:$0xff]
        %v1564 = vld [vmem:[%s1536 + $0xd8] sm:$0xff]
        %v1565 = vld [vmem:[%s1536 + $0xe0] sm:$0xff]
        %v1566 = vld [vmem:[%s1536 + $0xe8] sm:$0xff]
        %v1567 = vld [vmem:[%s1536 + $0xf0] sm:$0xff]
        %v1568 = vld [vmem:[%s1536 + $0xf8] sm:$0xff]
        %1569 = vmatprep.subr.mxu0 %v1538
        %1570 = vmatpush1.msra.mxu0 %v1537
        %1571 = vmatprep.subr.mxu0 %v1540
        %1572 = vmatpush1.msra.mxu0 %v1539
        %1573 = vmatprep.subr.mxu0 %v1542
        %1574 = vmatpush1.msra.mxu0 %v1541
        %1575 = vmatprep.subr.mxu0 %v1544
        %1576 = vmatpush1.msra.mxu0 %v1543
        %1577 = vmatprep.subr.mxu0 %v1546
        %1578 = vmatpush1.msra.mxu0 %v1545
        %1579 = vmatprep.subr.mxu0 %v1548
        %1580 = vmatpush1.msra.mxu0 %v1547
        %1581 = vmatprep.subr.mxu0 %v1550
        %1582 = vmatpush1.msra.mxu0 %v1549
        %1583 = vmatprep.subr.mxu0 %v1552
        %1584 = vmatpush1.msra.mxu0 %v1551
        %1585 = vmatprep.subr.mxu0 %v1554
        %1586 = vmatpush1.msra.mxu0 %v1553
        %1587 = vmatprep.subr.mxu0 %v1556
        %1588 = vmatpush1.msra.mxu0 %v1555
        %1589 = vmatprep.subr.mxu0 %v1558
        %1590 = vmatpush1.msra.mxu0 %v1557
        %1591 = vmatprep.subr.mxu0 %v1560
        %1592 = vmatpush1.msra.mxu0 %v1559
        %1593 = vmatprep.subr.mxu0 %v1562
        %1594 = vmatpush1.msra.mxu0 %v1561
        %1595 = vmatprep.subr.mxu0 %v1564
        %1596 = vmatpush1.msra.mxu0 %v1563
        %1597 = vmatprep.subr.mxu0 %v1566
        %1598 = vmatpush1.msra.mxu0 %v1565
        %1599 = vmatprep.subr.mxu0 %v1568
        %1600 = vmatpush1.msra.mxu0 %v1567
        %1601 = vmatprep.subr.mxu0 0.0
        %1602 = vmatpush1.msra.mxu0 0.0
        %1603 = vmatprep.subr.mxu0 0.0
        %1604 = vmatpush1.msra.mxu0 0.0
        %1605 = vmatprep.subr.mxu0 0.0
        %1606 = vmatpush1.msra.mxu0 0.0
        %1607 = vmatprep.subr.mxu0 0.0
        %1608 = vmatpush1.msra.mxu0 0.0
        %1609 = vmatprep.subr.mxu0 0.0
        %1610 = vmatpush1.msra.mxu0 0.0
        %1611 = vmatprep.subr.mxu0 0.0
        %1612 = vmatpush1.msra.mxu0 0.0
        %1613 = vmatprep.subr.mxu0 0.0
        %1614 = vmatpush1.msra.mxu0 0.0
        %1615 = vmatprep.subr.mxu0 0.0
        %1616 = vmatpush1.msra.mxu0 0.0
        %1617 = vmatprep.subr.mxu0 0.0
        %1618 = vmatpush1.msra.mxu0 0.0
        %1619 = vmatprep.subr.mxu0 0.0
        %1620 = vmatpush1.msra.mxu0 0.0
        %1621 = vmatprep.subr.mxu0 0.0
        %1622 = vmatpush1.msra.mxu0 0.0
        %1623 = vmatprep.subr.mxu0 0.0
        %1624 = vmatpush1.msra.mxu0 0.0
        %1625 = vmatprep.subr.mxu0 0.0
        %1626 = vmatpush1.msra.mxu0 0.0
        %1627 = vmatprep.subr.mxu0 0.0
        %1628 = vmatpush1.msra.mxu0 0.0
        %1629 = vmatprep.subr.mxu0 0.0
        %1630 = vmatpush1.msra.mxu0 0.0
        %1631 = vmatprep.subr.mxu0 0.0
        %1632 = vmatpush1.msra.mxu0 0.0
        %1633 = vmatprep.mubr.f32.mxu0 0.0
        %1634 = vmatmul.mubr.f32.gmra.mrb[0].mxu0 %v1535
        %v1635 = vpop.f32.mrb[0].mxu0
        %v1636 = vadd.f32 0.0, %v1635
        %v1637 = vpop.f32.mrb[0].mxu0
        %v1638 = vadd.f32 0.0, %v1637
        %1639 = vdwg.mxu0
        %1640 = vmatprep.subr.mxu0 %v1503
        %1641 = vmatpush1.msra.mxu0 %v1502
        %1642 = vmatprep.subr.mxu0 %v1505
        %1643 = vmatpush1.msra.mxu0 %v1504
        %1644 = vmatprep.subr.mxu0 %v1507
        %1645 = vmatpush1.msra.mxu0 %v1506
        %1646 = vmatprep.subr.mxu0 %v1509
        %1647 = vmatpush1.msra.mxu0 %v1508
        %1648 = vmatprep.subr.mxu0 %v1511
        %1649 = vmatpush1.msra.mxu0 %v1510
        %1650 = vmatprep.subr.mxu0 %v1513
        %1651 = vmatpush1.msra.mxu0 %v1512
        %1652 = vmatprep.subr.mxu0 %v1515
        %1653 = vmatpush1.msra.mxu0 %v1514
        %1654 = vmatprep.subr.mxu0 %v1517
        %1655 = vmatpush1.msra.mxu0 %v1516
        %1656 = vmatprep.subr.mxu0 %v1519
        %1657 = vmatpush1.msra.mxu0 %v1518
        %1658 = vmatprep.subr.mxu0 %v1521
        %1659 = vmatpush1.msra.mxu0 %v1520
        %1660 = vmatprep.subr.mxu0 %v1523
        %1661 = vmatpush1.msra.mxu0 %v1522
        %1662 = vmatprep.subr.mxu0 %v1525
        %1663 = vmatpush1.msra.mxu0 %v1524
        %1664 = vmatprep.subr.mxu0 %v1527
        %1665 = vmatpush1.msra.mxu0 %v1526
        %1666 = vmatprep.subr.mxu0 %v1529
        %1667 = vmatpush1.msra.mxu0 %v1528
        %1668 = vmatprep.subr.mxu0 %v1531
        %1669 = vmatpush1.msra.mxu0 %v1530
        %1670 = vmatprep.subr.mxu0 %v1533
        %1671 = vmatpush1.msra.mxu0 %v1532
        %1672 = vmatprep.subr.mxu0 0.0
        %1673 = vmatpush1.msra.mxu0 0.0
        %1674 = vmatprep.subr.mxu0 0.0
        %1675 = vmatpush1.msra.mxu0 0.0
        %1676 = vmatprep.subr.mxu0 0.0
        %1677 = vmatpush1.msra.mxu0 0.0
        %1678 = vmatprep.subr.mxu0 0.0
        %1679 = vmatpush1.msra.mxu0 0.0
        %1680 = vmatprep.subr.mxu0 0.0
        %1681 = vmatpush1.msra.mxu0 0.0
        %1682 = vmatprep.subr.mxu0 0.0
        %1683 = vmatpush1.msra.mxu0 0.0
        %1684 = vmatprep.subr.mxu0 0.0
        %1685 = vmatpush1.msra.mxu0 0.0
        %1686 = vmatprep.subr.mxu0 0.0
        %1687 = vmatpush1.msra.mxu0 0.0
        %1688 = vmatprep.subr.mxu0 0.0
        %1689 = vmatpush1.msra.mxu0 0.0
        %1690 = vmatprep.subr.mxu0 0.0
        %1691 = vmatpush1.msra.mxu0 0.0
        %1692 = vmatprep.subr.mxu0 0.0
        %1693 = vmatpush1.msra.mxu0 0.0
        %1694 = vmatprep.subr.mxu0 0.0
        %1695 = vmatpush1.msra.mxu0 0.0
        %1696 = vmatprep.subr.mxu0 0.0
        %1697 = vmatpush1.msra.mxu0 0.0
        %1698 = vmatprep.subr.mxu0 0.0
        %1699 = vmatpush1.msra.mxu0 0.0
        %1700 = vmatprep.subr.mxu0 0.0
        %1701 = vmatpush1.msra.mxu0 0.0
        %1702 = vmatprep.subr.mxu0 0.0
        %1703 = vmatpush1.msra.mxu0 0.0
        %1704 = vmatprep.mubr.f32.mxu0 0.0
        %1705 = vmatmul.mubr.f32.gmra.mrb[0].mxu0 %v1534
        %v1706 = vpop.f32.mrb[0].mxu0
        %v1707 = vadd.f32 %v1636, %v1706
        %v1708 = vpop.f32.mrb[0].mxu0
        %v1709 = vadd.f32 %v1638, %v1708
        %1710 = vdwg.mxu0
        %v1711 = vld [vmem:[#allocation2 + $0x1] sm:$0x1f]
        %1712 = vmatprep.subr.mxu0 %v1538
        %1713 = vmatpush1.msra.mxu0 %v1537
        %1714 = vmatprep.subr.mxu0 %v1540
        %1715 = vmatpush1.msra.mxu0 %v1539
        %1716 = vmatprep.subr.mxu0 %v1542
        %1717 = vmatpush1.msra.mxu0 %v1541
        %1718 = vmatprep.subr.mxu0 %v1544
        %1719 = vmatpush1.msra.mxu0 %v1543
        %1720 = vmatprep.subr.mxu0 %v1546
        %1721 = vmatpush1.msra.mxu0 %v1545
        %1722 = vmatprep.subr.mxu0 %v1548
        %1723 = vmatpush1.msra.mxu0 %v1547
        %1724 = vmatprep.subr.mxu0 %v1550
        %1725 = vmatpush1.msra.mxu0 %v1549
        %1726 = vmatprep.subr.mxu0 %v1552
        %1727 = vmatpush1.msra.mxu0 %v1551
        %1728 = vmatprep.subr.mxu0 %v1554
        %1729 = vmatpush1.msra.mxu0 %v1553
        %1730 = vmatprep.subr.mxu0 %v1556
        %1731 = vmatpush1.msra.mxu0 %v1555
        %1732 = vmatprep.subr.mxu0 %v1558
        %1733 = vmatpush1.msra.mxu0 %v1557
        %1734 = vmatprep.subr.mxu0 %v1560
        %1735 = vmatpush1.msra.mxu0 %v1559
        %1736 = vmatprep.subr.mxu0 %v1562
        %1737 = vmatpush1.msra.mxu0 %v1561
        %1738 = vmatprep.subr.mxu0 %v1564
        %1739 = vmatpush1.msra.mxu0 %v1563
        %1740 = vmatprep.subr.mxu0 %v1566
        %1741 = vmatpush1.msra.mxu0 %v1565
        %1742 = vmatprep.subr.mxu0 %v1568
        %1743 = vmatpush1.msra.mxu0 %v1567
        %1744 = vmatprep.subr.mxu0 0.0
        %1745 = vmatpush1.msra.mxu0 0.0
        %1746 = vmatprep.subr.mxu0 0.0
        %1747 = vmatpush1.msra.mxu0 0.0
        %1748 = vmatprep.subr.mxu0 0.0
        %1749 = vmatpush1.msra.mxu0 0.0
        %1750 = vmatprep.subr.mxu0 0.0
        %1751 = vmatpush1.msra.mxu0 0.0
        %1752 = vmatprep.subr.mxu0 0.0
        %1753 = vmatpush1.msra.mxu0 0.0
        %1754 = vmatprep.subr.mxu0 0.0
        %1755 = vmatpush1.msra.mxu0 0.0
        %1756 = vmatprep.subr.mxu0 0.0
        %1757 = vmatpush1.msra.mxu0 0.0
        %1758 = vmatprep.subr.mxu0 0.0
        %1759 = vmatpush1.msra.mxu0 0.0
        %1760 = vmatprep.subr.mxu0 0.0
        %1761 = vmatpush1.msra.mxu0 0.0
        %1762 = vmatprep.subr.mxu0 0.0
        %1763 = vmatpush1.msra.mxu0 0.0
        %1764 = vmatprep.subr.mxu0 0.0
        %1765 = vmatpush1.msra.mxu0 0.0
        %1766 = vmatprep.subr.mxu0 0.0
        %1767 = vmatpush1.msra.mxu0 0.0
        %1768 = vmatprep.subr.mxu0 0.0
        %1769 = vmatpush1.msra.mxu0 0.0
        %1770 = vmatprep.subr.mxu0 0.0
        %1771 = vmatpush1.msra.mxu0 0.0
        %1772 = vmatprep.subr.mxu0 0.0
        %1773 = vmatpush1.msra.mxu0 0.0
        %1774 = vmatprep.subr.mxu0 0.0
        %1775 = vmatpush1.msra.mxu0 0.0
        %1776 = vmatprep.mubr.f32.mxu0 0.0
        %1777 = vmatmul.mubr.f32.gmra.mrb[0].mxu0 %v1711
        %v1778 = vpop.f32.mrb[0].mxu0
        %v1779 = vadd.f32 0.0, %v1778
        %v1780 = vpop.f32.mrb[0].mxu0
        %v1781 = vadd.f32 0.0, %v1780
        %1782 = vdwg.mxu0
        %1783 = vmatprep.subr.mxu0 %v1503
        %1784 = vmatpush1.msra.mxu0 %v1502
        %1785 = vmatprep.subr.mxu0 %v1505
        %1786 = vmatpush1.msra.mxu0 %v1504
        %1787 = vmatprep.subr.mxu0 %v1507
        %1788 = vmatpush1.msra.mxu0 %v1506
        %1789 = vmatprep.subr.mxu0 %v1509
        %1790 = vmatpush1.msra.mxu0 %v1508
        %1791 = vmatprep.subr.mxu0 %v1511
        %1792 = vmatpush1.msra.mxu0 %v1510
        %1793 = vmatprep.subr.mxu0 %v1513
        %1794 = vmatpush1.msra.mxu0 %v1512
        %1795 = vmatprep.subr.mxu0 %v1515
        %1796 = vmatpush1.msra.mxu0 %v1514
        %1797 = vmatprep.subr.mxu0 %v1517
        %1798 = vmatpush1.msra.mxu0 %v1516
        %1799 = vmatprep.subr.mxu0 %v1519
        %1800 = vmatpush1.msra.mxu0 %v1518
        %1801 = vmatprep.subr.mxu0 %v1521
        %1802 = vmatpush1.msra.mxu0 %v1520
        %1803 = vmatprep.subr.mxu0 %v1523
        %1804 = vmatpush1.msra.mxu0 %v1522
        %1805 = vmatprep.subr.mxu0 %v1525
        %1806 = vmatpush1.msra.mxu0 %v1524
        %1807 = vmatprep.subr.mxu0 %v1527
        %1808 = vmatpush1.msra.mxu0 %v1526
        %1809 = vmatprep.subr.mxu0 %v1529
        %1810 = vmatpush1.msra.mxu0 %v1528
        %1811 = vmatprep.subr.mxu0 %v1531
        %1812 = vmatpush1.msra.mxu0 %v1530
        %1813 = vmatprep.subr.mxu0 %v1533
        %1814 = vmatpush1.msra.mxu0 %v1532
        %1815 = vmatprep.subr.mxu0 0.0
        %1816 = vmatpush1.msra.mxu0 0.0
        %1817 = vmatprep.subr.mxu0 0.0
        %1818 = vmatpush1.msra.mxu0 0.0
        %1819 = vmatprep.subr.mxu0 0.0
        %1820 = vmatpush1.msra.mxu0 0.0
        %1821 = vmatprep.subr.mxu0 0.0
        %1822 = vmatpush1.msra.mxu0 0.0
        %1823 = vmatprep.subr.mxu0 0.0
        %1824 = vmatpush1.msra.mxu0 0.0
        %1825 = vmatprep.subr.mxu0 0.0
        %1826 = vmatpush1.msra.mxu0 0.0
        %1827 = vmatprep.subr.mxu0 0.0
        %1828 = vmatpush1.msra.mxu0 0.0
        %1829 = vmatprep.subr.mxu0 0.0
        %1830 = vmatpush1.msra.mxu0 0.0
        %1831 = vmatprep.subr.mxu0 0.0
        %1832 = vmatpush1.msra.mxu0 0.0
        %1833 = vmatprep.subr.mxu0 0.0
        %1834 = vmatpush1.msra.mxu0 0.0
        %1835 = vmatprep.subr.mxu0 0.0
        %1836 = vmatpush1.msra.mxu0 0.0
        %1837 = vmatprep.subr.mxu0 0.0
        %1838 = vmatpush1.msra.mxu0 0.0
        %1839 = vmatprep.subr.mxu0 0.0
        %1840 = vmatpush1.msra.mxu0 0.0
        %1841 = vmatprep.subr.mxu0 0.0
        %1842 = vmatpush1.msra.mxu0 0.0
        %1843 = vmatprep.subr.mxu0 0.0
        %1844 = vmatpush1.msra.mxu0 0.0
        %1845 = vmatprep.subr.mxu0 0.0
        %1846 = vmatpush1.msra.mxu0 0.0
        %1847 = vmatprep.mubr.f32.mxu0 0.0
        %1848 = vmatmul.mubr.f32.gmra.mrb[0].mxu0 %v1535
        %v1849 = vpop.f32.mrb[0].mxu0
        %v1850 = vadd.f32 %v1779, %v1849
        %v1851 = vpop.f32.mrb[0].mxu0
        %v1852 = vadd.f32 %v1781, %v1851
        %1853 = vdwg.mxu0
        %s1854 = scalar_lea.vmem %s4, 512
        %v1855 = vld [vmem:[%s1854] sm:$0xff]
        %v1856 = vld [vmem:[%s1854 + $0x8] sm:$0xff]
        %v1857 = vld [vmem:[%s1854 + $0x10] sm:$0xff]
        %v1858 = vld [vmem:[%s1854 + $0x18] sm:$0xff]
        %v1859 = vld [vmem:[%s1854 + $0x20] sm:$0xff]
        %v1860 = vld [vmem:[%s1854 + $0x28] sm:$0xff]
        %v1861 = vld [vmem:[%s1854 + $0x30] sm:$0xff]
        %v1862 = vld [vmem:[%s1854 + $0x38] sm:$0xff]
        %v1863 = vld [vmem:[%s1854 + $0x40] sm:$0xff]
        %v1864 = vld [vmem:[%s1854 + $0x48] sm:$0xff]
        %v1865 = vld [vmem:[%s1854 + $0x50] sm:$0xff]
        %v1866 = vld [vmem:[%s1854 + $0x58] sm:$0xff]
        %v1867 = vld [vmem:[%s1854 + $0x60] sm:$0xff]
        %v1868 = vld [vmem:[%s1854 + $0x68] sm:$0xff]
        %v1869 = vld [vmem:[%s1854 + $0x70] sm:$0xff]
        %v1870 = vld [vmem:[%s1854 + $0x78] sm:$0xff]
        %v1871 = vld [vmem:[%s1854 + $0x80] sm:$0xff]
        %v1872 = vld [vmem:[%s1854 + $0x88] sm:$0xff]
        %v1873 = vld [vmem:[%s1854 + $0x90] sm:$0xff]
        %v1874 = vld [vmem:[%s1854 + $0x98] sm:$0xff]
        %v1875 = vld [vmem:[%s1854 + $0xa0] sm:$0xff]
        %v1876 = vld [vmem:[%s1854 + $0xa8] sm:$0xff]
        %v1877 = vld [vmem:[%s1854 + $0xb0] sm:$0xff]
        %v1878 = vld [vmem:[%s1854 + $0xb8] sm:$0xff]
        %v1879 = vld [vmem:[%s1854 + $0xc0] sm:$0xff]
        %v1880 = vld [vmem:[%s1854 + $0xc8] sm:$0xff]
        %v1881 = vld [vmem:[%s1854 + $0xd0] sm:$0xff]
        %v1882 = vld [vmem:[%s1854 + $0xd8] sm:$0xff]
        %v1883 = vld [vmem:[%s1854 + $0xe0] sm:$0xff]
        %v1884 = vld [vmem:[%s1854 + $0xe8] sm:$0xff]
        %v1885 = vld [vmem:[%s1854 + $0xf0] sm:$0xff]
        %v1886 = vld [vmem:[%s1854 + $0xf8] sm:$0xff]
        %1887 = vmatprep.subr.mxu0 %v1856
        %1888 = vmatpush1.msra.mxu0 %v1855
        %1889 = vmatprep.subr.mxu0 %v1858
        %1890 = vmatpush1.msra.mxu0 %v1857
        %1891 = vmatprep.subr.mxu0 %v1860
        %1892 = vmatpush1.msra.mxu0 %v1859
        %1893 = vmatprep.subr.mxu0 %v1862
        %1894 = vmatpush1.msra.mxu0 %v1861
        %1895 = vmatprep.subr.mxu0 %v1864
        %1896 = vmatpush1.msra.mxu0 %v1863
        %1897 = vmatprep.subr.mxu0 %v1866
        %1898 = vmatpush1.msra.mxu0 %v1865
        %1899 = vmatprep.subr.mxu0 %v1868
        %1900 = vmatpush1.msra.mxu0 %v1867
        %1901 = vmatprep.subr.mxu0 %v1870
        %1902 = vmatpush1.msra.mxu0 %v1869
        %1903 = vmatprep.subr.mxu0 %v1872
        %1904 = vmatpush1.msra.mxu0 %v1871
        %1905 = vmatprep.subr.mxu0 %v1874
        %1906 = vmatpush1.msra.mxu0 %v1873
        %1907 = vmatprep.subr.mxu0 %v1876
        %1908 = vmatpush1.msra.mxu0 %v1875
        %1909 = vmatprep.subr.mxu0 %v1878
        %1910 = vmatpush1.msra.mxu0 %v1877
        %1911 = vmatprep.subr.mxu0 %v1880
        %1912 = vmatpush1.msra.mxu0 %v1879
        %1913 = vmatprep.subr.mxu0 %v1882
        %1914 = vmatpush1.msra.mxu0 %v1881
        %1915 = vmatprep.subr.mxu0 %v1884
        %1916 = vmatpush1.msra.mxu0 %v1883
        %1917 = vmatprep.subr.mxu0 %v1886
        %1918 = vmatpush1.msra.mxu0 %v1885
        %1919 = vmatprep.subr.mxu0 0.0
        %1920 = vmatpush1.msra.mxu0 0.0
        %1921 = vmatprep.subr.mxu0 0.0
        %1922 = vmatpush1.msra.mxu0 0.0
        %1923 = vmatprep.subr.mxu0 0.0
        %1924 = vmatpush1.msra.mxu0 0.0
        %1925 = vmatprep.subr.mxu0 0.0
        %1926 = vmatpush1.msra.mxu0 0.0
        %1927 = vmatprep.subr.mxu0 0.0
        %1928 = vmatpush1.msra.mxu0 0.0
        %1929 = vmatprep.subr.mxu0 0.0
        %1930 = vmatpush1.msra.mxu0 0.0
        %1931 = vmatprep.subr.mxu0 0.0
        %1932 = vmatpush1.msra.mxu0 0.0
        %1933 = vmatprep.subr.mxu0 0.0
        %1934 = vmatpush1.msra.mxu0 0.0
        %1935 = vmatprep.subr.mxu0 0.0
        %1936 = vmatpush1.msra.mxu0 0.0
        %1937 = vmatprep.subr.mxu0 0.0
        %1938 = vmatpush1.msra.mxu0 0.0
        %1939 = vmatprep.subr.mxu0 0.0
        %1940 = vmatpush1.msra.mxu0 0.0
        %1941 = vmatprep.subr.mxu0 0.0
        %1942 = vmatpush1.msra.mxu0 0.0
        %1943 = vmatprep.subr.mxu0 0.0
        %1944 = vmatpush1.msra.mxu0 0.0
        %1945 = vmatprep.subr.mxu0 0.0
        %1946 = vmatpush1.msra.mxu0 0.0
        %1947 = vmatprep.subr.mxu0 0.0
        %1948 = vmatpush1.msra.mxu0 0.0
        %1949 = vmatprep.subr.mxu0 0.0
        %1950 = vmatpush1.msra.mxu0 0.0
        %1951 = vmatprep.mubr.f32.mxu0 0.0
        %1952 = vmatmul.mubr.f32.gmra.mrb[0].mxu0 %v1711
        %v1953 = vpop.f32.mrb[0].mxu0
        %v1954 = vadd.f32 0.0, %v1953
        %v1955 = vpop.f32.mrb[0].mxu0
        %v1956 = vadd.f32 0.0, %v1955
        %1957 = vdwg.mxu0
        %v1958 = vadd.f32 %v1707, %v1954
        %v1959 = vadd.f32 %v1709, %v1956
        %v1960 = vld [vmem:[#allocation2 + $0x8] sm:$0x1f]
        %1961 = vmatprep.subr.mxu0 %v1856
        %1962 = vmatpush1.msra.mxu0 %v1855
        %1963 = vmatprep.subr.mxu0 %v1858
        %1964 = vmatpush1.msra.mxu0 %v1857
        %1965 = vmatprep.subr.mxu0 %v1860
        %1966 = vmatpush1.msra.mxu0 %v1859
        %1967 = vmatprep.subr.mxu0 %v1862
        %1968 = vmatpush1.msra.mxu0 %v1861
        %1969 = vmatprep.subr.mxu0 %v1864
        %1970 = vmatpush1.msra.mxu0 %v1863
        %1971 = vmatprep.subr.mxu0 %v1866
        %1972 = vmatpush1.msra.mxu0 %v1865
        %1973 = vmatprep.subr.mxu0 %v1868
        %1974 = vmatpush1.msra.mxu0 %v1867
        %1975 = vmatprep.subr.mxu0 %v1870
        %1976 = vmatpush1.msra.mxu0 %v1869
        %1977 = vmatprep.subr.mxu0 %v1872
        %1978 = vmatpush1.msra.mxu0 %v1871
        %1979 = vmatprep.subr.mxu0 %v1874
        %1980 = vmatpush1.msra.mxu0 %v1873
        %1981 = vmatprep.subr.mxu0 %v1876
        %1982 = vmatpush1.msra.mxu0 %v1875
        %1983 = vmatprep.subr.mxu0 %v1878
        %1984 = vmatpush1.msra.mxu0 %v1877
        %1985 = vmatprep.subr.mxu0 %v1880
        %1986 = vmatpush1.msra.mxu0 %v1879
        %1987 = vmatprep.subr.mxu0 %v1882
        %1988 = vmatpush1.msra.mxu0 %v1881
        %1989 = vmatprep.subr.mxu0 %v1884
        %1990 = vmatpush1.msra.mxu0 %v1883
        %1991 = vmatprep.subr.mxu0 %v1886
        %1992 = vmatpush1.msra.mxu0 %v1885
        %1993 = vmatprep.subr.mxu0 0.0
        %1994 = vmatpush1.msra.mxu0 0.0
        %1995 = vmatprep.subr.mxu0 0.0
        %1996 = vmatpush1.msra.mxu0 0.0
        %1997 = vmatprep.subr.mxu0 0.0
        %1998 = vmatpush1.msra.mxu0 0.0
        %1999 = vmatprep.subr.mxu0 0.0
        %2000 = vmatpush1.msra.mxu0 0.0
        %2001 = vmatprep.subr.mxu0 0.0
        %2002 = vmatpush1.msra.mxu0 0.0
        %2003 = vmatprep.subr.mxu0 0.0
        %2004 = vmatpush1.msra.mxu0 0.0
        %2005 = vmatprep.subr.mxu0 0.0
        %2006 = vmatpush1.msra.mxu0 0.0
        %2007 = vmatprep.subr.mxu0 0.0
        %2008 = vmatpush1.msra.mxu0 0.0
        %2009 = vmatprep.subr.mxu0 0.0
        %2010 = vmatpush1.msra.mxu0 0.0
        %2011 = vmatprep.subr.mxu0 0.0
        %2012 = vmatpush1.msra.mxu0 0.0
        %2013 = vmatprep.subr.mxu0 0.0
        %2014 = vmatpush1.msra.mxu0 0.0
        %2015 = vmatprep.subr.mxu0 0.0
        %2016 = vmatpush1.msra.mxu0 0.0
        %2017 = vmatprep.subr.mxu0 0.0
        %2018 = vmatpush1.msra.mxu0 0.0
        %2019 = vmatprep.subr.mxu0 0.0
        %2020 = vmatpush1.msra.mxu0 0.0
        %2021 = vmatprep.subr.mxu0 0.0
        %2022 = vmatpush1.msra.mxu0 0.0
        %2023 = vmatprep.subr.mxu0 0.0
        %2024 = vmatpush1.msra.mxu0 0.0
        %2025 = vmatprep.mubr.f32.mxu0 0.0
        %2026 = vmatmul.mubr.f32.gmra.mrb[0].mxu0 %v1960
        %v2027 = vpop.f32.mrb[0].mxu0
        %v2028 = vadd.f32 0.0, %v2027
        %v2029 = vpop.f32.mrb[0].mxu0
        %v2030 = vadd.f32 0.0, %v2029
        %2031 = vdwg.mxu0
        %v2032 = vadd.f32 %v1850, %v2028
        %v2033 = vadd.f32 %v1852, %v2030
        %s2034 = scalar_lea.vmem %s4, 768
        %v2035 = vld [vmem:[%s2034] sm:$0xff]
        %v2036 = vld [vmem:[%s2034 + $0x8] sm:$0xff]
        %v2037 = vld [vmem:[%s2034 + $0x10] sm:$0xff]
        %v2038 = vld [vmem:[%s2034 + $0x18] sm:$0xff]
        %v2039 = vld [vmem:[%s2034 + $0x20] sm:$0xff]
        %v2040 = vld [vmem:[%s2034 + $0x28] sm:$0xff]
        %v2041 = vld [vmem:[%s2034 + $0x30] sm:$0xff]
        %v2042 = vld [vmem:[%s2034 + $0x38] sm:$0xff]
        %v2043 = vld [vmem:[%s2034 + $0x40] sm:$0xff]
        %v2044 = vld [vmem:[%s2034 + $0x48] sm:$0xff]
        %v2045 = vld [vmem:[%s2034 + $0x50] sm:$0xff]
        %v2046 = vld [vmem:[%s2034 + $0x58] sm:$0xff]
        %v2047 = vld [vmem:[%s2034 + $0x60] sm:$0xff]
        %v2048 = vld [vmem:[%s2034 + $0x68] sm:$0xff]
        %v2049 = vld [vmem:[%s2034 + $0x70] sm:$0xff]
        %v2050 = vld [vmem:[%s2034 + $0x78] sm:$0xff]
        %v2051 = vld [vmem:[%s2034 + $0x80] sm:$0xff]
        %v2052 = vld [vmem:[%s2034 + $0x88] sm:$0xff]
        %v2053 = vld [vmem:[%s2034 + $0x90] sm:$0xff]
        %v2054 = vld [vmem:[%s2034 + $0x98] sm:$0xff]
        %v2055 = vld [vmem:[%s2034 + $0xa0] sm:$0xff]
        %v2056 = vld [vmem:[%s2034 + $0xa8] sm:$0xff]
        %v2057 = vld [vmem:[%s2034 + $0xb0] sm:$0xff]
        %v2058 = vld [vmem:[%s2034 + $0xb8] sm:$0xff]
        %v2059 = vld [vmem:[%s2034 + $0xc0] sm:$0xff]
        %v2060 = vld [vmem:[%s2034 + $0xc8] sm:$0xff]
        %v2061 = vld [vmem:[%s2034 + $0xd0] sm:$0xff]
        %v2062 = vld [vmem:[%s2034 + $0xd8] sm:$0xff]
        %v2063 = vld [vmem:[%s2034 + $0xe0] sm:$0xff]
        %v2064 = vld [vmem:[%s2034 + $0xe8] sm:$0xff]
        %v2065 = vld [vmem:[%s2034 + $0xf0] sm:$0xff]
        %v2066 = vld [vmem:[%s2034 + $0xf8] sm:$0xff]
        %2067 = vmatprep.subr.mxu0 %v2036
        %2068 = vmatpush1.msra.mxu0 %v2035
        %2069 = vmatprep.subr.mxu0 %v2038
        %2070 = vmatpush1.msra.mxu0 %v2037
        %2071 = vmatprep.subr.mxu0 %v2040
        %2072 = vmatpush1.msra.mxu0 %v2039
        %2073 = vmatprep.subr.mxu0 %v2042
        %2074 = vmatpush1.msra.mxu0 %v2041
        %2075 = vmatprep.subr.mxu0 %v2044
        %2076 = vmatpush1.msra.mxu0 %v2043
        %2077 = vmatprep.subr.mxu0 %v2046
        %2078 = vmatpush1.msra.mxu0 %v2045
        %2079 = vmatprep.subr.mxu0 %v2048
        %2080 = vmatpush1.msra.mxu0 %v2047
        %2081 = vmatprep.subr.mxu0 %v2050
        %2082 = vmatpush1.msra.mxu0 %v2049
        %2083 = vmatprep.subr.mxu0 %v2052
        %2084 = vmatpush1.msra.mxu0 %v2051
        %2085 = vmatprep.subr.mxu0 %v2054
        %2086 = vmatpush1.msra.mxu0 %v2053
        %2087 = vmatprep.subr.mxu0 %v2056
        %2088 = vmatpush1.msra.mxu0 %v2055
        %2089 = vmatprep.subr.mxu0 %v2058
        %2090 = vmatpush1.msra.mxu0 %v2057
        %2091 = vmatprep.subr.mxu0 %v2060
        %2092 = vmatpush1.msra.mxu0 %v2059
        %2093 = vmatprep.subr.mxu0 %v2062
        %2094 = vmatpush1.msra.mxu0 %v2061
        %2095 = vmatprep.subr.mxu0 %v2064
        %2096 = vmatpush1.msra.mxu0 %v2063
        %2097 = vmatprep.subr.mxu0 %v2066
        %2098 = vmatpush1.msra.mxu0 %v2065
        %2099 = vmatprep.subr.mxu0 0.0
        %2100 = vmatpush1.msra.mxu0 0.0
        %2101 = vmatprep.subr.mxu0 0.0
        %2102 = vmatpush1.msra.mxu0 0.0
        %2103 = vmatprep.subr.mxu0 0.0
        %2104 = vmatpush1.msra.mxu0 0.0
        %2105 = vmatprep.subr.mxu0 0.0
        %2106 = vmatpush1.msra.mxu0 0.0
        %2107 = vmatprep.subr.mxu0 0.0
        %2108 = vmatpush1.msra.mxu0 0.0
        %2109 = vmatprep.subr.mxu0 0.0
        %2110 = vmatpush1.msra.mxu0 0.0
        %2111 = vmatprep.subr.mxu0 0.0
        %2112 = vmatpush1.msra.mxu0 0.0
        %2113 = vmatprep.subr.mxu0 0.0
        %2114 = vmatpush1.msra.mxu0 0.0
        %2115 = vmatprep.subr.mxu0 0.0
        %2116 = vmatpush1.msra.mxu0 0.0
        %2117 = vmatprep.subr.mxu0 0.0
        %2118 = vmatpush1.msra.mxu0 0.0
        %2119 = vmatprep.subr.mxu0 0.0
        %2120 = vmatpush1.msra.mxu0 0.0
        %2121 = vmatprep.subr.mxu0 0.0
        %2122 = vmatpush1.msra.mxu0 0.0
        %2123 = vmatprep.subr.mxu0 0.0
        %2124 = vmatpush1.msra.mxu0 0.0
        %2125 = vmatprep.subr.mxu0 0.0
        %2126 = vmatpush1.msra.mxu0 0.0
        %2127 = vmatprep.subr.mxu0 0.0
        %2128 = vmatpush1.msra.mxu0 0.0
        %2129 = vmatprep.subr.mxu0 0.0
        %2130 = vmatpush1.msra.mxu0 0.0
        %2131 = vmatprep.mubr.f32.mxu0 0.0
        %2132 = vmatmul.mubr.f32.gmra.mrb[0].mxu0 %v1960
        %v2133 = vpop.f32.mrb[0].mxu0
        %v2134 = vadd.f32 0.0, %v2133
        %v2135 = vpop.f32.mrb[0].mxu0
        %v2136 = vadd.f32 0.0, %v2135
        %2137 = vdwg.mxu0
        %v2138 = vadd.f32 %v1958, %v2134
        %v2139 = vadd.f32 %v1959, %v2136
        %v2140 = vld [vmem:[#allocation2 + $0x2] sm:$0x1f]
        %2141 = vmatprep.subr.mxu0 %v2036
        %2142 = vmatpush1.msra.mxu0 %v2035
        %2143 = vmatprep.subr.mxu0 %v2038
        %2144 = vmatpush1.msra.mxu0 %v2037
        %2145 = vmatprep.subr.mxu0 %v2040
        %2146 = vmatpush1.msra.mxu0 %v2039
        %2147 = vmatprep.subr.mxu0 %v2042
        %2148 = vmatpush1.msra.mxu0 %v2041
        %2149 = vmatprep.subr.mxu0 %v2044
        %2150 = vmatpush1.msra.mxu0 %v2043
        %2151 = vmatprep.subr.mxu0 %v2046
        %2152 = vmatpush1.msra.mxu0 %v2045
        %2153 = vmatprep.subr.mxu0 %v2048
        %2154 = vmatpush1.msra.mxu0 %v2047
        %2155 = vmatprep.subr.mxu0 %v2050
        %2156 = vmatpush1.msra.mxu0 %v2049
        %2157 = vmatprep.subr.mxu0 %v2052
        %2158 = vmatpush1.msra.mxu0 %v2051
        %2159 = vmatprep.subr.mxu0 %v2054
        %2160 = vmatpush1.msra.mxu0 %v2053
        %2161 = vmatprep.subr.mxu0 %v2056
        %2162 = vmatpush1.msra.mxu0 %v2055
        %2163 = vmatprep.subr.mxu0 %v2058
        %2164 = vmatpush1.msra.mxu0 %v2057
        %2165 = vmatprep.subr.mxu0 %v2060
        %2166 = vmatpush1.msra.mxu0 %v2059
        %2167 = vmatprep.subr.mxu0 %v2062
        %2168 = vmatpush1.msra.mxu0 %v2061
        %2169 = vmatprep.subr.mxu0 %v2064
        %2170 = vmatpush1.msra.mxu0 %v2063
        %2171 = vmatprep.subr.mxu0 %v2066
        %2172 = vmatpush1.msra.mxu0 %v2065
        %2173 = vmatprep.subr.mxu0 0.0
        %2174 = vmatpush1.msra.mxu0 0.0
        %2175 = vmatprep.subr.mxu0 0.0
        %2176 = vmatpush1.msra.mxu0 0.0
        %2177 = vmatprep.subr.mxu0 0.0
        %2178 = vmatpush1.msra.mxu0 0.0
        %2179 = vmatprep.subr.mxu0 0.0
        %2180 = vmatpush1.msra.mxu0 0.0
        %2181 = vmatprep.subr.mxu0 0.0
        %2182 = vmatpush1.msra.mxu0 0.0
        %2183 = vmatprep.subr.mxu0 0.0
        %2184 = vmatpush1.msra.mxu0 0.0
        %2185 = vmatprep.subr.mxu0 0.0
        %2186 = vmatpush1.msra.mxu0 0.0
        %2187 = vmatprep.subr.mxu0 0.0
        %2188 = vmatpush1.msra.mxu0 0.0
        %2189 = vmatprep.subr.mxu0 0.0
        %2190 = vmatpush1.msra.mxu0 0.0
        %2191 = vmatprep.subr.mxu0 0.0
        %2192 = vmatpush1.msra.mxu0 0.0
        %2193 = vmatprep.subr.mxu0 0.0
        %2194 = vmatpush1.msra.mxu0 0.0
        %2195 = vmatprep.subr.mxu0 0.0
        %2196 = vmatpush1.msra.mxu0 0.0
        %2197 = vmatprep.subr.mxu0 0.0
        %2198 = vmatpush1.msra.mxu0 0.0
        %2199 = vmatprep.subr.mxu0 0.0
        %2200 = vmatpush1.msra.mxu0 0.0
        %2201 = vmatprep.subr.mxu0 0.0
        %2202 = vmatpush1.msra.mxu0 0.0
        %2203 = vmatprep.subr.mxu0 0.0
        %2204 = vmatpush1.msra.mxu0 0.0
        %2205 = vmatprep.mubr.f32.mxu0 0.0
        %2206 = vmatmul.mubr.f32.gmra.mrb[0].mxu0 %v2140
        %v2207 = vpop.f32.mrb[0].mxu0
        %v2208 = vadd.f32 0.0, %v2207
        %v2209 = vpop.f32.mrb[0].mxu0
        %v2210 = vadd.f32 0.0, %v2209
        %2211 = vdwg.mxu0
        %v2212 = vadd.f32 %v2032, %v2208
        %v2213 = vadd.f32 %v2033, %v2210
        %s2214 = scalar_lea.vmem %s4, 1024
        %v2215 = vld [vmem:[%s2214] sm:$0xff]
        %v2216 = vld [vmem:[%s2214 + $0x8] sm:$0xff]
        %v2217 = vld [vmem:[%s2214 + $0x10] sm:$0xff]
        %v2218 = vld [vmem:[%s2214 + $0x18] sm:$0xff]
        %v2219 = vld [vmem:[%s2214 + $0x20] sm:$0xff]
        %v2220 = vld [vmem:[%s2214 + $0x28] sm:$0xff]
        %v2221 = vld [vmem:[%s2214 + $0x30] sm:$0xff]
        %v2222 = vld [vmem:[%s2214 + $0x38] sm:$0xff]
        %v2223 = vld [vmem:[%s2214 + $0x40] sm:$0xff]
        %v2224 = vld [vmem:[%s2214 + $0x48] sm:$0xff]
        %v2225 = vld [vmem:[%s2214 + $0x50] sm:$0xff]
        %v2226 = vld [vmem:[%s2214 + $0x58] sm:$0xff]
        %v2227 = vld [vmem:[%s2214 + $0x60] sm:$0xff]
        %v2228 = vld [vmem:[%s2214 + $0x68] sm:$0xff]
        %v2229 = vld [vmem:[%s2214 + $0x70] sm:$0xff]
        %v2230 = vld [vmem:[%s2214 + $0x78] sm:$0xff]
        %v2231 = vld [vmem:[%s2214 + $0x80] sm:$0xff]
        %v2232 = vld [vmem:[%s2214 + $0x88] sm:$0xff]
        %v2233 = vld [vmem:[%s2214 + $0x90] sm:$0xff]
        %v2234 = vld [vmem:[%s2214 + $0x98] sm:$0xff]
        %v2235 = vld [vmem:[%s2214 + $0xa0] sm:$0xff]
        %v2236 = vld [vmem:[%s2214 + $0xa8] sm:$0xff]
        %v2237 = vld [vmem:[%s2214 + $0xb0] sm:$0xff]
        %v2238 = vld [vmem:[%s2214 + $0xb8] sm:$0xff]
        %v2239 = vld [vmem:[%s2214 + $0xc0] sm:$0xff]
        %v2240 = vld [vmem:[%s2214 + $0xc8] sm:$0xff]
        %v2241 = vld [vmem:[%s2214 + $0xd0] sm:$0xff]
        %v2242 = vld [vmem:[%s2214 + $0xd8] sm:$0xff]
        %v2243 = vld [vmem:[%s2214 + $0xe0] sm:$0xff]
        %v2244 = vld [vmem:[%s2214 + $0xe8] sm:$0xff]
        %v2245 = vld [vmem:[%s2214 + $0xf0] sm:$0xff]
        %v2246 = vld [vmem:[%s2214 + $0xf8] sm:$0xff]
        %2247 = vmatprep.subr.mxu0 %v2216
        %2248 = vmatpush1.msra.mxu0 %v2215
        %2249 = vmatprep.subr.mxu0 %v2218
        %2250 = vmatpush1.msra.mxu0 %v2217
        %2251 = vmatprep.subr.mxu0 %v2220
        %2252 = vmatpush1.msra.mxu0 %v2219
        %2253 = vmatprep.subr.mxu0 %v2222
        %2254 = vmatpush1.msra.mxu0 %v2221
        %2255 = vmatprep.subr.mxu0 %v2224
        %2256 = vmatpush1.msra.mxu0 %v2223
        %2257 = vmatprep.subr.mxu0 %v2226
        %2258 = vmatpush1.msra.mxu0 %v2225
        %2259 = vmatprep.subr.mxu0 %v2228
        %2260 = vmatpush1.msra.mxu0 %v2227
        %2261 = vmatprep.subr.mxu0 %v2230
        %2262 = vmatpush1.msra.mxu0 %v2229
        %2263 = vmatprep.subr.mxu0 %v2232
        %2264 = vmatpush1.msra.mxu0 %v2231
        %2265 = vmatprep.subr.mxu0 %v2234
        %2266 = vmatpush1.msra.mxu0 %v2233
        %2267 = vmatprep.subr.mxu0 %v2236
        %2268 = vmatpush1.msra.mxu0 %v2235
        %2269 = vmatprep.subr.mxu0 %v2238
        %2270 = vmatpush1.msra.mxu0 %v2237
        %2271 = vmatprep.subr.mxu0 %v2240
        %2272 = vmatpush1.msra.mxu0 %v2239
        %2273 = vmatprep.subr.mxu0 %v2242
        %2274 = vmatpush1.msra.mxu0 %v2241
        %2275 = vmatprep.subr.mxu0 %v2244
        %2276 = vmatpush1.msra.mxu0 %v2243
        %2277 = vmatprep.subr.mxu0 %v2246
        %2278 = vmatpush1.msra.mxu0 %v2245
        %2279 = vmatprep.subr.mxu0 0.0
        %2280 = vmatpush1.msra.mxu0 0.0
        %2281 = vmatprep.subr.mxu0 0.0
        %2282 = vmatpush1.msra.mxu0 0.0
        %2283 = vmatprep.subr.mxu0 0.0
        %2284 = vmatpush1.msra.mxu0 0.0
        %2285 = vmatprep.subr.mxu0 0.0
        %2286 = vmatpush1.msra.mxu0 0.0
        %2287 = vmatprep.subr.mxu0 0.0
        %2288 = vmatpush1.msra.mxu0 0.0
        %2289 = vmatprep.subr.mxu0 0.0
        %2290 = vmatpush1.msra.mxu0 0.0
        %2291 = vmatprep.subr.mxu0 0.0
        %2292 = vmatpush1.msra.mxu0 0.0
        %2293 = vmatprep.subr.mxu0 0.0
        %2294 = vmatpush1.msra.mxu0 0.0
        %2295 = vmatprep.subr.mxu0 0.0
        %2296 = vmatpush1.msra.mxu0 0.0
        %2297 = vmatprep.subr.mxu0 0.0
        %2298 = vmatpush1.msra.mxu0 0.0
        %2299 = vmatprep.subr.mxu0 0.0
        %2300 = vmatpush1.msra.mxu0 0.0
        %2301 = vmatprep.subr.mxu0 0.0
        %2302 = vmatpush1.msra.mxu0 0.0
        %2303 = vmatprep.subr.mxu0 0.0
        %2304 = vmatpush1.msra.mxu0 0.0
        %2305 = vmatprep.subr.mxu0 0.0
        %2306 = vmatpush1.msra.mxu0 0.0
        %2307 = vmatprep.subr.mxu0 0.0
        %2308 = vmatpush1.msra.mxu0 0.0
        %2309 = vmatprep.subr.mxu0 0.0
        %2310 = vmatpush1.msra.mxu0 0.0
        %2311 = vmatprep.mubr.f32.mxu0 0.0
        %2312 = vmatmul.mubr.f32.gmra.mrb[0].mxu0 %v2140
        %v2313 = vpop.f32.mrb[0].mxu0
        %v2314 = vadd.f32 0.0, %v2313
        %v2315 = vpop.f32.mrb[0].mxu0
        %v2316 = vadd.f32 0.0, %v2315
        %2317 = vdwg.mxu0
        %v2318 = vadd.f32 %v2138, %v2314
        %v2319 = vadd.f32 %v2139, %v2316
        %v2320 = vld [vmem:[#allocation2 + $0x9] sm:$0x1f]
        %2321 = vmatprep.subr.mxu0 %v2216
        %2322 = vmatpush1.msra.mxu0 %v2215
        %2323 = vmatprep.subr.mxu0 %v2218
        %2324 = vmatpush1.msra.mxu0 %v2217
        %2325 = vmatprep.subr.mxu0 %v2220
        %2326 = vmatpush1.msra.mxu0 %v2219
        %2327 = vmatprep.subr.mxu0 %v2222
        %2328 = vmatpush1.msra.mxu0 %v2221
        %2329 = vmatprep.subr.mxu0 %v2224
        %2330 = vmatpush1.msra.mxu0 %v2223
        %2331 = vmatprep.subr.mxu0 %v2226
        %2332 = vmatpush1.msra.mxu0 %v2225
        %2333 = vmatprep.subr.mxu0 %v2228
        %2334 = vmatpush1.msra.mxu0 %v2227
        %2335 = vmatprep.subr.mxu0 %v2230
        %2336 = vmatpush1.msra.mxu0 %v2229
        %2337 = vmatprep.subr.mxu0 %v2232
        %2338 = vmatpush1.msra.mxu0 %v2231
        %2339 = vmatprep.subr.mxu0 %v2234
        %2340 = vmatpush1.msra.mxu0 %v2233
        %2341 = vmatprep.subr.mxu0 %v2236
        %2342 = vmatpush1.msra.mxu0 %v2235
        %2343 = vmatprep.subr.mxu0 %v2238
        %2344 = vmatpush1.msra.mxu0 %v2237
        %2345 = vmatprep.subr.mxu0 %v2240
        %2346 = vmatpush1.msra.mxu0 %v2239
        %2347 = vmatprep.subr.mxu0 %v2242
        %2348 = vmatpush1.msra.mxu0 %v2241
        %2349 = vmatprep.subr.mxu0 %v2244
        %2350 = vmatpush1.msra.mxu0 %v2243
        %2351 = vmatprep.subr.mxu0 %v2246
        %2352 = vmatpush1.msra.mxu0 %v2245
        %2353 = vmatprep.subr.mxu0 0.0
        %2354 = vmatpush1.msra.mxu0 0.0
        %2355 = vmatprep.subr.mxu0 0.0
        %2356 = vmatpush1.msra.mxu0 0.0
        %2357 = vmatprep.subr.mxu0 0.0
        %2358 = vmatpush1.msra.mxu0 0.0
        %2359 = vmatprep.subr.mxu0 0.0
        %2360 = vmatpush1.msra.mxu0 0.0
        %2361 = vmatprep.subr.mxu0 0.0
        %2362 = vmatpush1.msra.mxu0 0.0
        %2363 = vmatprep.subr.mxu0 0.0
        %2364 = vmatpush1.msra.mxu0 0.0
        %2365 = vmatprep.subr.mxu0 0.0
        %2366 = vmatpush1.msra.mxu0 0.0
        %2367 = vmatprep.subr.mxu0 0.0
        %2368 = vmatpush1.msra.mxu0 0.0
        %2369 = vmatprep.subr.mxu0 0.0
        %2370 = vmatpush1.msra.mxu0 0.0
        %2371 = vmatprep.subr.mxu0 0.0
        %2372 = vmatpush1.msra.mxu0 0.0
        %2373 = vmatprep.subr.mxu0 0.0
        %2374 = vmatpush1.msra.mxu0 0.0
        %2375 = vmatprep.subr.mxu0 0.0
        %2376 = vmatpush1.msra.mxu0 0.0
        %2377 = vmatprep.subr.mxu0 0.0
        %2378 = vmatpush1.msra.mxu0 0.0
        %2379 = vmatprep.subr.mxu0 0.0
        %2380 = vmatpush1.msra.mxu0 0.0
        %2381 = vmatprep.subr.mxu0 0.0
        %2382 = vmatpush1.msra.mxu0 0.0
        %2383 = vmatprep.subr.mxu0 0.0
        %2384 = vmatpush1.msra.mxu0 0.0
        %2385 = vmatprep.mubr.f32.mxu0 0.0
        %2386 = vmatmul.mubr.f32.gmra.mrb[0].mxu0 %v2320
        %v2387 = vpop.f32.mrb[0].mxu0
        %v2388 = vadd.f32 0.0, %v2387
        %v2389 = vpop.f32.mrb[0].mxu0
        %v2390 = vadd.f32 0.0, %v2389
        %2391 = vdwg.mxu0
        %v2392 = vadd.f32 %v2212, %v2388
        %v2393 = vadd.f32 %v2213, %v2390
        %v2394 = vld [vmem:[%s5] sm:$0x3]
        %v2396 = vlaneseq
        %v2397 = vshrl.u32 %v2396, 7
        %v2398 = vsub.s32 0, %v2397
        %v2399 = vrot.slane %v2394, %v2398
        %v2400 = vlaneseq
        %v2401 = vshrl.u32 %v2400, 7
        %v2402 = vsub.s32 1, %v2401
        %v2403 = vrot.slane %v2394, %v2402
        %v2406 = vadd.f32 %v2318, %v2399
        %v2407 = vadd.f32 %v2319, %v2403
        %v2408 = vmax.f32 %v2406, 0.0
        %v2409 = vmax.f32 %v2407, 0.0
        %v2410 = vadd.f32 %v2392, %v2399
        %v2411 = vadd.f32 %v2393, %v2403
        %v2412 = vmax.f32 %v2410, 0.0
        %v2413 = vmax.f32 %v2411, 0.0
        %v2414 = vmax.f32 %v2408, %v2412
        %v2415 = vmax.f32 %v2409, %v2413
        %v2416 = vmax.f32 %v2414, %v2415
        %2417 = vst [vmem:[#allocation3] sm:$0x1f] %v2416
        %v2418 = vld [vmem:[%s7] sm:$0x1]
        %v2419 = vld [vmem:[#allocation3] sm:$0x1]
        %v2420 = vld [vmem:[%s6] sm:$0xff]
        %v2421 = vld [vmem:[%s6 + $0x8] sm:$0xff]
        %v2422 = vld [vmem:[%s6 + $0x10] sm:$0xff]
        %v2423 = vld [vmem:[%s6 + $0x18] sm:$0xff]
        %v2424 = vld [vmem:[%s6 + $0x20] sm:$0xff]
        %v2425 = vld [vmem:[%s6 + $0x28] sm:$0xff]
        %v2426 = vld [vmem:[%s6 + $0x30] sm:$0xff]
        %v2427 = vld [vmem:[%s6 + $0x38] sm:$0xff]
        %v2428 = vld [vmem:[%s6 + $0x40] sm:$0xff]
        %v2429 = vld [vmem:[%s6 + $0x48] sm:$0xff]
        %v2430 = vld [vmem:[%s6 + $0x50] sm:$0xff]
        %v2431 = vld [vmem:[%s6 + $0x58] sm:$0xff]
        %v2432 = vld [vmem:[%s6 + $0x60] sm:$0xff]
        %v2433 = vld [vmem:[%s6 + $0x68] sm:$0xff]
        %v2434 = vld [vmem:[%s6 + $0x70] sm:$0xff]
        %v2435 = vld [vmem:[%s6 + $0x78] sm:$0xff]
        %2436 = vmatprep.subr.mxu0 0.0
        %2437 = vmatpush1.msra.mxu0 %v2420
        %2438 = vmatprep.subr.mxu0 0.0
        %2439 = vmatpush1.msra.mxu0 %v2421
        %2440 = vmatprep.subr.mxu0 0.0
        %2441 = vmatpush1.msra.mxu0 %v2422
        %2442 = vmatprep.subr.mxu0 0.0
        %2443 = vmatpush1.msra.mxu0 %v2423
        %2444 = vmatprep.subr.mxu0 0.0
        %2445 = vmatpush1.msra.mxu0 %v2424
        %2446 = vmatprep.subr.mxu0 0.0
        %2447 = vmatpush1.msra.mxu0 %v2425
        %2448 = vmatprep.subr.mxu0 0.0
        %2449 = vmatpush1.msra.mxu0 %v2426
        %2450 = vmatprep.subr.mxu0 0.0
        %2451 = vmatpush1.msra.mxu0 %v2427
        %2452 = vmatprep.subr.mxu0 0.0
        %2453 = vmatpush1.msra.mxu0 %v2428
        %2454 = vmatprep.subr.mxu0 0.0
        %2455 = vmatpush1.msra.mxu0 %v2429
        %2456 = vmatprep.subr.mxu0 0.0
        %2457 = vmatpush1.msra.mxu0 %v2430
        %2458 = vmatprep.subr.mxu0 0.0
        %2459 = vmatpush1.msra.mxu0 %v2431
        %2460 = vmatprep.subr.mxu0 0.0
        %2461 = vmatpush1.msra.mxu0 %v2432
        %2462 = vmatprep.subr.mxu0 0.0
        %2463 = vmatpush1.msra.mxu0 %v2433
        %2464 = vmatprep.subr.mxu0 0.0
        %2465 = vmatpush1.msra.mxu0 %v2434
        %2466 = vmatprep.subr.mxu0 0.0
        %2467 = vmatpush1.msra.mxu0 %v2435
        %2468 = vmatprep.subr.mxu0 0.0
        %2469 = vmatpush1.msra.mxu0 0.0
        %2470 = vmatprep.subr.mxu0 0.0
        %2471 = vmatpush1.msra.mxu0 0.0
        %2472 = vmatprep.subr.mxu0 0.0
        %2473 = vmatpush1.msra.mxu0 0.0
        %2474 = vmatprep.subr.mxu0 0.0
        %2475 = vmatpush1.msra.mxu0 0.0
        %2476 = vmatprep.subr.mxu0 0.0
        %2477 = vmatpush1.msra.mxu0 0.0
        %2478 = vmatprep.subr.mxu0 0.0
        %2479 = vmatpush1.msra.mxu0 0.0
        %2480 = vmatprep.subr.mxu0 0.0
        %2481 = vmatpush1.msra.mxu0 0.0
        %2482 = vmatprep.subr.mxu0 0.0
        %2483 = vmatpush1.msra.mxu0 0.0
        %2484 = vmatprep.subr.mxu0 0.0
        %2485 = vmatpush1.msra.mxu0 0.0
        %2486 = vmatprep.subr.mxu0 0.0
        %2487 = vmatpush1.msra.mxu0 0.0
        %2488 = vmatprep.subr.mxu0 0.0
        %2489 = vmatpush1.msra.mxu0 0.0
        %2490 = vmatprep.subr.mxu0 0.0
        %2491 = vmatpush1.msra.mxu0 0.0
        %2492 = vmatprep.subr.mxu0 0.0
        %2493 = vmatpush1.msra.mxu0 0.0
        %2494 = vmatprep.subr.mxu0 0.0
        %2495 = vmatpush1.msra.mxu0 0.0
        %2496 = vmatprep.subr.mxu0 0.0
        %2497 = vmatpush1.msra.mxu0 0.0
        %2498 = vmatprep.subr.mxu0 0.0
        %2499 = vmatpush1.msra.mxu0 0.0
        %2500 = vmatprep.mubr.f32.mxu0 0.0
        %2501 = vmatmul.mubr.f32.gmra.mrb[0].mxu0 %v2419
        %v2502 = vpop.f32.mrb[0].mxu0
        %v2503 = vadd.f32 0.0, %v2502
        %v2504 = vpop.f32.mrb[0].mxu0
        %2505 = vdwg.mxu0
        %v2506 = vadd.f32 %v2418, %v2503
        %v2507 = vld [vmem:[#allocation3 + $0x1] sm:$0x1]
        %s2508 = scalar_lea.vmem %s6, 128
        %v2509 = vld [vmem:[%s2508] sm:$0xff]
        %v2510 = vld [vmem:[%s2508 + $0x8] sm:$0xff]
        %v2511 = vld [vmem:[%s2508 + $0x10] sm:$0xff]
        %v2512 = vld [vmem:[%s2508 + $0x18] sm:$0xff]
        %v2513 = vld [vmem:[%s2508 + $0x20] sm:$0xff]
        %v2514 = vld [vmem:[%s2508 + $0x28] sm:$0xff]
        %v2515 = vld [vmem:[%s2508 + $0x30] sm:$0xff]
        %v2516 = vld [vmem:[%s2508 + $0x38] sm:$0xff]
        %v2517 = vld [vmem:[%s2508 + $0x40] sm:$0xff]
        %v2518 = vld [vmem:[%s2508 + $0x48] sm:$0xff]
        %v2519 = vld [vmem:[%s2508 + $0x50] sm:$0xff]
        %v2520 = vld [vmem:[%s2508 + $0x58] sm:$0xff]
        %v2521 = vld [vmem:[%s2508 + $0x60] sm:$0xff]
        %v2522 = vld [vmem:[%s2508 + $0x68] sm:$0xff]
        %v2523 = vld [vmem:[%s2508 + $0x70] sm:$0xff]
        %v2524 = vld [vmem:[%s2508 + $0x78] sm:$0xff]
        %2525 = vmatprep.subr.mxu0 0.0
        %2526 = vmatpush1.msra.mxu0 %v2509
        %2527 = vmatprep.subr.mxu0 0.0
        %2528 = vmatpush1.msra.mxu0 %v2510
        %2529 = vmatprep.subr.mxu0 0.0
        %2530 = vmatpush1.msra.mxu0 %v2511
        %2531 = vmatprep.subr.mxu0 0.0
        %2532 = vmatpush1.msra.mxu0 %v2512
        %2533 = vmatprep.subr.mxu0 0.0
        %2534 = vmatpush1.msra.mxu0 %v2513
        %2535 = vmatprep.subr.mxu0 0.0
        %2536 = vmatpush1.msra.mxu0 %v2514
        %2537 = vmatprep.subr.mxu0 0.0
        %2538 = vmatpush1.msra.mxu0 %v2515
        %2539 = vmatprep.subr.mxu0 0.0
        %2540 = vmatpush1.msra.mxu0 %v2516
        %2541 = vmatprep.subr.mxu0 0.0
        %2542 = vmatpush1.msra.mxu0 %v2517
        %2543 = vmatprep.subr.mxu0 0.0
        %2544 = vmatpush1.msra.mxu0 %v2518
        %2545 = vmatprep.subr.mxu0 0.0
        %2546 = vmatpush1.msra.mxu0 %v2519
        %2547 = vmatprep.subr.mxu0 0.0
        %2548 = vmatpush1.msra.mxu0 %v2520
        %2549 = vmatprep.subr.mxu0 0.0
        %2550 = vmatpush1.msra.mxu0 %v2521
        %2551 = vmatprep.subr.mxu0 0.0
        %2552 = vmatpush1.msra.mxu0 %v2522
        %2553 = vmatprep.subr.mxu0 0.0
        %2554 = vmatpush1.msra.mxu0 %v2523
        %2555 = vmatprep.subr.mxu0 0.0
        %2556 = vmatpush1.msra.mxu0 %v2524
        %2557 = vmatprep.subr.mxu0 0.0
        %2558 = vmatpush1.msra.mxu0 0.0
        %2559 = vmatprep.subr.mxu0 0.0
        %2560 = vmatpush1.msra.mxu0 0.0
        %2561 = vmatprep.subr.mxu0 0.0
        %2562 = vmatpush1.msra.mxu0 0.0
        %2563 = vmatprep.subr.mxu0 0.0
        %2564 = vmatpush1.msra.mxu0 0.0
        %2565 = vmatprep.subr.mxu0 0.0
        %2566 = vmatpush1.msra.mxu0 0.0
        %2567 = vmatprep.subr.mxu0 0.0
        %2568 = vmatpush1.msra.mxu0 0.0
        %2569 = vmatprep.subr.mxu0 0.0
        %2570 = vmatpush1.msra.mxu0 0.0
        %2571 = vmatprep.subr.mxu0 0.0
        %2572 = vmatpush1.msra.mxu0 0.0
        %2573 = vmatprep.subr.mxu0 0.0
        %2574 = vmatpush1.msra.mxu0 0.0
        %2575 = vmatprep.subr.mxu0 0.0
        %2576 = vmatpush1.msra.mxu0 0.0
        %2577 = vmatprep.subr.mxu0 0.0
        %2578 = vmatpush1.msra.mxu0 0.0
        %2579 = vmatprep.subr.mxu0 0.0
        %2580 = vmatpush1.msra.mxu0 0.0
        %2581 = vmatprep.subr.mxu0 0.0
        %2582 = vmatpush1.msra.mxu0 0.0
        %2583 = vmatprep.subr.mxu0 0.0
        %2584 = vmatpush1.msra.mxu0 0.0
        %2585 = vmatprep.subr.mxu0 0.0
        %2586 = vmatpush1.msra.mxu0 0.0
        %2587 = vmatprep.subr.mxu0 0.0
        %2588 = vmatpush1.msra.mxu0 0.0
        %2589 = vmatprep.mubr.f32.mxu0 0.0
        %2590 = vmatmul.mubr.f32.gmra.mrb[0].mxu0 %v2507
        %v2591 = vpop.f32.mrb[0].mxu0
        %v2592 = vadd.f32 0.0, %v2591
        %v2593 = vpop.f32.mrb[0].mxu0
        %2594 = vdwg.mxu0
        %v2595 = vadd.f32 %v2506, %v2592
        %v2596 = vld [vmem:[#allocation3 + $0x2] sm:$0x1]
        %s2597 = scalar_lea.vmem %s6, 256
        %v2598 = vld [vmem:[%s2597] sm:$0xff]
        %v2599 = vld [vmem:[%s2597 + $0x8] sm:$0xff]
        %v2600 = vld [vmem:[%s2597 + $0x10] sm:$0xff]
        %v2601 = vld [vmem:[%s2597 + $0x18] sm:$0xff]
        %v2602 = vld [vmem:[%s2597 + $0x20] sm:$0xff]
        %v2603 = vld [vmem:[%s2597 + $0x28] sm:$0xff]
        %v2604 = vld [vmem:[%s2597 + $0x30] sm:$0xff]
        %v2605 = vld [vmem:[%s2597 + $0x38] sm:$0xff]
        %v2606 = vld [vmem:[%s2597 + $0x40] sm:$0xff]
        %v2607 = vld [vmem:[%s2597 + $0x48] sm:$0xff]
        %v2608 = vld [vmem:[%s2597 + $0x50] sm:$0xff]
        %v2609 = vld [vmem:[%s2597 + $0x58] sm:$0xff]
        %v2610 = vld [vmem:[%s2597 + $0x60] sm:$0xff]
        %v2611 = vld [vmem:[%s2597 + $0x68] sm:$0xff]
        %v2612 = vld [vmem:[%s2597 + $0x70] sm:$0xff]
        %v2613 = vld [vmem:[%s2597 + $0x78] sm:$0xff]
        %2614 = vmatprep.subr.mxu0 0.0
        %2615 = vmatpush1.msra.mxu0 %v2598
        %2616 = vmatprep.subr.mxu0 0.0
        %2617 = vmatpush1.msra.mxu0 %v2599
        %2618 = vmatprep.subr.mxu0 0.0
        %2619 = vmatpush1.msra.mxu0 %v2600
        %2620 = vmatprep.subr.mxu0 0.0
        %2621 = vmatpush1.msra.mxu0 %v2601
        %2622 = vmatprep.subr.mxu0 0.0
        %2623 = vmatpush1.msra.mxu0 %v2602
        %2624 = vmatprep.subr.mxu0 0.0
        %2625 = vmatpush1.msra.mxu0 %v2603
        %2626 = vmatprep.subr.mxu0 0.0
        %2627 = vmatpush1.msra.mxu0 %v2604
        %2628 = vmatprep.subr.mxu0 0.0
        %2629 = vmatpush1.msra.mxu0 %v2605
        %2630 = vmatprep.subr.mxu0 0.0
        %2631 = vmatpush1.msra.mxu0 %v2606
        %2632 = vmatprep.subr.mxu0 0.0
        %2633 = vmatpush1.msra.mxu0 %v2607
        %2634 = vmatprep.subr.mxu0 0.0
        %2635 = vmatpush1.msra.mxu0 %v2608
        %2636 = vmatprep.subr.mxu0 0.0
        %2637 = vmatpush1.msra.mxu0 %v2609
        %2638 = vmatprep.subr.mxu0 0.0
        %2639 = vmatpush1.msra.mxu0 %v2610
        %2640 = vmatprep.subr.mxu0 0.0
        %2641 = vmatpush1.msra.mxu0 %v2611
        %2642 = vmatprep.subr.mxu0 0.0
        %2643 = vmatpush1.msra.mxu0 %v2612
        %2644 = vmatprep.subr.mxu0 0.0
        %2645 = vmatpush1.msra.mxu0 %v2613
        %2646 = vmatprep.subr.mxu0 0.0
        %2647 = vmatpush1.msra.mxu0 0.0
        %2648 = vmatprep.subr.mxu0 0.0
        %2649 = vmatpush1.msra.mxu0 0.0
        %2650 = vmatprep.subr.mxu0 0.0
        %2651 = vmatpush1.msra.mxu0 0.0
        %2652 = vmatprep.subr.mxu0 0.0
        %2653 = vmatpush1.msra.mxu0 0.0
        %2654 = vmatprep.subr.mxu0 0.0
        %2655 = vmatpush1.msra.mxu0 0.0
        %2656 = vmatprep.subr.mxu0 0.0
        %2657 = vmatpush1.msra.mxu0 0.0
        %2658 = vmatprep.subr.mxu0 0.0
        %2659 = vmatpush1.msra.mxu0 0.0
        %2660 = vmatprep.subr.mxu0 0.0
        %2661 = vmatpush1.msra.mxu0 0.0
        %2662 = vmatprep.subr.mxu0 0.0
        %2663 = vmatpush1.msra.mxu0 0.0
        %2664 = vmatprep.subr.mxu0 0.0
        %2665 = vmatpush1.msra.mxu0 0.0
        %2666 = vmatprep.subr.mxu0 0.0
        %2667 = vmatpush1.msra.mxu0 0.0
        %2668 = vmatprep.subr.mxu0 0.0
        %2669 = vmatpush1.msra.mxu0 0.0
        %2670 = vmatprep.subr.mxu0 0.0
        %2671 = vmatpush1.msra.mxu0 0.0
        %2672 = vmatprep.subr.mxu0 0.0
        %2673 = vmatpush1.msra.mxu0 0.0
        %2674 = vmatprep.subr.mxu0 0.0
        %2675 = vmatpush1.msra.mxu0 0.0
        %2676 = vmatprep.subr.mxu0 0.0
        %2677 = vmatpush1.msra.mxu0 0.0
        %2678 = vmatprep.mubr.f32.mxu0 0.0
        %2679 = vmatmul.mubr.f32.gmra.mrb[0].mxu0 %v2596
        %v2680 = vpop.f32.mrb[0].mxu0
        %v2681 = vadd.f32 0.0, %v2680
        %v2682 = vpop.f32.mrb[0].mxu0
        %2683 = vdwg.mxu0
        %v2684 = vadd.f32 %v2595, %v2681
        %v2685 = vld [vmem:[#allocation3 + $0x3] sm:$0x1]
        %s2686 = scalar_lea.vmem %s6, 384
        %v2687 = vld [vmem:[%s2686] sm:$0xff]
        %v2688 = vld [vmem:[%s2686 + $0x8] sm:$0xff]
        %v2689 = vld [vmem:[%s2686 + $0x10] sm:$0xff]
        %v2690 = vld [vmem:[%s2686 + $0x18] sm:$0xff]
        %v2691 = vld [vmem:[%s2686 + $0x20] sm:$0xff]
        %v2692 = vld [vmem:[%s2686 + $0x28] sm:$0xff]
        %v2693 = vld [vmem:[%s2686 + $0x30] sm:$0xff]
        %v2694 = vld [vmem:[%s2686 + $0x38] sm:$0xff]
        %v2695 = vld [vmem:[%s2686 + $0x40] sm:$0xff]
        %v2696 = vld [vmem:[%s2686 + $0x48] sm:$0xff]
        %v2697 = vld [vmem:[%s2686 + $0x50] sm:$0xff]
        %v2698 = vld [vmem:[%s2686 + $0x58] sm:$0xff]
        %v2699 = vld [vmem:[%s2686 + $0x60] sm:$0xff]
        %v2700 = vld [vmem:[%s2686 + $0x68] sm:$0xff]
        %v2701 = vld [vmem:[%s2686 + $0x70] sm:$0xff]
        %v2702 = vld [vmem:[%s2686 + $0x78] sm:$0xff]
        %2703 = vmatprep.subr.mxu0 0.0
        %2704 = vmatpush1.msra.mxu0 %v2687
        %2705 = vmatprep.subr.mxu0 0.0
        %2706 = vmatpush1.msra.mxu0 %v2688
        %2707 = vmatprep.subr.mxu0 0.0
        %2708 = vmatpush1.msra.mxu0 %v2689
        %2709 = vmatprep.subr.mxu0 0.0
        %2710 = vmatpush1.msra.mxu0 %v2690
        %2711 = vmatprep.subr.mxu0 0.0
        %2712 = vmatpush1.msra.mxu0 %v2691
        %2713 = vmatprep.subr.mxu0 0.0
        %2714 = vmatpush1.msra.mxu0 %v2692
        %2715 = vmatprep.subr.mxu0 0.0
        %2716 = vmatpush1.msra.mxu0 %v2693
        %2717 = vmatprep.subr.mxu0 0.0
        %2718 = vmatpush1.msra.mxu0 %v2694
        %2719 = vmatprep.subr.mxu0 0.0
        %2720 = vmatpush1.msra.mxu0 %v2695
        %2721 = vmatprep.subr.mxu0 0.0
        %2722 = vmatpush1.msra.mxu0 %v2696
        %2723 = vmatprep.subr.mxu0 0.0
        %2724 = vmatpush1.msra.mxu0 %v2697
        %2725 = vmatprep.subr.mxu0 0.0
        %2726 = vmatpush1.msra.mxu0 %v2698
        %2727 = vmatprep.subr.mxu0 0.0
        %2728 = vmatpush1.msra.mxu0 %v2699
        %2729 = vmatprep.subr.mxu0 0.0
        %2730 = vmatpush1.msra.mxu0 %v2700
        %2731 = vmatprep.subr.mxu0 0.0
        %2732 = vmatpush1.msra.mxu0 %v2701
        %2733 = vmatprep.subr.mxu0 0.0
        %2734 = vmatpush1.msra.mxu0 %v2702
        %2735 = vmatprep.subr.mxu0 0.0
        %2736 = vmatpush1.msra.mxu0 0.0
        %2737 = vmatprep.subr.mxu0 0.0
        %2738 = vmatpush1.msra.mxu0 0.0
        %2739 = vmatprep.subr.mxu0 0.0
        %2740 = vmatpush1.msra.mxu0 0.0
        %2741 = vmatprep.subr.mxu0 0.0
        %2742 = vmatpush1.msra.mxu0 0.0
        %2743 = vmatprep.subr.mxu0 0.0
        %2744 = vmatpush1.msra.mxu0 0.0
        %2745 = vmatprep.subr.mxu0 0.0
        %2746 = vmatpush1.msra.mxu0 0.0
        %2747 = vmatprep.subr.mxu0 0.0
        %2748 = vmatpush1.msra.mxu0 0.0
        %2749 = vmatprep.subr.mxu0 0.0
        %2750 = vmatpush1.msra.mxu0 0.0
        %2751 = vmatprep.subr.mxu0 0.0
        %2752 = vmatpush1.msra.mxu0 0.0
        %2753 = vmatprep.subr.mxu0 0.0
        %2754 = vmatpush1.msra.mxu0 0.0
        %2755 = vmatprep.subr.mxu0 0.0
        %2756 = vmatpush1.msra.mxu0 0.0
        %2757 = vmatprep.subr.mxu0 0.0
        %2758 = vmatpush1.msra.mxu0 0.0
        %2759 = vmatprep.subr.mxu0 0.0
        %2760 = vmatpush1.msra.mxu0 0.0
        %2761 = vmatprep.subr.mxu0 0.0
        %2762 = vmatpush1.msra.mxu0 0.0
        %2763 = vmatprep.subr.mxu0 0.0
        %2764 = vmatpush1.msra.mxu0 0.0
        %2765 = vmatprep.subr.mxu0 0.0
        %2766 = vmatpush1.msra.mxu0 0.0
        %2767 = vmatprep.mubr.f32.mxu0 0.0
        %2768 = vmatmul.mubr.f32.gmra.mrb[0].mxu0 %v2685
        %v2769 = vpop.f32.mrb[0].mxu0
        %v2770 = vadd.f32 0.0, %v2769
        %v2771 = vpop.f32.mrb[0].mxu0
        %2772 = vdwg.mxu0
        %v2773 = vadd.f32 %v2684, %v2770
        %v2774 = vld [vmem:[#allocation3 + $0x4] sm:$0x1]
        %s2775 = scalar_lea.vmem %s6, 512
        %v2776 = vld [vmem:[%s2775] sm:$0xff]
        %v2777 = vld [vmem:[%s2775 + $0x8] sm:$0xff]
        %v2778 = vld [vmem:[%s2775 + $0x10] sm:$0xff]
        %v2779 = vld [vmem:[%s2775 + $0x18] sm:$0xff]
        %v2780 = vld [vmem:[%s2775 + $0x20] sm:$0xff]
        %v2781 = vld [vmem:[%s2775 + $0x28] sm:$0xff]
        %v2782 = vld [vmem:[%s2775 + $0x30] sm:$0xff]
        %v2783 = vld [vmem:[%s2775 + $0x38] sm:$0xff]
        %v2784 = vld [vmem:[%s2775 + $0x40] sm:$0xff]
        %v2785 = vld [vmem:[%s2775 + $0x48] sm:$0xff]
        %v2786 = vld [vmem:[%s2775 + $0x50] sm:$0xff]
        %v2787 = vld [vmem:[%s2775 + $0x58] sm:$0xff]
        %v2788 = vld [vmem:[%s2775 + $0x60] sm:$0xff]
        %v2789 = vld [vmem:[%s2775 + $0x68] sm:$0xff]
        %v2790 = vld [vmem:[%s2775 + $0x70] sm:$0xff]
        %v2791 = vld [vmem:[%s2775 + $0x78] sm:$0xff]
        %2792 = vmatprep.subr.mxu0 0.0
        %2793 = vmatpush1.msra.mxu0 %v2776
        %2794 = vmatprep.subr.mxu0 0.0
        %2795 = vmatpush1.msra.mxu0 %v2777
        %2796 = vmatprep.subr.mxu0 0.0
        %2797 = vmatpush1.msra.mxu0 %v2778
        %2798 = vmatprep.subr.mxu0 0.0
        %2799 = vmatpush1.msra.mxu0 %v2779
        %2800 = vmatprep.subr.mxu0 0.0
        %2801 = vmatpush1.msra.mxu0 %v2780
        %2802 = vmatprep.subr.mxu0 0.0
        %2803 = vmatpush1.msra.mxu0 %v2781
        %2804 = vmatprep.subr.mxu0 0.0
        %2805 = vmatpush1.msra.mxu0 %v2782
        %2806 = vmatprep.subr.mxu0 0.0
        %2807 = vmatpush1.msra.mxu0 %v2783
        %2808 = vmatprep.subr.mxu0 0.0
        %2809 = vmatpush1.msra.mxu0 %v2784
        %2810 = vmatprep.subr.mxu0 0.0
        %2811 = vmatpush1.msra.mxu0 %v2785
        %2812 = vmatprep.subr.mxu0 0.0
        %2813 = vmatpush1.msra.mxu0 %v2786
        %2814 = vmatprep.subr.mxu0 0.0
        %2815 = vmatpush1.msra.mxu0 %v2787
        %2816 = vmatprep.subr.mxu0 0.0
        %2817 = vmatpush1.msra.mxu0 %v2788
        %2818 = vmatprep.subr.mxu0 0.0
        %2819 = vmatpush1.msra.mxu0 %v2789
        %2820 = vmatprep.subr.mxu0 0.0
        %2821 = vmatpush1.msra.mxu0 %v2790
        %2822 = vmatprep.subr.mxu0 0.0
        %2823 = vmatpush1.msra.mxu0 %v2791
        %2824 = vmatprep.subr.mxu0 0.0
        %2825 = vmatpush1.msra.mxu0 0.0
        %2826 = vmatprep.subr.mxu0 0.0
        %2827 = vmatpush1.msra.mxu0 0.0
        %2828 = vmatprep.subr.mxu0 0.0
        %2829 = vmatpush1.msra.mxu0 0.0
        %2830 = vmatprep.subr.mxu0 0.0
        %2831 = vmatpush1.msra.mxu0 0.0
        %2832 = vmatprep.subr.mxu0 0.0
        %2833 = vmatpush1.msra.mxu0 0.0
        %2834 = vmatprep.subr.mxu0 0.0
        %2835 = vmatpush1.msra.mxu0 0.0
        %2836 = vmatprep.subr.mxu0 0.0
        %2837 = vmatpush1.msra.mxu0 0.0
        %2838 = vmatprep.subr.mxu0 0.0
        %2839 = vmatpush1.msra.mxu0 0.0
        %2840 = vmatprep.subr.mxu0 0.0
        %2841 = vmatpush1.msra.mxu0 0.0
        %2842 = vmatprep.subr.mxu0 0.0
        %2843 = vmatpush1.msra.mxu0 0.0
        %2844 = vmatprep.subr.mxu0 0.0
        %2845 = vmatpush1.msra.mxu0 0.0
        %2846 = vmatprep.subr.mxu0 0.0
        %2847 = vmatpush1.msra.mxu0 0.0
        %2848 = vmatprep.subr.mxu0 0.0
        %2849 = vmatpush1.msra.mxu0 0.0
        %2850 = vmatprep.subr.mxu0 0.0
        %2851 = vmatpush1.msra.mxu0 0.0
        %2852 = vmatprep.subr.mxu0 0.0
        %2853 = vmatpush1.msra.mxu0 0.0
        %2854 = vmatprep.subr.mxu0 0.0
        %2855 = vmatpush1.msra.mxu0 0.0
        %2856 = vmatprep.mubr.f32.mxu0 0.0
        %2857 = vmatmul.mubr.f32.gmra.mrb[0].mxu0 %v2774
        %v2858 = vpop.f32.mrb[0].mxu0
        %v2859 = vadd.f32 0.0, %v2858
        %v2860 = vpop.f32.mrb[0].mxu0
        %2861 = vdwg.mxu0
        %v2862 = vadd.f32 %v2773, %v2859
        %v2863 = vmax.f32 %v2862, 0.0
        %v2864 = vld [vmem:[%s8] sm:$0xff]
        %v2865 = vld [vmem:[%s8 + $0x8] sm:$0xff]
        %v2866 = vld [vmem:[%s8 + $0x10] sm:$0xff]
        %v2867 = vld [vmem:[%s8 + $0x18] sm:$0xff]
        %v2868 = vld [vmem:[%s8 + $0x20] sm:$0xff]
        %v2869 = vld [vmem:[%s8 + $0x28] sm:$0xff]
        %v2870 = vld [vmem:[%s8 + $0x30] sm:$0xff]
        %v2871 = vld [vmem:[%s8 + $0x38] sm:$0xff]
        %v2872 = vld [vmem:[%s8 + $0x40] sm:$0xff]
        %v2873 = vld [vmem:[%s8 + $0x48] sm:$0xff]
        %v2874 = vld [vmem:[%s8 + $0x50] sm:$0xff]
        %v2875 = vld [vmem:[%s8 + $0x58] sm:$0xff]
        %v2876 = vld [vmem:[%s8 + $0x60] sm:$0xff]
        %v2877 = vld [vmem:[%s8 + $0x68] sm:$0xff]
        %v2878 = vld [vmem:[%s8 + $0x70] sm:$0xff]
        %v2879 = vld [vmem:[%s9] sm:$0x1]
        %vm2880 = vcmask 982016
        %v2882 = vsel %vm2880, %v2863, 0
        %2884 = vmatprep.subr.mxu0 0.0
        %2885 = vmatpush1.msra.mxu0 %v2864
        %2886 = vmatprep.subr.mxu0 0.0
        %2887 = vmatpush1.msra.mxu0 %v2865
        %2888 = vmatprep.subr.mxu0 0.0
        %2889 = vmatpush1.msra.mxu0 %v2866
        %2890 = vmatprep.subr.mxu0 0.0
        %2891 = vmatpush1.msra.mxu0 %v2867
        %2892 = vmatprep.subr.mxu0 0.0
        %2893 = vmatpush1.msra.mxu0 %v2868
        %2894 = vmatprep.subr.mxu0 0.0
        %2895 = vmatpush1.msra.mxu0 %v2869
        %2896 = vmatprep.subr.mxu0 0.0
        %2897 = vmatpush1.msra.mxu0 %v2870
        %2898 = vmatprep.subr.mxu0 0.0
        %2899 = vmatpush1.msra.mxu0 %v2871
        %2900 = vmatprep.subr.mxu0 0.0
        %2901 = vmatpush1.msra.mxu0 %v2872
        %2902 = vmatprep.subr.mxu0 0.0
        %2903 = vmatpush1.msra.mxu0 %v2873
        %2904 = vmatprep.subr.mxu0 0.0
        %2905 = vmatpush1.msra.mxu0 %v2874
        %2906 = vmatprep.subr.mxu0 0.0
        %2907 = vmatpush1.msra.mxu0 %v2875
        %2908 = vmatprep.subr.mxu0 0.0
        %2909 = vmatpush1.msra.mxu0 %v2876
        %2910 = vmatprep.subr.mxu0 0.0
        %2911 = vmatpush1.msra.mxu0 %v2877
        %2912 = vmatprep.subr.mxu0 0.0
        %2913 = vmatpush1.msra.mxu0 %v2878
        %2914 = vmatprep.subr.mxu0 0.0
        %2915 = vmatpush1.msra.mxu0 0.0
        %2916 = vmatprep.subr.mxu0 0.0
        %2917 = vmatpush1.msra.mxu0 0.0
        %2918 = vmatprep.subr.mxu0 0.0
        %2919 = vmatpush1.msra.mxu0 0.0
        %2920 = vmatprep.subr.mxu0 0.0
        %2921 = vmatpush1.msra.mxu0 0.0
        %2922 = vmatprep.subr.mxu0 0.0
        %2923 = vmatpush1.msra.mxu0 0.0
        %2924 = vmatprep.subr.mxu0 0.0
        %2925 = vmatpush1.msra.mxu0 0.0
        %2926 = vmatprep.subr.mxu0 0.0
        %2927 = vmatpush1.msra.mxu0 0.0
        %2928 = vmatprep.subr.mxu0 0.0
        %2929 = vmatpush1.msra.mxu0 0.0
        %2930 = vmatprep.subr.mxu0 0.0
        %2931 = vmatpush1.msra.mxu0 0.0
        %2932 = vmatprep.subr.mxu0 0.0
        %2933 = vmatpush1.msra.mxu0 0.0
        %2934 = vmatprep.subr.mxu0 0.0
        %2935 = vmatpush1.msra.mxu0 0.0
        %2936 = vmatprep.subr.mxu0 0.0
        %2937 = vmatpush1.msra.mxu0 0.0
        %2938 = vmatprep.subr.mxu0 0.0
        %2939 = vmatpush1.msra.mxu0 0.0
        %2940 = vmatprep.subr.mxu0 0.0
        %2941 = vmatpush1.msra.mxu0 0.0
        %2942 = vmatprep.subr.mxu0 0.0
        %2943 = vmatpush1.msra.mxu0 0.0
        %2944 = vmatprep.subr.mxu0 0.0
        %2945 = vmatpush1.msra.mxu0 0.0
        %2946 = vmatprep.subr.mxu0 0.0
        %2947 = vmatpush1.msra.mxu0 0.0
        %2948 = vmatprep.mubr.f32.mxu0 0.0
        %2949 = vmatmul.mubr.f32.gmra.mrb[0].mxu0 %v2882
        %v2950 = vpop.f32.mrb[0].mxu0
        %v2951 = vadd.f32 %v2879, %v2950
        %v2952 = vpop.f32.mrb[0].mxu0
        %2953 = vdwg.mxu0
        %v2954 = vmax.f32 %v2951, 0.0
        %v2955 = vld [vmem:[%s10] sm:$0xff]
        %v2956 = vld [vmem:[%s10 + $0x8] sm:$0xff]
        %v2957 = vld [vmem:[%s10 + $0x10] sm:$0xff]
        %v2958 = vld [vmem:[%s10 + $0x18] sm:$0xff]
        %v2959 = vld [vmem:[%s10 + $0x20] sm:$0xff]
        %v2960 = vld [vmem:[%s10 + $0x28] sm:$0xff]
        %v2961 = vld [vmem:[%s10 + $0x30] sm:$0xff]
        %v2962 = vld [vmem:[%s10 + $0x38] sm:$0xff]
        %v2963 = vld [vmem:[%s10 + $0x40] sm:$0xff]
        %v2964 = vld [vmem:[%s10 + $0x48] sm:$0xff]
        %v2965 = vld [vmem:[%s10 + $0x50] sm:$0xf]
        %v2966 = vld [vmem:[%s11] sm:$0x1]
        %vm2967 = vcmask 687104
        %v2969 = vsel %vm2967, %v2954, 0
        %vm2971 = vcmask 1043456
        %v2973 = vsel %vm2971, %v2965, 0
        %2975 = vmatprep.subr.mxu0 0.0
        %2976 = vmatpush1.msra.mxu0 %v2955
        %2977 = vmatprep.subr.mxu0 0.0
        %2978 = vmatpush1.msra.mxu0 %v2956
        %2979 = vmatprep.subr.mxu0 0.0
        %2980 = vmatpush1.msra.mxu0 %v2957
        %2981 = vmatprep.subr.mxu0 0.0
        %2982 = vmatpush1.msra.mxu0 %v2958
        %2983 = vmatprep.subr.mxu0 0.0
        %2984 = vmatpush1.msra.mxu0 %v2959
        %2985 = vmatprep.subr.mxu0 0.0
        %2986 = vmatpush1.msra.mxu0 %v2960
        %2987 = vmatprep.subr.mxu0 0.0
        %2988 = vmatpush1.msra.mxu0 %v2961
        %2989 = vmatprep.subr.mxu0 0.0
        %2990 = vmatpush1.msra.mxu0 %v2962
        %2991 = vmatprep.subr.mxu0 0.0
        %2992 = vmatpush1.msra.mxu0 %v2963
        %2993 = vmatprep.subr.mxu0 0.0
        %2994 = vmatpush1.msra.mxu0 %v2964
        %2995 = vmatprep.subr.mxu0 0.0
        %2996 = vmatpush1.msra.mxu0 %v2973
        %2997 = vmatprep.subr.mxu0 0.0
        %2998 = vmatpush1.msra.mxu0 0.0
        %2999 = vmatprep.subr.mxu0 0.0
        %3000 = vmatpush1.msra.mxu0 0.0
        %3001 = vmatprep.subr.mxu0 0.0
        %3002 = vmatpush1.msra.mxu0 0.0
        %3003 = vmatprep.subr.mxu0 0.0
        %3004 = vmatpush1.msra.mxu0 0.0
        %3005 = vmatprep.subr.mxu0 0.0
        %3006 = vmatpush1.msra.mxu0 0.0
        %3007 = vmatprep.subr.mxu0 0.0
        %3008 = vmatpush1.msra.mxu0 0.0
        %3009 = vmatprep.subr.mxu0 0.0
        %3010 = vmatpush1.msra.mxu0 0.0
        %3011 = vmatprep.subr.mxu0 0.0
        %3012 = vmatpush1.msra.mxu0 0.0
        %3013 = vmatprep.subr.mxu0 0.0
        %3014 = vmatpush1.msra.mxu0 0.0
        %3015 = vmatprep.subr.mxu0 0.0
        %3016 = vmatpush1.msra.mxu0 0.0
        %3017 = vmatprep.subr.mxu0 0.0
        %3018 = vmatpush1.msra.mxu0 0.0
        %3019 = vmatprep.subr.mxu0 0.0
        %3020 = vmatpush1.msra.mxu0 0.0
        %3021 = vmatprep.subr.mxu0 0.0
        %3022 = vmatpush1.msra.mxu0 0.0
        %3023 = vmatprep.subr.mxu0 0.0
        %3024 = vmatpush1.msra.mxu0 0.0
        %3025 = vmatprep.subr.mxu0 0.0
        %3026 = vmatpush1.msra.mxu0 0.0
        %3027 = vmatprep.subr.mxu0 0.0
        %3028 = vmatpush1.msra.mxu0 0.0
        %3029 = vmatprep.subr.mxu0 0.0
        %3030 = vmatpush1.msra.mxu0 0.0
        %3031 = vmatprep.subr.mxu0 0.0
        %3032 = vmatpush1.msra.mxu0 0.0
        %3033 = vmatprep.subr.mxu0 0.0
        %3034 = vmatpush1.msra.mxu0 0.0
        %3035 = vmatprep.subr.mxu0 0.0
        %3036 = vmatpush1.msra.mxu0 0.0
        %3037 = vmatprep.subr.mxu0 0.0
        %3038 = vmatpush1.msra.mxu0 0.0
        %3039 = vmatprep.mubr.f32.mxu0 0.0
        %3040 = vmatmul.mubr.f32.gmra.mrb[0].mxu0 %v2969
        %v3041 = vpop.f32.mrb[0].mxu0
        %v3042 = vadd.f32 %v2966, %v3041
        %v3043 = vpop.f32.mrb[0].mxu0
        %3044 = vdwg.mxu0
        %vm3045 = vcmask 73728
        %3046 = vst.msk [vmem:[%s405] sm:$0x1] %vm3045, %v3042
        %s3047 = sand.u32 %s291, 1
        %s3048 = scalar_lea.sflag [#allocation5], %s3047
        %s3049 = sand.u32 %s291, 1
        %s3050 = scalar_lea.vmem [#allocation4], %s3049
        // Predicated region
        $region69: #{net_forward.1} parent=67 // pred_check
          %p3051 = pneg %p301
        $region70: #{net_forward.1} parent=67 // pred_check_branch
          %3053 = sbr.rel (%p3051) target = $region72
        $region71: #{net_forward.1} parent=67 // pred_region
          %s3055 = ssub.s32 16, 16
          %3056 = vsyncadd %s3048, %s3055
          %s3057 = smul.addr %s26, 16
          %s3058 = scalar_lea.hbm %s12, %s3057
          %s3060 = sshll.u32 %s3050, 4
          %s3061 = int_to_ptr.vmem [resolvable:$true] %s3060
          %3063 = dma.vmem_to_hbm [thread:$0]  %s3061, 16, %s3058, %s3048
        $region72: #{net_forward.1} parent=67 // pred_fallthru
          _
      $region68: #{net_forward.1} parent=5 // pred_fallthru
        _
      %p3064 = scmp.le.s32.totalorder 2, %s21
      // Predicated region
      $region73: #{net_forward.1} parent=5 // pred_check
        %p3065 = pneg %p3064
      $region74: #{net_forward.1} parent=5 // pred_check_branch
        %3067 = sbr.rel (%p3065) target = $region76
      $region75: #{net_forward.1} parent=5 // pred_region
        %s3068 = ssub.s32 %s21, 2
        // Predicated region
        $region77: #{net_forward.1} parent=75 // pred_check
          %p3069 = pneg %p307
        $region78: #{net_forward.1} parent=75 // pred_check_branch
          %3071 = sbr.rel (%p3069) target = $region80
        $region79: #{net_forward.1} parent=75 // pred_region
          %s3072 = sand.u32 %s292, 1
          %s3073 = scalar_lea.sflag [#allocation5], %s3072
          %s3074 = sand.u32 %s292, 1
          %s3075 = scalar_lea.vmem [#allocation4], %s3074
          %3076 = dma.done %s3073, 16
        $region80: #{net_forward.1} parent=75 // pred_fallthru
          _
      $region76: #{net_forward.1} parent=5 // pred_fallthru
        _
    $region6: #{net_forward.1} parent=1 // loop_footer
      %s25 = sadd.s32 1, %s21
    $region7: #{net_forward.1} parent=1 // loop_footer_branch
      %20 = sbr.rel target = $region3
    $region8: #{net_forward.1} parent=1 // loop_exit
      _
    %3077 = vsyncpa [#allocation5], 1
    %s3078 = scalar_lea.sflag [#allocation5], 1
    %3079 = vsyncpa %s3078, 1

</llo_original>
